<compile_context>
chip_gen: v6e
topology: v6e:2x2x1
jax: 0.10.0
libtpu: 0.0.40
codegen_flags: <defaults>
</compile_context>

<pallas_src>
import functools
import math

import jax
import jax.numpy as jnp
import numpy as np
from jax.experimental import pallas as pl
from jax.experimental.pallas import tpu as pltpu

# --- small, CONFIG-consistent shapes (dim divisible by n_heads, ff as in module) ---
BATCH = 2
SEQ = 8
DIM = 32
N_HEADS = 4
HEAD_DIM = DIM // N_HEADS
FF_DIM = 64
LN_EPS = 1e-5


def _gelu_tanh(x):
    # TODO(synk): torch F.gelu default is the exact erf GELU; the tanh approximation
    # is used because erf has no guaranteed Mosaic lowering (max diff ~1e-3).
    return 0.5 * x * (1.0 + jnp.tanh(0.7978845608028654 * (x + 0.044715 * x * x * x)))


def _layernorm(v, gamma, beta):
    mu = jnp.mean(v, axis=-1, keepdims=True)
    var = jnp.mean((v - mu) ** 2, axis=-1, keepdims=True)
    return (v - mu) * jax.lax.rsqrt(var + LN_EPS) * gamma + beta


def _hrom_block_kernel(
    x_ref,      # (rows, C)     fused batch*seq rows for this grid step
    cos_ref,    # (rows, hd)
    sin_ref,    # (rows, hd)
    bias_ref,   # (rows, rows)  block-diagonal additive mask (keeps attn within a batch)
    wqkv_ref,   # (3*H, C, hd)  per-head q/k/v weights, (in, out) layout
    bqkv_ref,   # (3*H, 1, hd)
    wproj_ref,  # (H, hd, C)    per-head row-slabs of the output projection
    w1_ref,     # (2, C, FF)    [0] = value path, [1] = gate path of ff linear 1
    bf1_ref,    # (2, 1, FF)
    w2_ref,     # (FF, C)
    vec_ref,    # (6, 1, C)     [g1, be1, bproj, g2, be2, bf2]
    out_ref,    # (rows, C)
):
    f32 = jnp.float32
    x = x_ref[...]
    cos = cos_ref[...]
    sin = sin_ref[...]
    bias = bias_ref[...]

    g1, be1, bproj = vec_ref[0], vec_ref[1], vec_ref[2]
    g2, be2, bf2 = vec_ref[3], vec_ref[4], vec_ref[5]

    hd = HEAD_DIM
    half = hd // 2
    # rotate_half as a signed permutation matrix -> one tiny matmul on the idle MXU
    # instead of half-width lane slices + concatenates per head.
    ri = jax.lax.broadcasted_iota(jnp.int32, (hd, hd), 0)
    ci = jax.lax.broadcasted_iota(jnp.int32, (hd, hd), 1)
    rot_mat = (jnp.where(ri - ci == half, -1.0, 0.0)
               + jnp.where(ci - ri == half, 1.0, 0.0)).astype(f32)

    # ---------------- attention branch (pre-LN) ----------------
    xn = _layernorm(x, g1, be1)
    scale = 1.0 / math.sqrt(hd)
    attn = jnp.zeros_like(x)
    for h in range(N_HEADS):   # static unroll; only leading-axis ref indexing, no lane slices
        q = jnp.dot(xn, wqkv_ref[0 * N_HEADS + h], preferred_element_type=f32) + bqkv_ref[0 * N_HEADS + h]
        k = jnp.dot(xn, wqkv_ref[1 * N_HEADS + h], preferred_element_type=f32) + bqkv_ref[1 * N_HEADS + h]
        v = jnp.dot(xn, wqkv_ref[2 * N_HEADS + h], preferred_element_type=f32) + bqkv_ref[2 * N_HEADS + h]
        q = q * cos + jnp.dot(q, rot_mat, preferred_element_type=f32) * sin   # RoPE
        k = k * cos + jnp.dot(k, rot_mat, preferred_element_type=f32) * sin
        s = jax.lax.dot_general(q, k, (((1,), (1,)), ((), ())),
                                preferred_element_type=f32) * scale + bias
        # TODO(synk): optional additive attention `mask` (forward default mask=None) would
        # simply be added to `s` here, next to the batch block-diagonal bias.
        s = s - jnp.max(s, axis=-1, keepdims=True)
        p = jnp.exp(s)
        denom = jnp.sum(p, axis=-1, keepdims=True)
        inv = pl.reciprocal(denom, approx=True)    # EUP slot, free next to the VPU work
        inv = inv * (2.0 - denom * inv)            # one Newton step -> f32-accurate
        p = p * inv
        o = jnp.dot(p, v, preferred_element_type=f32)                         # (rows, hd)
        attn = attn + jnp.dot(o, wproj_ref[h], preferred_element_type=f32)    # fold proj per head
    x = x + attn + bproj                           # residual (dropout = identity)

    # ---------------- feed-forward branch (SwiGLU, pre-LN) ----------------
    xn = _layernorm(x, g2, be2)
    a = jnp.dot(xn, w1_ref[0], preferred_element_type=f32) + bf1_ref[0]
    gate = jnp.dot(xn, w1_ref[1], preferred_element_type=f32) + bf1_ref[1]
    ff = jnp.dot(a * _gelu_tanh(gate), w2_ref[...], preferred_element_type=f32) + bf2
    out_ref[...] = (x + ff).astype(out_ref.dtype)  # residual (dropout = identity)


def hrom_block_pallas(x, params, cos, sin, *, num_groups=1):
    """x: (B, T, C); params in the original (pre-transposed, (in,out)-layout) tuple."""
    (g1, be1, wqkv, bqkv, wproj, bproj, g2, be2, w1, bf1, w2, bf2) = params
    B, T, C = x.shape
    H, hd = N_HEADS, HEAD_DIM
    assert B % num_groups == 0
    bg = B // num_groups          # batch elements fused into one grid step
    rows = bg * T

    # ---- repack parameters (tiny, one-time XLA ops outside the kernel) ----
    wqkv_h = wqkv.reshape(C, 3, H, hd).transpose(1, 2, 0, 3).reshape(3 * H, C, hd)
    bqkv_h = bqkv.reshape(3, H, hd).reshape(3 * H, 1, hd)
    wproj_h = wproj.reshape(H, hd, C)
    w1_2 = w1.reshape(C, 2, FF_DIM).transpose(1, 0, 2)        # (2, C, FF)
    bf1_2 = bf1.reshape(2, FF_DIM)[:, None, :]                # (2, 1, FF)
    vec = jnp.stack([g1, be1, bproj, g2, be2, bf2], axis=0)   # (6, 1, C)

    x2d = x.reshape(B * T, C)
    cos_t = jnp.tile(cos, (bg, 1))                            # (rows, hd)
    sin_t = jnp.tile(sin, (bg, 1))
    # block-diagonal additive bias: rows only attend within their own batch element
    row_b = jnp.arange(rows) // T
    bias = jnp.where(row_b[:, None] == row_b[None, :], 0.0, -1e30).astype(x.dtype)

    def full(a):
        return pl.BlockSpec(a.shape, lambda g, n=a.ndim: (0,) * n)

    in_specs = [
        pl.BlockSpec((rows, C), lambda g: (g, 0)),            # one fused row-group per step
        full(cos_t), full(sin_t), full(bias),
        full(wqkv_h), full(bqkv_h), full(wproj_h),
        full(w1_2), full(bf1_2), full(w2), full(vec),
    ]
    out_specs = pl.BlockSpec((rows, C), lambda g: (g, 0))

    out2d = pl.pallas_call(
        _hrom_block_kernel,
        out_shape=jax.ShapeDtypeStruct((B * T, C), x.dtype),
        grid_spec=pltpu.PrefetchScalarGridSpec(
            num_scalar_prefetch=0,
            grid=(num_groups,),
            in_specs=in_specs,
            out_specs=out_specs,
        ),
        compiler_params=pltpu.CompilerParams(dimension_semantics=("parallel",)),
    )(x2d, cos_t, sin_t, bias, wqkv_h, bqkv_h, wproj_h, w1_2, bf1_2, w2, vec)
    return out2d.reshape(B, T, C)


# ---------------- pure-JAX reference (mirrors the torch forward) ----------------
def hrom_block_ref(x, params, cos, sin):
    (g1, be1, wqkv, bqkv, wproj, bproj, g2, be2, w1, bf1, w2, bf2) = params
    B, T, C = x.shape
    H, hd = N_HEADS, HEAD_DIM

    def ln(v, g, b):
        mu = v.mean(-1, keepdims=True)
        var = ((v - mu) ** 2).mean(-1, keepdims=True)
        return (v - mu) / jnp.sqrt(var + LN_EPS) * g + b

    def rot_half(t):
        t1, t2 = t[..., : hd // 2], t[..., hd // 2:]
        return jnp.concatenate([-t2, t1], axis=-1)

    xn = ln(x, g1, be1)
    qkv = xn @ wqkv + bqkv
    qkv = qkv.reshape(B, T, 3, H, hd)
    q, k, v = qkv[:, :, 0], qkv[:, :, 1], qkv[:, :, 2]
    q = q.transpose(0, 2, 1, 3)
    k = k.transpose(0, 2, 1, 3)
    v = v.transpose(0, 2, 1, 3)
    c4, s4 = cos[None, None], sin[None, None]
    q = q * c4 + rot_half(q) * s4
    k = k * c4 + rot_half(k) * s4
    s = jnp.einsum("bhtd,bhsd->bhts", q, k) / math.sqrt(hd)
    p = jax.nn.softmax(s, axis=-1)
    o = jnp.einsum("bhts,bhsd->bhtd", p, v)
    o = o.transpose(0, 2, 1, 3).reshape(B, T, C)
    x = x + (o @ wproj + bproj)
    xn = ln(x, g2, be2)
    h = xn @ w1 + bf1
    a, gate = h[..., :FF_DIM], h[..., FF_DIM:]
    x = x + (a * _gelu_tanh(gate)) @ w2 + bf2
    return x


def make_params(key):
    ks = jax.random.split(key, 12)
    std = 0.05
    g1 = 1.0 + std * jax.random.normal(ks[0], (1, DIM), jnp.float32)
    be1 = std * jax.random.normal(ks[1], (1, DIM), jnp.float32)
    g2 = 1.0 + std * jax.random.normal(ks[2], (1, DIM), jnp.float32)
    be2 = std * jax.random.normal(ks[3], (1, DIM), jnp.float32)
    wqkv = std * jax.random.normal(ks[4], (DIM, 3 * DIM), jnp.float32)
    bqkv = std * jax.random.normal(ks[5], (1, 3 * DIM), jnp.float32)
    wproj = std * jax.random.normal(ks[6], (DIM, DIM), jnp.float32)
    bproj = std * jax.random.normal(ks[7], (1, DIM), jnp.float32)
    w1 = std * jax.random.normal(ks[8], (DIM, 2 * FF_DIM), jnp.float32)
    bf1 = std * jax.random.normal(ks[9], (1, 2 * FF_DIM), jnp.float32)
    w2 = std * jax.random.normal(ks[10], (FF_DIM, DIM), jnp.float32)
    bf2 = std * jax.random.normal(ks[11], (1, DIM), jnp.float32)
    return (g1, be1, wqkv, bqkv, wproj, bproj, g2, be2, w1, bf1, w2, bf2)


def make_rope(seq_len, head_dim):
    inv_freq = 1.0 / (10000.0 ** (jnp.arange(0, head_dim, 2, dtype=jnp.float32) / head_dim))
    t = jnp.arange(seq_len, dtype=jnp.float32)
    freqs = jnp.einsum("i,j->ij", t, inv_freq)          # (T, hd/2)
    pos = jnp.concatenate([freqs, freqs], axis=-1)      # (T, hd)
    return jnp.cos(pos), jnp.sin(pos)


if __name__ == "__main__":
    key = jax.random.PRNGKey(0)
    kx, kp = jax.random.split(key)
    x = jax.random.normal(kx, (BATCH, SEQ, DIM), jnp.float32)
    params = make_params(kp)
    cos, sin = make_rope(SEQ, HEAD_DIM)

    # v5e/v6e have one TensorCore -> fuse the whole batch into a single grid step.
    # v7x has 2 TensorCores -> keep a width-2 "parallel" grid (one batch group per core).
    kind = jax.devices()[0].device_kind.lower()
    num_groups = BATCH if "7" in kind else 1

    fn = jax.jit(functools.partial(hrom_block_pallas, num_groups=num_groups))
    out = jax.block_until_ready(fn(x, params, cos, sin))

    ref = hrom_block_ref(x, params, cos, sin)
    np.testing.assert_allclose(np.asarray(out), np.asarray(ref), atol=1e-4, rtol=1e-4)

    print("KERNEL_OK")
</pallas_src>

<mosaic_0001>
module attributes {stable_mosaic.version = 11 : i64} {
  func.func @_hrom_block_kernel(%arg0: i32, %arg1: memref<16x32xf32, #tpu.memory_space<vmem>>, %arg2: memref<16x8xf32, #tpu.memory_space<vmem>>, %arg3: memref<16x8xf32, #tpu.memory_space<vmem>>, %arg4: memref<16x16xf32, #tpu.memory_space<vmem>>, %arg5: memref<12x32x8xf32, #tpu.memory_space<vmem>>, %arg6: memref<12x1x8xf32, #tpu.memory_space<vmem>>, %arg7: memref<4x8x32xf32, #tpu.memory_space<vmem>>, %arg8: memref<2x32x64xf32, #tpu.memory_space<vmem>>, %arg9: memref<2x1x64xf32, #tpu.memory_space<vmem>>, %arg10: memref<64x32xf32, #tpu.memory_space<vmem>>, %arg11: memref<6x1x32xf32, #tpu.memory_space<vmem>>, %arg12: memref<16x32xf32, #tpu.memory_space<vmem>>) attributes {dimension_semantics = [#tpu.dimension_semantics<parallel>], iteration_bounds = array<i64: 1>, scalar_prefetch = 0 : i64, scratch_operands = 0 : i64, tpu.core_type = #tpu.core_type<tc>, window_params = [{transform_indices = @transform_0, window_bounds = array<i64: 16, 32>}, {pipeline_mode = #tpu.pipeline_mode<synchronous>, transform_indices = @transform_1, window_bounds = array<i64: 16, 8>}, {pipeline_mode = #tpu.pipeline_mode<synchronous>, transform_indices = @transform_2, window_bounds = array<i64: 16, 8>}, {pipeline_mode = #tpu.pipeline_mode<synchronous>, transform_indices = @transform_3, window_bounds = array<i64: 16, 16>}, {pipeline_mode = #tpu.pipeline_mode<synchronous>, transform_indices = @transform_4, window_bounds = array<i64: 12, 32, 8>}, {pipeline_mode = #tpu.pipeline_mode<synchronous>, transform_indices = @transform_5, window_bounds = array<i64: 12, 1, 8>}, {pipeline_mode = #tpu.pipeline_mode<synchronous>, transform_indices = @transform_6, window_bounds = array<i64: 4, 8, 32>}, {pipeline_mode = #tpu.pipeline_mode<synchronous>, transform_indices = @transform_7, window_bounds = array<i64: 2, 32, 64>}, {pipeline_mode = #tpu.pipeline_mode<synchronous>, transform_indices = @transform_8, window_bounds = array<i64: 2, 1, 64>}, {pipeline_mode = #tpu.pipeline_mode<synchronous>, transform_indices = @transform_9, window_bounds = array<i64: 64, 32>}, {pipeline_mode = #tpu.pipeline_mode<synchronous>, transform_indices = @transform_10, window_bounds = array<i64: 6, 1, 32>}, {transform_indices = @transform_11, window_bounds = array<i64: 16, 32>}]} {
    %c0 = arith.constant 0 : index
    %c0_0 = arith.constant 0 : index
    %0 = vector.load %arg1[%c0, %c0_0] : memref<16x32xf32, #tpu.memory_space<vmem>>, vector<16x32xf32>
    %c0_1 = arith.constant 0 : index
    %c0_2 = arith.constant 0 : index
    %1 = vector.load %arg2[%c0_1, %c0_2] : memref<16x8xf32, #tpu.memory_space<vmem>>, vector<16x8xf32>
    %c0_3 = arith.constant 0 : index
    %c0_4 = arith.constant 0 : index
    %2 = vector.load %arg3[%c0_3, %c0_4] : memref<16x8xf32, #tpu.memory_space<vmem>>, vector<16x8xf32>
    %c0_5 = arith.constant 0 : index
    %c0_6 = arith.constant 0 : index
    %3 = vector.load %arg4[%c0_5, %c0_6] : memref<16x16xf32, #tpu.memory_space<vmem>>, vector<16x16xf32>
    %c0_7 = arith.constant 0 : index
    %c0_8 = arith.constant 0 : index
    %c0_9 = arith.constant 0 : index
    %4 = vector.load %arg11[%c0_7, %c0_8, %c0_9] : memref<6x1x32xf32, #tpu.memory_space<vmem>>, vector<1x1x32xf32>
    %5 = vector.shape_cast %4 : vector<1x1x32xf32> to vector<1x32xf32>
    %c1 = arith.constant 1 : index
    %c0_10 = arith.constant 0 : index
    %c0_11 = arith.constant 0 : index
    %6 = vector.load %arg11[%c1, %c0_10, %c0_11] : memref<6x1x32xf32, #tpu.memory_space<vmem>>, vector<1x1x32xf32>
    %7 = vector.shape_cast %6 : vector<1x1x32xf32> to vector<1x32xf32>
    %c2 = arith.constant 2 : index
    %c0_12 = arith.constant 0 : index
    %c0_13 = arith.constant 0 : index
    %8 = vector.load %arg11[%c2, %c0_12, %c0_13] : memref<6x1x32xf32, #tpu.memory_space<vmem>>, vector<1x1x32xf32>
    %9 = vector.shape_cast %8 : vector<1x1x32xf32> to vector<1x32xf32>
    %c3 = arith.constant 3 : index
    %c0_14 = arith.constant 0 : index
    %c0_15 = arith.constant 0 : index
    %10 = vector.load %arg11[%c3, %c0_14, %c0_15] : memref<6x1x32xf32, #tpu.memory_space<vmem>>, vector<1x1x32xf32>
    %11 = vector.shape_cast %10 : vector<1x1x32xf32> to vector<1x32xf32>
    %c4 = arith.constant 4 : index
    %c0_16 = arith.constant 0 : index
    %c0_17 = arith.constant 0 : index
    %12 = vector.load %arg11[%c4, %c0_16, %c0_17] : memref<6x1x32xf32, #tpu.memory_space<vmem>>, vector<1x1x32xf32>
    %13 = vector.shape_cast %12 : vector<1x1x32xf32> to vector<1x32xf32>
    %c5 = arith.constant 5 : index
    %c0_18 = arith.constant 0 : index
    %c0_19 = arith.constant 0 : index
    %14 = vector.load %arg11[%c5, %c0_18, %c0_19] : memref<6x1x32xf32, #tpu.memory_space<vmem>>, vector<1x1x32xf32>
    %15 = vector.shape_cast %14 : vector<1x1x32xf32> to vector<1x32xf32>
    %16 = tpu.iota {dimensions = array<i32: 0>} : vector<8x8xi32>
    %17 = tpu.iota {dimensions = array<i32: 1>} : vector<8x8xi32>
    %18 = arith.subi %16, %17 : vector<8x8xi32>
    %c4_i32 = arith.constant 4 : i32
    %19 = vector.broadcast %c4_i32 : i32 to vector<8x8xi32>
    %20 = arith.cmpi eq, %18, %19 : vector<8x8xi32>
    %cst = arith.constant -1.000000e+00 : f32
    %cst_20 = arith.constant 0.000000e+00 : f32
    %21 = vector.broadcast %cst : f32 to vector<8x8xf32>
    %22 = vector.broadcast %cst_20 : f32 to vector<8x8xf32>
    %23 = arith.select %20, %21, %22 : vector<8x8xi1>, vector<8x8xf32>
    %24 = arith.subi %17, %16 : vector<8x8xi32>
    %c4_i32_21 = arith.constant 4 : i32
    %25 = vector.broadcast %c4_i32_21 : i32 to vector<8x8xi32>
    %26 = arith.cmpi eq, %24, %25 : vector<8x8xi32>
    %cst_22 = arith.constant 1.000000e+00 : f32
    %cst_23 = arith.constant 0.000000e+00 : f32
    %27 = vector.broadcast %cst_22 : f32 to vector<8x8xf32>
    %28 = vector.broadcast %cst_23 : f32 to vector<8x8xf32>
    %29 = arith.select %26, %27, %28 : vector<8x8xi1>, vector<8x8xf32>
    %30 = arith.addf %23, %29 : vector<8x8xf32>
    %cst_24 = arith.constant dense<0.000000e+00> : vector<16xf32>
    %31 = vector.multi_reduction <add>, %0, %cst_24 [1] : vector<16x32xf32> to vector<16xf32>
    %32 = vector.shape_cast %31 : vector<16xf32> to vector<16x1xf32>
    %cst_25 = arith.constant 3.200000e+01 : f32
    %33 = vector.broadcast %cst_25 : f32 to vector<16x1xf32>
    %34 = arith.divf %32, %33 : vector<16x1xf32>
    %35 = vector.broadcast %34 : vector<16x1xf32> to vector<16x32xf32>
    %36 = arith.subf %0, %35 : vector<16x32xf32>
    %37 = arith.mulf %36, %36 : vector<16x32xf32>
    %cst_26 = arith.constant dense<0.000000e+00> : vector<16xf32>
    %38 = vector.multi_reduction <add>, %37, %cst_26 [1] : vector<16x32xf32> to vector<16xf32>
    %39 = vector.shape_cast %38 : vector<16xf32> to vector<16x1xf32>
    %cst_27 = arith.constant 3.200000e+01 : f32
    %40 = vector.broadcast %cst_27 : f32 to vector<16x1xf32>
    %41 = arith.divf %39, %40 : vector<16x1xf32>
    %42 = vector.broadcast %34 : vector<16x1xf32> to vector<16x32xf32>
    %43 = arith.subf %0, %42 : vector<16x32xf32>
    %cst_28 = arith.constant 9.99999974E-6 : f32
    %44 = vector.broadcast %cst_28 : f32 to vector<16x1xf32>
    %45 = arith.addf %41, %44 : vector<16x1xf32>
    %46 = math.rsqrt %45 : vector<16x1xf32>
    %47 = vector.broadcast %46 : vector<16x1xf32> to vector<16x32xf32>
    %48 = arith.mulf %43, %47 : vector<16x32xf32>
    %49 = vector.broadcast %5 : vector<1x32xf32> to vector<16x32xf32>
    %50 = arith.mulf %48, %49 : vector<16x32xf32>
    %51 = vector.broadcast %7 : vector<1x32xf32> to vector<16x32xf32>
    %52 = arith.addf %50, %51 : vector<16x32xf32>
    %cst_29 = arith.constant 0.000000e+00 : f32
    %53 = vector.broadcast %cst_29 : f32 to vector<16x32xf32>
    %c0_30 = arith.constant 0 : index
    %c0_31 = arith.constant 0 : index
    %c0_32 = arith.constant 0 : index
    %54 = vector.load %arg5[%c0_30, %c0_31, %c0_32] : memref<12x32x8xf32, #tpu.memory_space<vmem>>, vector<1x32x8xf32>
    %55 = vector.shape_cast %54 : vector<1x32x8xf32> to vector<32x8xf32>
    %cst_33 = arith.constant dense<0.000000e+00> : vector<16x8xf32>
    %56 = tpu.matmul %52, %55, %cst_33 {dimension_numbers = #tpu.dot_dimension_numbers<[1], [0], [0], [1], [0, 0, 1, 1], [], []>} : vector<16x32xf32>, vector<32x8xf32>, vector<16x8xf32> -> vector<16x8xf32>
    %c0_34 = arith.constant 0 : index
    %c0_35 = arith.constant 0 : index
    %c0_36 = arith.constant 0 : index
    %57 = vector.load %arg6[%c0_34, %c0_35, %c0_36] : memref<12x1x8xf32, #tpu.memory_space<vmem>>, vector<1x1x8xf32>
    %58 = vector.shape_cast %57 : vector<1x1x8xf32> to vector<1x8xf32>
    %59 = vector.broadcast %58 : vector<1x8xf32> to vector<16x8xf32>
    %60 = arith.addf %56, %59 : vector<16x8xf32>
    %c4_37 = arith.constant 4 : index
    %c0_38 = arith.constant 0 : index
    %c0_39 = arith.constant 0 : index
    %61 = vector.load %arg5[%c4_37, %c0_38, %c0_39] : memref<12x32x8xf32, #tpu.memory_space<vmem>>, vector<1x32x8xf32>
    %62 = vector.shape_cast %61 : vector<1x32x8xf32> to vector<32x8xf32>
    %cst_40 = arith.constant dense<0.000000e+00> : vector<16x8xf32>
    %63 = tpu.matmul %52, %62, %cst_40 {dimension_numbers = #tpu.dot_dimension_numbers<[1], [0], [0], [1], [0, 0, 1, 1], [], []>} : vector<16x32xf32>, vector<32x8xf32>, vector<16x8xf32> -> vector<16x8xf32>
    %c4_41 = arith.constant 4 : index
    %c0_42 = arith.constant 0 : index
    %c0_43 = arith.constant 0 : index
    %64 = vector.load %arg6[%c4_41, %c0_42, %c0_43] : memref<12x1x8xf32, #tpu.memory_space<vmem>>, vector<1x1x8xf32>
    %65 = vector.shape_cast %64 : vector<1x1x8xf32> to vector<1x8xf32>
    %66 = vector.broadcast %65 : vector<1x8xf32> to vector<16x8xf32>
    %67 = arith.addf %63, %66 : vector<16x8xf32>
    %c8 = arith.constant 8 : index
    %c0_44 = arith.constant 0 : index
    %c0_45 = arith.constant 0 : index
    %68 = vector.load %arg5[%c8, %c0_44, %c0_45] : memref<12x32x8xf32, #tpu.memory_space<vmem>>, vector<1x32x8xf32>
    %69 = vector.shape_cast %68 : vector<1x32x8xf32> to vector<32x8xf32>
    %cst_46 = arith.constant dense<0.000000e+00> : vector<16x8xf32>
    %70 = tpu.matmul %52, %69, %cst_46 {dimension_numbers = #tpu.dot_dimension_numbers<[1], [0], [0], [1], [0, 0, 1, 1], [], []>} : vector<16x32xf32>, vector<32x8xf32>, vector<16x8xf32> -> vector<16x8xf32>
    %c8_47 = arith.constant 8 : index
    %c0_48 = arith.constant 0 : index
    %c0_49 = arith.constant 0 : index
    %71 = vector.load %arg6[%c8_47, %c0_48, %c0_49] : memref<12x1x8xf32, #tpu.memory_space<vmem>>, vector<1x1x8xf32>
    %72 = vector.shape_cast %71 : vector<1x1x8xf32> to vector<1x8xf32>
    %73 = vector.broadcast %72 : vector<1x8xf32> to vector<16x8xf32>
    %74 = arith.addf %70, %73 : vector<16x8xf32>
    %75 = arith.mulf %60, %1 : vector<16x8xf32>
    %cst_50 = arith.constant dense<0.000000e+00> : vector<16x8xf32>
    %76 = tpu.matmul %60, %30, %cst_50 {dimension_numbers = #tpu.dot_dimension_numbers<[1], [0], [0], [1], [0, 0, 1, 1], [], []>} : vector<16x8xf32>, vector<8x8xf32>, vector<16x8xf32> -> vector<16x8xf32>
    %77 = arith.mulf %76, %2 : vector<16x8xf32>
    %78 = arith.addf %75, %77 : vector<16x8xf32>
    %79 = arith.mulf %67, %1 : vector<16x8xf32>
    %cst_51 = arith.constant dense<0.000000e+00> : vector<16x8xf32>
    %80 = tpu.matmul %67, %30, %cst_51 {dimension_numbers = #tpu.dot_dimension_numbers<[1], [0], [0], [1], [0, 0, 1, 1], [], []>} : vector<16x8xf32>, vector<8x8xf32>, vector<16x8xf32> -> vector<16x8xf32>
    %81 = arith.mulf %80, %2 : vector<16x8xf32>
    %82 = arith.addf %79, %81 : vector<16x8xf32>
    %cst_52 = arith.constant dense<0.000000e+00> : vector<16x16xf32>
    %83 = tpu.matmul %78, %82, %cst_52 {dimension_numbers = #tpu.dot_dimension_numbers<[1], [1], [0], [0], [0, 0, 1, 0], [], []>} : vector<16x8xf32>, vector<16x8xf32>, vector<16x16xf32> -> vector<16x16xf32>
    %cst_53 = arith.constant 0.353553385 : f32
    %84 = vector.broadcast %cst_53 : f32 to vector<16x16xf32>
    %85 = arith.mulf %83, %84 : vector<16x16xf32>
    %86 = arith.addf %85, %3 : vector<16x16xf32>
    %cst_54 = arith.constant dense<0xFF800000> : vector<16xf32>
    %87 = vector.multi_reduction <maximumf>, %86, %cst_54 [1] : vector<16x16xf32> to vector<16xf32>
    %88 = vector.shape_cast %87 : vector<16xf32> to vector<16x1xf32>
    %89 = vector.broadcast %88 : vector<16x1xf32> to vector<16x16xf32>
    %90 = arith.subf %86, %89 : vector<16x16xf32>
    %91 = math.exp %90 : vector<16x16xf32>
    %cst_55 = arith.constant dense<0.000000e+00> : vector<16xf32>
    %92 = vector.multi_reduction <add>, %91, %cst_55 [1] : vector<16x16xf32> to vector<16xf32>
    %93 = vector.shape_cast %92 : vector<16xf32> to vector<16x1xf32>
    %94 = tpu.reciprocal %93 {approx = true} : vector<16x1xf32> -> vector<16x1xf32>
    %95 = arith.mulf %93, %94 : vector<16x1xf32>
    %cst_56 = arith.constant 2.000000e+00 : f32
    %96 = vector.broadcast %cst_56 : f32 to vector<16x1xf32>
    %97 = arith.subf %96, %95 : vector<16x1xf32>
    %98 = arith.mulf %94, %97 : vector<16x1xf32>
    %99 = vector.broadcast %98 : vector<16x1xf32> to vector<16x16xf32>
    %100 = arith.mulf %91, %99 : vector<16x16xf32>
    %cst_57 = arith.constant dense<0.000000e+00> : vector<16x8xf32>
    %101 = tpu.matmul %100, %74, %cst_57 {dimension_numbers = #tpu.dot_dimension_numbers<[1], [0], [0], [1], [0, 0, 1, 1], [], []>} : vector<16x16xf32>, vector<16x8xf32>, vector<16x8xf32> -> vector<16x8xf32>
    %c0_58 = arith.constant 0 : index
    %c0_59 = arith.constant 0 : index
    %c0_60 = arith.constant 0 : index
    %102 = vector.load %arg7[%c0_58, %c0_59, %c0_60] : memref<4x8x32xf32, #tpu.memory_space<vmem>>, vector<1x8x32xf32>
    %103 = vector.shape_cast %102 : vector<1x8x32xf32> to vector<8x32xf32>
    %cst_61 = arith.constant dense<0.000000e+00> : vector<16x32xf32>
    %104 = tpu.matmul %101, %103, %cst_61 {dimension_numbers = #tpu.dot_dimension_numbers<[1], [0], [0], [1], [0, 0, 1, 1], [], []>} : vector<16x8xf32>, vector<8x32xf32>, vector<16x32xf32> -> vector<16x32xf32>
    %105 = arith.addf %53, %104 : vector<16x32xf32>
    %c1_62 = arith.constant 1 : index
    %c0_63 = arith.constant 0 : index
    %c0_64 = arith.constant 0 : index
    %106 = vector.load %arg5[%c1_62, %c0_63, %c0_64] : memref<12x32x8xf32, #tpu.memory_space<vmem>>, vector<1x32x8xf32>
    %107 = vector.shape_cast %106 : vector<1x32x8xf32> to vector<32x8xf32>
    %cst_65 = arith.constant dense<0.000000e+00> : vector<16x8xf32>
    %108 = tpu.matmul %52, %107, %cst_65 {dimension_numbers = #tpu.dot_dimension_numbers<[1], [0], [0], [1], [0, 0, 1, 1], [], []>} : vector<16x32xf32>, vector<32x8xf32>, vector<16x8xf32> -> vector<16x8xf32>
    %c1_66 = arith.constant 1 : index
    %c0_67 = arith.constant 0 : index
    %c0_68 = arith.constant 0 : index
    %109 = vector.load %arg6[%c1_66, %c0_67, %c0_68] : memref<12x1x8xf32, #tpu.memory_space<vmem>>, vector<1x1x8xf32>
    %110 = vector.shape_cast %109 : vector<1x1x8xf32> to vector<1x8xf32>
    %111 = vector.broadcast %110 : vector<1x8xf32> to vector<16x8xf32>
    %112 = arith.addf %108, %111 : vector<16x8xf32>
    %c5_69 = arith.constant 5 : index
    %c0_70 = arith.constant 0 : index
    %c0_71 = arith.constant 0 : index
    %113 = vector.load %arg5[%c5_69, %c0_70, %c0_71] : memref<12x32x8xf32, #tpu.memory_space<vmem>>, vector<1x32x8xf32>
    %114 = vector.shape_cast %113 : vector<1x32x8xf32> to vector<32x8xf32>
    %cst_72 = arith.constant dense<0.000000e+00> : vector<16x8xf32>
    %115 = tpu.matmul %52, %114, %cst_72 {dimension_numbers = #tpu.dot_dimension_numbers<[1], [0], [0], [1], [0, 0, 1, 1], [], []>} : vector<16x32xf32>, vector<32x8xf32>, vector<16x8xf32> -> vector<16x8xf32>
    %c5_73 = arith.constant 5 : index
    %c0_74 = arith.constant 0 : index
    %c0_75 = arith.constant 0 : index
    %116 = vector.load %arg6[%c5_73, %c0_74, %c0_75] : memref<12x1x8xf32, #tpu.memory_space<vmem>>, vector<1x1x8xf32>
    %117 = vector.shape_cast %116 : vector<1x1x8xf32> to vector<1x8xf32>
    %118 = vector.broadcast %117 : vector<1x8xf32> to vector<16x8xf32>
    %119 = arith.addf %115, %118 : vector<16x8xf32>
    %c9 = arith.constant 9 : index
    %c0_76 = arith.constant 0 : index
    %c0_77 = arith.constant 0 : index
    %120 = vector.load %arg5[%c9, %c0_76, %c0_77] : memref<12x32x8xf32, #tpu.memory_space<vmem>>, vector<1x32x8xf32>
    %121 = vector.shape_cast %120 : vector<1x32x8xf32> to vector<32x8xf32>
    %cst_78 = arith.constant dense<0.000000e+00> : vector<16x8xf32>
    %122 = tpu.matmul %52, %121, %cst_78 {dimension_numbers = #tpu.dot_dimension_numbers<[1], [0], [0], [1], [0, 0, 1, 1], [], []>} : vector<16x32xf32>, vector<32x8xf32>, vector<16x8xf32> -> vector<16x8xf32>
    %c9_79 = arith.constant 9 : index
    %c0_80 = arith.constant 0 : index
    %c0_81 = arith.constant 0 : index
    %123 = vector.load %arg6[%c9_79, %c0_80, %c0_81] : memref<12x1x8xf32, #tpu.memory_space<vmem>>, vector<1x1x8xf32>
    %124 = vector.shape_cast %123 : vector<1x1x8xf32> to vector<1x8xf32>
    %125 = vector.broadcast %124 : vector<1x8xf32> to vector<16x8xf32>
    %126 = arith.addf %122, %125 : vector<16x8xf32>
    %127 = arith.mulf %112, %1 : vector<16x8xf32>
    %cst_82 = arith.constant dense<0.000000e+00> : vector<16x8xf32>
    %128 = tpu.matmul %112, %30, %cst_82 {dimension_numbers = #tpu.dot_dimension_numbers<[1], [0], [0], [1], [0, 0, 1, 1], [], []>} : vector<16x8xf32>, vector<8x8xf32>, vector<16x8xf32> -> vector<16x8xf32>
    %129 = arith.mulf %128, %2 : vector<16x8xf32>
    %130 = arith.addf %127, %129 : vector<16x8xf32>
    %131 = arith.mulf %119, %1 : vector<16x8xf32>
    %cst_83 = arith.constant dense<0.000000e+00> : vector<16x8xf32>
    %132 = tpu.matmul %119, %30, %cst_83 {dimension_numbers = #tpu.dot_dimension_numbers<[1], [0], [0], [1], [0, 0, 1, 1], [], []>} : vector<16x8xf32>, vector<8x8xf32>, vector<16x8xf32> -> vector<16x8xf32>
    %133 = arith.mulf %132, %2 : vector<16x8xf32>
    %134 = arith.addf %131, %133 : vector<16x8xf32>
    %cst_84 = arith.constant dense<0.000000e+00> : vector<16x16xf32>
    %135 = tpu.matmul %130, %134, %cst_84 {dimension_numbers = #tpu.dot_dimension_numbers<[1], [1], [0], [0], [0, 0, 1, 0], [], []>} : vector<16x8xf32>, vector<16x8xf32>, vector<16x16xf32> -> vector<16x16xf32>
    %cst_85 = arith.constant 0.353553385 : f32
    %136 = vector.broadcast %cst_85 : f32 to vector<16x16xf32>
    %137 = arith.mulf %135, %136 : vector<16x16xf32>
    %138 = arith.addf %137, %3 : vector<16x16xf32>
    %cst_86 = arith.constant dense<0xFF800000> : vector<16xf32>
    %139 = vector.multi_reduction <maximumf>, %138, %cst_86 [1] : vector<16x16xf32> to vector<16xf32>
    %140 = vector.shape_cast %139 : vector<16xf32> to vector<16x1xf32>
    %141 = vector.broadcast %140 : vector<16x1xf32> to vector<16x16xf32>
    %142 = arith.subf %138, %141 : vector<16x16xf32>
    %143 = math.exp %142 : vector<16x16xf32>
    %cst_87 = arith.constant dense<0.000000e+00> : vector<16xf32>
    %144 = vector.multi_reduction <add>, %143, %cst_87 [1] : vector<16x16xf32> to vector<16xf32>
    %145 = vector.shape_cast %144 : vector<16xf32> to vector<16x1xf32>
    %146 = tpu.reciprocal %145 {approx = true} : vector<16x1xf32> -> vector<16x1xf32>
    %147 = arith.mulf %145, %146 : vector<16x1xf32>
    %cst_88 = arith.constant 2.000000e+00 : f32
    %148 = vector.broadcast %cst_88 : f32 to vector<16x1xf32>
    %149 = arith.subf %148, %147 : vector<16x1xf32>
    %150 = arith.mulf %146, %149 : vector<16x1xf32>
    %151 = vector.broadcast %150 : vector<16x1xf32> to vector<16x16xf32>
    %152 = arith.mulf %143, %151 : vector<16x16xf32>
    %cst_89 = arith.constant dense<0.000000e+00> : vector<16x8xf32>
    %153 = tpu.matmul %152, %126, %cst_89 {dimension_numbers = #tpu.dot_dimension_numbers<[1], [0], [0], [1], [0, 0, 1, 1], [], []>} : vector<16x16xf32>, vector<16x8xf32>, vector<16x8xf32> -> vector<16x8xf32>
    %c1_90 = arith.constant 1 : index
    %c0_91 = arith.constant 0 : index
    %c0_92 = arith.constant 0 : index
    %154 = vector.load %arg7[%c1_90, %c0_91, %c0_92] : memref<4x8x32xf32, #tpu.memory_space<vmem>>, vector<1x8x32xf32>
    %155 = vector.shape_cast %154 : vector<1x8x32xf32> to vector<8x32xf32>
    %cst_93 = arith.constant dense<0.000000e+00> : vector<16x32xf32>
    %156 = tpu.matmul %153, %155, %cst_93 {dimension_numbers = #tpu.dot_dimension_numbers<[1], [0], [0], [1], [0, 0, 1, 1], [], []>} : vector<16x8xf32>, vector<8x32xf32>, vector<16x32xf32> -> vector<16x32xf32>
    %157 = arith.addf %105, %156 : vector<16x32xf32>
    %c2_94 = arith.constant 2 : index
    %c0_95 = arith.constant 0 : index
    %c0_96 = arith.constant 0 : index
    %158 = vector.load %arg5[%c2_94, %c0_95, %c0_96] : memref<12x32x8xf32, #tpu.memory_space<vmem>>, vector<1x32x8xf32>
    %159 = vector.shape_cast %158 : vector<1x32x8xf32> to vector<32x8xf32>
    %cst_97 = arith.constant dense<0.000000e+00> : vector<16x8xf32>
    %160 = tpu.matmul %52, %159, %cst_97 {dimension_numbers = #tpu.dot_dimension_numbers<[1], [0], [0], [1], [0, 0, 1, 1], [], []>} : vector<16x32xf32>, vector<32x8xf32>, vector<16x8xf32> -> vector<16x8xf32>
    %c2_98 = arith.constant 2 : index
    %c0_99 = arith.constant 0 : index
    %c0_100 = arith.constant 0 : index
    %161 = vector.load %arg6[%c2_98, %c0_99, %c0_100] : memref<12x1x8xf32, #tpu.memory_space<vmem>>, vector<1x1x8xf32>
    %162 = vector.shape_cast %161 : vector<1x1x8xf32> to vector<1x8xf32>
    %163 = vector.broadcast %162 : vector<1x8xf32> to vector<16x8xf32>
    %164 = arith.addf %160, %163 : vector<16x8xf32>
    %c6 = arith.constant 6 : index
    %c0_101 = arith.constant 0 : index
    %c0_102 = arith.constant 0 : index
    %165 = vector.load %arg5[%c6, %c0_101, %c0_102] : memref<12x32x8xf32, #tpu.memory_space<vmem>>, vector<1x32x8xf32>
    %166 = vector.shape_cast %165 : vector<1x32x8xf32> to vector<32x8xf32>
    %cst_103 = arith.constant dense<0.000000e+00> : vector<16x8xf32>
    %167 = tpu.matmul %52, %166, %cst_103 {dimension_numbers = #tpu.dot_dimension_numbers<[1], [0], [0], [1], [0, 0, 1, 1], [], []>} : vector<16x32xf32>, vector<32x8xf32>, vector<16x8xf32> -> vector<16x8xf32>
    %c6_104 = arith.constant 6 : index
    %c0_105 = arith.constant 0 : index
    %c0_106 = arith.constant 0 : index
    %168 = vector.load %arg6[%c6_104, %c0_105, %c0_106] : memref<12x1x8xf32, #tpu.memory_space<vmem>>, vector<1x1x8xf32>
    %169 = vector.shape_cast %168 : vector<1x1x8xf32> to vector<1x8xf32>
    %170 = vector.broadcast %169 : vector<1x8xf32> to vector<16x8xf32>
    %171 = arith.addf %167, %170 : vector<16x8xf32>
    %c10 = arith.constant 10 : index
    %c0_107 = arith.constant 0 : index
    %c0_108 = arith.constant 0 : index
    %172 = vector.load %arg5[%c10, %c0_107, %c0_108] : memref<12x32x8xf32, #tpu.memory_space<vmem>>, vector<1x32x8xf32>
    %173 = vector.shape_cast %172 : vector<1x32x8xf32> to vector<32x8xf32>
    %cst_109 = arith.constant dense<0.000000e+00> : vector<16x8xf32>
    %174 = tpu.matmul %52, %173, %cst_109 {dimension_numbers = #tpu.dot_dimension_numbers<[1], [0], [0], [1], [0, 0, 1, 1], [], []>} : vector<16x32xf32>, vector<32x8xf32>, vector<16x8xf32> -> vector<16x8xf32>
    %c10_110 = arith.constant 10 : index
    %c0_111 = arith.constant 0 : index
    %c0_112 = arith.constant 0 : index
    %175 = vector.load %arg6[%c10_110, %c0_111, %c0_112] : memref<12x1x8xf32, #tpu.memory_space<vmem>>, vector<1x1x8xf32>
    %176 = vector.shape_cast %175 : vector<1x1x8xf32> to vector<1x8xf32>
    %177 = vector.broadcast %176 : vector<1x8xf32> to vector<16x8xf32>
    %178 = arith.addf %174, %177 : vector<16x8xf32>
    %179 = arith.mulf %164, %1 : vector<16x8xf32>
    %cst_113 = arith.constant dense<0.000000e+00> : vector<16x8xf32>
    %180 = tpu.matmul %164, %30, %cst_113 {dimension_numbers = #tpu.dot_dimension_numbers<[1], [0], [0], [1], [0, 0, 1, 1], [], []>} : vector<16x8xf32>, vector<8x8xf32>, vector<16x8xf32> -> vector<16x8xf32>
    %181 = arith.mulf %180, %2 : vector<16x8xf32>
    %182 = arith.addf %179, %181 : vector<16x8xf32>
    %183 = arith.mulf %171, %1 : vector<16x8xf32>
    %cst_114 = arith.constant dense<0.000000e+00> : vector<16x8xf32>
    %184 = tpu.matmul %171, %30, %cst_114 {dimension_numbers = #tpu.dot_dimension_numbers<[1], [0], [0], [1], [0, 0, 1, 1], [], []>} : vector<16x8xf32>, vector<8x8xf32>, vector<16x8xf32> -> vector<16x8xf32>
    %185 = arith.mulf %184, %2 : vector<16x8xf32>
    %186 = arith.addf %183, %185 : vector<16x8xf32>
    %cst_115 = arith.constant dense<0.000000e+00> : vector<16x16xf32>
    %187 = tpu.matmul %182, %186, %cst_115 {dimension_numbers = #tpu.dot_dimension_numbers<[1], [1], [0], [0], [0, 0, 1, 0], [], []>} : vector<16x8xf32>, vector<16x8xf32>, vector<16x16xf32> -> vector<16x16xf32>
    %cst_116 = arith.constant 0.353553385 : f32
    %188 = vector.broadcast %cst_116 : f32 to vector<16x16xf32>
    %189 = arith.mulf %187, %188 : vector<16x16xf32>
    %190 = arith.addf %189, %3 : vector<16x16xf32>
    %cst_117 = arith.constant dense<0xFF800000> : vector<16xf32>
    %191 = vector.multi_reduction <maximumf>, %190, %cst_117 [1] : vector<16x16xf32> to vector<16xf32>
    %192 = vector.shape_cast %191 : vector<16xf32> to vector<16x1xf32>
    %193 = vector.broadcast %192 : vector<16x1xf32> to vector<16x16xf32>
    %194 = arith.subf %190, %193 : vector<16x16xf32>
    %195 = math.exp %194 : vector<16x16xf32>
    %cst_118 = arith.constant dense<0.000000e+00> : vector<16xf32>
    %196 = vector.multi_reduction <add>, %195, %cst_118 [1] : vector<16x16xf32> to vector<16xf32>
    %197 = vector.shape_cast %196 : vector<16xf32> to vector<16x1xf32>
    %198 = tpu.reciprocal %197 {approx = true} : vector<16x1xf32> -> vector<16x1xf32>
    %199 = arith.mulf %197, %198 : vector<16x1xf32>
    %cst_119 = arith.constant 2.000000e+00 : f32
    %200 = vector.broadcast %cst_119 : f32 to vector<16x1xf32>
    %201 = arith.subf %200, %199 : vector<16x1xf32>
    %202 = arith.mulf %198, %201 : vector<16x1xf32>
    %203 = vector.broadcast %202 : vector<16x1xf32> to vector<16x16xf32>
    %204 = arith.mulf %195, %203 : vector<16x16xf32>
    %cst_120 = arith.constant dense<0.000000e+00> : vector<16x8xf32>
    %205 = tpu.matmul %204, %178, %cst_120 {dimension_numbers = #tpu.dot_dimension_numbers<[1], [0], [0], [1], [0, 0, 1, 1], [], []>} : vector<16x16xf32>, vector<16x8xf32>, vector<16x8xf32> -> vector<16x8xf32>
    %c2_121 = arith.constant 2 : index
    %c0_122 = arith.constant 0 : index
    %c0_123 = arith.constant 0 : index
    %206 = vector.load %arg7[%c2_121, %c0_122, %c0_123] : memref<4x8x32xf32, #tpu.memory_space<vmem>>, vector<1x8x32xf32>
    %207 = vector.shape_cast %206 : vector<1x8x32xf32> to vector<8x32xf32>
    %cst_124 = arith.constant dense<0.000000e+00> : vector<16x32xf32>
    %208 = tpu.matmul %205, %207, %cst_124 {dimension_numbers = #tpu.dot_dimension_numbers<[1], [0], [0], [1], [0, 0, 1, 1], [], []>} : vector<16x8xf32>, vector<8x32xf32>, vector<16x32xf32> -> vector<16x32xf32>
    %209 = arith.addf %157, %208 : vector<16x32xf32>
    %c3_125 = arith.constant 3 : index
    %c0_126 = arith.constant 0 : index
    %c0_127 = arith.constant 0 : index
    %210 = vector.load %arg5[%c3_125, %c0_126, %c0_127] : memref<12x32x8xf32, #tpu.memory_space<vmem>>, vector<1x32x8xf32>
    %211 = vector.shape_cast %210 : vector<1x32x8xf32> to vector<32x8xf32>
    %cst_128 = arith.constant dense<0.000000e+00> : vector<16x8xf32>
    %212 = tpu.matmul %52, %211, %cst_128 {dimension_numbers = #tpu.dot_dimension_numbers<[1], [0], [0], [1], [0, 0, 1, 1], [], []>} : vector<16x32xf32>, vector<32x8xf32>, vector<16x8xf32> -> vector<16x8xf32>
    %c3_129 = arith.constant 3 : index
    %c0_130 = arith.constant 0 : index
    %c0_131 = arith.constant 0 : index
    %213 = vector.load %arg6[%c3_129, %c0_130, %c0_131] : memref<12x1x8xf32, #tpu.memory_space<vmem>>, vector<1x1x8xf32>
    %214 = vector.shape_cast %213 : vector<1x1x8xf32> to vector<1x8xf32>
    %215 = vector.broadcast %214 : vector<1x8xf32> to vector<16x8xf32>
    %216 = arith.addf %212, %215 : vector<16x8xf32>
    %c7 = arith.constant 7 : index
    %c0_132 = arith.constant 0 : index
    %c0_133 = arith.constant 0 : index
    %217 = vector.load %arg5[%c7, %c0_132, %c0_133] : memref<12x32x8xf32, #tpu.memory_space<vmem>>, vector<1x32x8xf32>
    %218 = vector.shape_cast %217 : vector<1x32x8xf32> to vector<32x8xf32>
    %cst_134 = arith.constant dense<0.000000e+00> : vector<16x8xf32>
    %219 = tpu.matmul %52, %218, %cst_134 {dimension_numbers = #tpu.dot_dimension_numbers<[1], [0], [0], [1], [0, 0, 1, 1], [], []>} : vector<16x32xf32>, vector<32x8xf32>, vector<16x8xf32> -> vector<16x8xf32>
    %c7_135 = arith.constant 7 : index
    %c0_136 = arith.constant 0 : index
    %c0_137 = arith.constant 0 : index
    %220 = vector.load %arg6[%c7_135, %c0_136, %c0_137] : memref<12x1x8xf32, #tpu.memory_space<vmem>>, vector<1x1x8xf32>
    %221 = vector.shape_cast %220 : vector<1x1x8xf32> to vector<1x8xf32>
    %222 = vector.broadcast %221 : vector<1x8xf32> to vector<16x8xf32>
    %223 = arith.addf %219, %222 : vector<16x8xf32>
    %c11 = arith.constant 11 : index
    %c0_138 = arith.constant 0 : index
    %c0_139 = arith.constant 0 : index
    %224 = vector.load %arg5[%c11, %c0_138, %c0_139] : memref<12x32x8xf32, #tpu.memory_space<vmem>>, vector<1x32x8xf32>
    %225 = vector.shape_cast %224 : vector<1x32x8xf32> to vector<32x8xf32>
    %cst_140 = arith.constant dense<0.000000e+00> : vector<16x8xf32>
    %226 = tpu.matmul %52, %225, %cst_140 {dimension_numbers = #tpu.dot_dimension_numbers<[1], [0], [0], [1], [0, 0, 1, 1], [], []>} : vector<16x32xf32>, vector<32x8xf32>, vector<16x8xf32> -> vector<16x8xf32>
    %c11_141 = arith.constant 11 : index
    %c0_142 = arith.constant 0 : index
    %c0_143 = arith.constant 0 : index
    %227 = vector.load %arg6[%c11_141, %c0_142, %c0_143] : memref<12x1x8xf32, #tpu.memory_space<vmem>>, vector<1x1x8xf32>
    %228 = vector.shape_cast %227 : vector<1x1x8xf32> to vector<1x8xf32>
    %229 = vector.broadcast %228 : vector<1x8xf32> to vector<16x8xf32>
    %230 = arith.addf %226, %229 : vector<16x8xf32>
    %231 = arith.mulf %216, %1 : vector<16x8xf32>
    %cst_144 = arith.constant dense<0.000000e+00> : vector<16x8xf32>
    %232 = tpu.matmul %216, %30, %cst_144 {dimension_numbers = #tpu.dot_dimension_numbers<[1], [0], [0], [1], [0, 0, 1, 1], [], []>} : vector<16x8xf32>, vector<8x8xf32>, vector<16x8xf32> -> vector<16x8xf32>
    %233 = arith.mulf %232, %2 : vector<16x8xf32>
    %234 = arith.addf %231, %233 : vector<16x8xf32>
    %235 = arith.mulf %223, %1 : vector<16x8xf32>
    %cst_145 = arith.constant dense<0.000000e+00> : vector<16x8xf32>
    %236 = tpu.matmul %223, %30, %cst_145 {dimension_numbers = #tpu.dot_dimension_numbers<[1], [0], [0], [1], [0, 0, 1, 1], [], []>} : vector<16x8xf32>, vector<8x8xf32>, vector<16x8xf32> -> vector<16x8xf32>
    %237 = arith.mulf %236, %2 : vector<16x8xf32>
    %238 = arith.addf %235, %237 : vector<16x8xf32>
    %cst_146 = arith.constant dense<0.000000e+00> : vector<16x16xf32>
    %239 = tpu.matmul %234, %238, %cst_146 {dimension_numbers = #tpu.dot_dimension_numbers<[1], [1], [0], [0], [0, 0, 1, 0], [], []>} : vector<16x8xf32>, vector<16x8xf32>, vector<16x16xf32> -> vector<16x16xf32>
    %cst_147 = arith.constant 0.353553385 : f32
    %240 = vector.broadcast %cst_147 : f32 to vector<16x16xf32>
    %241 = arith.mulf %239, %240 : vector<16x16xf32>
    %242 = arith.addf %241, %3 : vector<16x16xf32>
    %cst_148 = arith.constant dense<0xFF800000> : vector<16xf32>
    %243 = vector.multi_reduction <maximumf>, %242, %cst_148 [1] : vector<16x16xf32> to vector<16xf32>
    %244 = vector.shape_cast %243 : vector<16xf32> to vector<16x1xf32>
    %245 = vector.broadcast %244 : vector<16x1xf32> to vector<16x16xf32>
    %246 = arith.subf %242, %245 : vector<16x16xf32>
    %247 = math.exp %246 : vector<16x16xf32>
    %cst_149 = arith.constant dense<0.000000e+00> : vector<16xf32>
    %248 = vector.multi_reduction <add>, %247, %cst_149 [1] : vector<16x16xf32> to vector<16xf32>
    %249 = vector.shape_cast %248 : vector<16xf32> to vector<16x1xf32>
    %250 = tpu.reciprocal %249 {approx = true} : vector<16x1xf32> -> vector<16x1xf32>
    %251 = arith.mulf %249, %250 : vector<16x1xf32>
    %cst_150 = arith.constant 2.000000e+00 : f32
    %252 = vector.broadcast %cst_150 : f32 to vector<16x1xf32>
    %253 = arith.subf %252, %251 : vector<16x1xf32>
    %254 = arith.mulf %250, %253 : vector<16x1xf32>
    %255 = vector.broadcast %254 : vector<16x1xf32> to vector<16x16xf32>
    %256 = arith.mulf %247, %255 : vector<16x16xf32>
    %cst_151 = arith.constant dense<0.000000e+00> : vector<16x8xf32>
    %257 = tpu.matmul %256, %230, %cst_151 {dimension_numbers = #tpu.dot_dimension_numbers<[1], [0], [0], [1], [0, 0, 1, 1], [], []>} : vector<16x16xf32>, vector<16x8xf32>, vector<16x8xf32> -> vector<16x8xf32>
    %c3_152 = arith.constant 3 : index
    %c0_153 = arith.constant 0 : index
    %c0_154 = arith.constant 0 : index
    %258 = vector.load %arg7[%c3_152, %c0_153, %c0_154] : memref<4x8x32xf32, #tpu.memory_space<vmem>>, vector<1x8x32xf32>
    %259 = vector.shape_cast %258 : vector<1x8x32xf32> to vector<8x32xf32>
    %cst_155 = arith.constant dense<0.000000e+00> : vector<16x32xf32>
    %260 = tpu.matmul %257, %259, %cst_155 {dimension_numbers = #tpu.dot_dimension_numbers<[1], [0], [0], [1], [0, 0, 1, 1], [], []>} : vector<16x8xf32>, vector<8x32xf32>, vector<16x32xf32> -> vector<16x32xf32>
    %261 = arith.addf %209, %260 : vector<16x32xf32>
    %262 = arith.addf %0, %261 : vector<16x32xf32>
    %263 = vector.broadcast %9 : vector<1x32xf32> to vector<16x32xf32>
    %264 = arith.addf %262, %263 : vector<16x32xf32>
    %cst_156 = arith.constant dense<0.000000e+00> : vector<16xf32>
    %265 = vector.multi_reduction <add>, %264, %cst_156 [1] : vector<16x32xf32> to vector<16xf32>
    %266 = vector.shape_cast %265 : vector<16xf32> to vector<16x1xf32>
    %cst_157 = arith.constant 3.200000e+01 : f32
    %267 = vector.broadcast %cst_157 : f32 to vector<16x1xf32>
    %268 = arith.divf %266, %267 : vector<16x1xf32>
    %269 = vector.broadcast %268 : vector<16x1xf32> to vector<16x32xf32>
    %270 = arith.subf %264, %269 : vector<16x32xf32>
    %271 = arith.mulf %270, %270 : vector<16x32xf32>
    %cst_158 = arith.constant dense<0.000000e+00> : vector<16xf32>
    %272 = vector.multi_reduction <add>, %271, %cst_158 [1] : vector<16x32xf32> to vector<16xf32>
    %273 = vector.shape_cast %272 : vector<16xf32> to vector<16x1xf32>
    %cst_159 = arith.constant 3.200000e+01 : f32
    %274 = vector.broadcast %cst_159 : f32 to vector<16x1xf32>
    %275 = arith.divf %273, %274 : vector<16x1xf32>
    %276 = vector.broadcast %268 : vector<16x1xf32> to vector<16x32xf32>
    %277 = arith.subf %264, %276 : vector<16x32xf32>
    %cst_160 = arith.constant 9.99999974E-6 : f32
    %278 = vector.broadcast %cst_160 : f32 to vector<16x1xf32>
    %279 = arith.addf %275, %278 : vector<16x1xf32>
    %280 = math.rsqrt %279 : vector<16x1xf32>
    %281 = vector.broadcast %280 : vector<16x1xf32> to vector<16x32xf32>
    %282 = arith.mulf %277, %281 : vector<16x32xf32>
    %283 = vector.broadcast %11 : vector<1x32xf32> to vector<16x32xf32>
    %284 = arith.mulf %282, %283 : vector<16x32xf32>
    %285 = vector.broadcast %13 : vector<1x32xf32> to vector<16x32xf32>
    %286 = arith.addf %284, %285 : vector<16x32xf32>
    %c0_161 = arith.constant 0 : index
    %c0_162 = arith.constant 0 : index
    %c0_163 = arith.constant 0 : index
    %287 = vector.load %arg8[%c0_161, %c0_162, %c0_163] : memref<2x32x64xf32, #tpu.memory_space<vmem>>, vector<1x32x64xf32>
    %288 = vector.shape_cast %287 : vector<1x32x64xf32> to vector<32x64xf32>
    %cst_164 = arith.constant dense<0.000000e+00> : vector<16x64xf32>
    %289 = tpu.matmul %286, %288, %cst_164 {dimension_numbers = #tpu.dot_dimension_numbers<[1], [0], [0], [1], [0, 0, 1, 1], [], []>} : vector<16x32xf32>, vector<32x64xf32>, vector<16x64xf32> -> vector<16x64xf32>
    %c0_165 = arith.constant 0 : index
    %c0_166 = arith.constant 0 : index
    %c0_167 = arith.constant 0 : index
    %290 = vector.load %arg9[%c0_165, %c0_166, %c0_167] : memref<2x1x64xf32, #tpu.memory_space<vmem>>, vector<1x1x64xf32>
    %291 = vector.shape_cast %290 : vector<1x1x64xf32> to vector<1x64xf32>
    %292 = vector.broadcast %291 : vector<1x64xf32> to vector<16x64xf32>
    %293 = arith.addf %289, %292 : vector<16x64xf32>
    %c1_168 = arith.constant 1 : index
    %c0_169 = arith.constant 0 : index
    %c0_170 = arith.constant 0 : index
    %294 = vector.load %arg8[%c1_168, %c0_169, %c0_170] : memref<2x32x64xf32, #tpu.memory_space<vmem>>, vector<1x32x64xf32>
    %295 = vector.shape_cast %294 : vector<1x32x64xf32> to vector<32x64xf32>
    %cst_171 = arith.constant dense<0.000000e+00> : vector<16x64xf32>
    %296 = tpu.matmul %286, %295, %cst_171 {dimension_numbers = #tpu.dot_dimension_numbers<[1], [0], [0], [1], [0, 0, 1, 1], [], []>} : vector<16x32xf32>, vector<32x64xf32>, vector<16x64xf32> -> vector<16x64xf32>
    %c1_172 = arith.constant 1 : index
    %c0_173 = arith.constant 0 : index
    %c0_174 = arith.constant 0 : index
    %297 = vector.load %arg9[%c1_172, %c0_173, %c0_174] : memref<2x1x64xf32, #tpu.memory_space<vmem>>, vector<1x1x64xf32>
    %298 = vector.shape_cast %297 : vector<1x1x64xf32> to vector<1x64xf32>
    %299 = vector.broadcast %298 : vector<1x64xf32> to vector<16x64xf32>
    %300 = arith.addf %296, %299 : vector<16x64xf32>
    %cst_175 = arith.constant 5.000000e-01 : f32
    %301 = vector.broadcast %cst_175 : f32 to vector<16x64xf32>
    %302 = arith.mulf %301, %300 : vector<16x64xf32>
    %cst_176 = arith.constant 4.471500e-02 : f32
    %303 = vector.broadcast %cst_176 : f32 to vector<16x64xf32>
    %304 = arith.mulf %303, %300 : vector<16x64xf32>
    %305 = arith.mulf %304, %300 : vector<16x64xf32>
    %306 = arith.mulf %305, %300 : vector<16x64xf32>
    %307 = arith.addf %300, %306 : vector<16x64xf32>
    %cst_177 = arith.constant 0.797884583 : f32
    %308 = vector.broadcast %cst_177 : f32 to vector<16x64xf32>
    %309 = arith.mulf %308, %307 : vector<16x64xf32>
    %310 = math.tanh %309 : vector<16x64xf32>
    %cst_178 = arith.constant 1.000000e+00 : f32
    %311 = vector.broadcast %cst_178 : f32 to vector<16x64xf32>
    %312 = arith.addf %311, %310 : vector<16x64xf32>
    %313 = arith.mulf %302, %312 : vector<16x64xf32>
    %314 = arith.mulf %293, %313 : vector<16x64xf32>
    %c0_179 = arith.constant 0 : index
    %c0_180 = arith.constant 0 : index
    %315 = vector.load %arg10[%c0_179, %c0_180] : memref<64x32xf32, #tpu.memory_space<vmem>>, vector<64x32xf32>
    %cst_181 = arith.constant dense<0.000000e+00> : vector<16x32xf32>
    %316 = tpu.matmul %314, %315, %cst_181 {dimension_numbers = #tpu.dot_dimension_numbers<[1], [0], [0], [1], [0, 0, 1, 1], [], []>} : vector<16x64xf32>, vector<64x32xf32>, vector<16x32xf32> -> vector<16x32xf32>
    %317 = vector.broadcast %15 : vector<1x32xf32> to vector<16x32xf32>
    %318 = arith.addf %316, %317 : vector<16x32xf32>
    %319 = arith.addf %264, %318 : vector<16x32xf32>
    %c0_182 = arith.constant 0 : index
    %c0_183 = arith.constant 0 : index
    %320 = vector.load %arg12[%c0_182, %c0_183] : memref<16x32xf32, #tpu.memory_space<vmem>>, vector<16x32xf32>
    tpu.vector_store %arg12[%c0_182, %c0_183], %319 {strides = array<i32>} : memref<16x32xf32, #tpu.memory_space<vmem>>, vector<16x32xf32>,
    return
  }
  func.func @transform_0(%arg0: i32) -> (i32, i32) {
    %c0_i32 = arith.constant 0 : i32
    %c0_i32_0 = arith.constant 0 : i32
    return %arg0, %c0_i32 : i32, i32
  }
  func.func @transform_1(%arg0: i32) -> (i32, i32) {
    %c0_i32 = arith.constant 0 : i32
    %c0_i32_0 = arith.constant 0 : i32
    %c0_i32_1 = arith.constant 0 : i32
    return %c0_i32, %c0_i32_0 : i32, i32
  }
  func.func @transform_2(%arg0: i32) -> (i32, i32) {
    %c0_i32 = arith.constant 0 : i32
    %c0_i32_0 = arith.constant 0 : i32
    %c0_i32_1 = arith.constant 0 : i32
    return %c0_i32, %c0_i32_0 : i32, i32
  }
  func.func @transform_3(%arg0: i32) -> (i32, i32) {
    %c0_i32 = arith.constant 0 : i32
    %c0_i32_0 = arith.constant 0 : i32
    %c0_i32_1 = arith.constant 0 : i32
    return %c0_i32, %c0_i32_0 : i32, i32
  }
  func.func @transform_4(%arg0: i32) -> (i32, i32, i32) {
    %c0_i32 = arith.constant 0 : i32
    %c0_i32_0 = arith.constant 0 : i32
    %c0_i32_1 = arith.constant 0 : i32
    %c0_i32_2 = arith.constant 0 : i32
    return %c0_i32, %c0_i32_0, %c0_i32_1 : i32, i32, i32
  }
  func.func @transform_5(%arg0: i32) -> (i32, i32, i32) {
    %c0_i32 = arith.constant 0 : i32
    %c0_i32_0 = arith.constant 0 : i32
    %c0_i32_1 = arith.constant 0 : i32
    %c0_i32_2 = arith.constant 0 : i32
    return %c0_i32, %c0_i32_0, %c0_i32_1 : i32, i32, i32
  }
  func.func @transform_6(%arg0: i32) -> (i32, i32, i32) {
    %c0_i32 = arith.constant 0 : i32
    %c0_i32_0 = arith.constant 0 : i32
    %c0_i32_1 = arith.constant 0 : i32
    %c0_i32_2 = arith.constant 0 : i32
    return %c0_i32, %c0_i32_0, %c0_i32_1 : i32, i32, i32
  }
  func.func @transform_7(%arg0: i32) -> (i32, i32, i32) {
    %c0_i32 = arith.constant 0 : i32
    %c0_i32_0 = arith.constant 0 : i32
    %c0_i32_1 = arith.constant 0 : i32
    %c0_i32_2 = arith.constant 0 : i32
    return %c0_i32, %c0_i32_0, %c0_i32_1 : i32, i32, i32
  }
  func.func @transform_8(%arg0: i32) -> (i32, i32, i32) {
    %c0_i32 = arith.constant 0 : i32
    %c0_i32_0 = arith.constant 0 : i32
    %c0_i32_1 = arith.constant 0 : i32
    %c0_i32_2 = arith.constant 0 : i32
    return %c0_i32, %c0_i32_0, %c0_i32_1 : i32, i32, i32
  }
  func.func @transform_9(%arg0: i32) -> (i32, i32) {
    %c0_i32 = arith.constant 0 : i32
    %c0_i32_0 = arith.constant 0 : i32
    %c0_i32_1 = arith.constant 0 : i32
    return %c0_i32, %c0_i32_0 : i32, i32
  }
  func.func @transform_10(%arg0: i32) -> (i32, i32, i32) {
    %c0_i32 = arith.constant 0 : i32
    %c0_i32_0 = arith.constant 0 : i32
    %c0_i32_1 = arith.constant 0 : i32
    %c0_i32_2 = arith.constant 0 : i32
    return %c0_i32, %c0_i32_0, %c0_i32_1 : i32, i32, i32
  }
  func.func @transform_11(%arg0: i32) -> (i32, i32) {
    %c0_i32 = arith.constant 0 : i32
    %c0_i32_0 = arith.constant 0 : i32
    return %arg0, %c0_i32 : i32, i32
  }
}

</mosaic_0001>

<llo_original>
// kernel: hrom_block_pallas.1
$region0: #{hrom_block_pallas.1}
  #allocation0 [shape = 'u32[]', space=smem, size = 0x4, offset = 0x4, fixed_abs, tag = 'smem constant byte address 0x4 - core index']
  #allocation1 [shape = 'u32[144,128]{1,0:T(1,128)}', space=vmem, size = 0x12000, scoped, tag = 'internal scratch']
  %s0 = inlined_call_operand.vmem [shape: f32[16,32], index: 0, kind: input, shape index: {}]
  %s1 = inlined_call_operand.vmem [shape: f32[16,8], index: 1, kind: input, shape index: {}]
  %s2 = inlined_call_operand.vmem [shape: f32[16,8], index: 2, kind: input, shape index: {}]
  %s3 = inlined_call_operand.vmem [shape: f32[16,16], index: 3, kind: input, shape index: {}]
  %s4 = inlined_call_operand.vmem [shape: f32[12,32,8], index: 4, kind: input, shape index: {}]
  %s5 = inlined_call_operand.vmem [shape: f32[12,1,8], index: 5, kind: input, shape index: {}]
  %s6 = inlined_call_operand.vmem [shape: f32[4,8,32], index: 6, kind: input, shape index: {}]
  %s7 = inlined_call_operand.vmem [shape: f32[2,32,64], index: 7, kind: input, shape index: {}]
  %s8 = inlined_call_operand.vmem [shape: f32[2,1,64], index: 8, kind: input, shape index: {}]
  %s9 = inlined_call_operand.vmem [shape: f32[64,32], index: 9, kind: input, shape index: {}]
  %s10 = inlined_call_operand.vmem [shape: f32[6,1,32], index: 10, kind: input, shape index: {}]
  %s11 = inlined_call_operand.hbm [shape: f32[16,32], index: 11, kind: output, shape index: {}]
  %s12 = sld [smem:[#allocation0]]
  $region54: #{hrom_block_pallas.1} parent=0
    _
  %s14 = ssub.s32 1, %s12
  %s15 = scalar_select 0, %s14, %s12
  $region1: #{hrom_block_pallas.1} parent=0
    #allocation2 [shape = 'u8[8192]{0}', space=vmem, size = 0x2000, scoped, tag = 'output window, operand 0, single buffered']
    #allocation3 [shape = 's32[1]{0}', space=sflag, size = 0x4, scoped, tag = 'scoped memory for hrom_block_pallas.1']
    %16 = vsyncpa [#allocation3], 0
    // Predicated region
    $region2: #{hrom_block_pallas.1} parent=1 // pred_check
      _
    $region3: #{hrom_block_pallas.1} parent=1 // pred_check_branch
      %18 = sbr.rel (0) target = $region5
    $region4: #{hrom_block_pallas.1} parent=1 // pred_region
      _
    $region5: #{hrom_block_pallas.1} parent=1 // pred_fallthru
      _
    // Predicated region
    $region6: #{hrom_block_pallas.1} parent=1 // pred_check
      _
    $region7: #{hrom_block_pallas.1} parent=1 // pred_check_branch
      %20 = sbr.rel (0) target = $region9
    $region8: #{hrom_block_pallas.1} parent=1 // pred_region
      _
    $region9: #{hrom_block_pallas.1} parent=1 // pred_fallthru
      _
    // Predicated region
    $region10: #{hrom_block_pallas.1} parent=1 // pred_check
      _
    $region11: #{hrom_block_pallas.1} parent=1 // pred_check_branch
      %22 = sbr.rel (0) target = $region13
    $region12: #{hrom_block_pallas.1} parent=1 // pred_region
      _
    $region13: #{hrom_block_pallas.1} parent=1 // pred_fallthru
      _
    // Predicated region
    $region14: #{hrom_block_pallas.1} parent=1 // pred_check
      _
    $region15: #{hrom_block_pallas.1} parent=1 // pred_check_branch
      %24 = sbr.rel (0) target = $region17
    $region16: #{hrom_block_pallas.1} parent=1 // pred_region
      _
    $region17: #{hrom_block_pallas.1} parent=1 // pred_fallthru
      _
    // Predicated region
    $region18: #{hrom_block_pallas.1} parent=1 // pred_check
      _
    $region19: #{hrom_block_pallas.1} parent=1 // pred_check_branch
      %26 = sbr.rel (0) target = $region21
    $region20: #{hrom_block_pallas.1} parent=1 // pred_region
      _
    $region21: #{hrom_block_pallas.1} parent=1 // pred_fallthru
      _
    // Predicated region
    $region22: #{hrom_block_pallas.1} parent=1 // pred_check
      _
    $region23: #{hrom_block_pallas.1} parent=1 // pred_check_branch
      %28 = sbr.rel (0) target = $region25
    $region24: #{hrom_block_pallas.1} parent=1 // pred_region
      _
    $region25: #{hrom_block_pallas.1} parent=1 // pred_fallthru
      _
    // Predicated region
    $region26: #{hrom_block_pallas.1} parent=1 // pred_check
      _
    $region27: #{hrom_block_pallas.1} parent=1 // pred_check_branch
      %30 = sbr.rel (0) target = $region29
    $region28: #{hrom_block_pallas.1} parent=1 // pred_region
      _
    $region29: #{hrom_block_pallas.1} parent=1 // pred_fallthru
      _
    // Predicated region
    $region30: #{hrom_block_pallas.1} parent=1 // pred_check
      _
    $region31: #{hrom_block_pallas.1} parent=1 // pred_check_branch
      %32 = sbr.rel (0) target = $region33
    $region32: #{hrom_block_pallas.1} parent=1 // pred_region
      _
    $region33: #{hrom_block_pallas.1} parent=1 // pred_fallthru
      _
    // Predicated region
    $region34: #{hrom_block_pallas.1} parent=1 // pred_check
      _
    $region35: #{hrom_block_pallas.1} parent=1 // pred_check_branch
      %34 = sbr.rel (0) target = $region37
    $region36: #{hrom_block_pallas.1} parent=1 // pred_region
      _
    $region37: #{hrom_block_pallas.1} parent=1 // pred_fallthru
      _
    // Predicated region
    $region38: #{hrom_block_pallas.1} parent=1 // pred_check
      _
    $region39: #{hrom_block_pallas.1} parent=1 // pred_check_branch
      %36 = sbr.rel (0) target = $region41
    $region40: #{hrom_block_pallas.1} parent=1 // pred_region
      _
    $region41: #{hrom_block_pallas.1} parent=1 // pred_fallthru
      _
    // Predicated region
    $region42: #{hrom_block_pallas.1} parent=1 // pred_check
      _
    $region43: #{hrom_block_pallas.1} parent=1 // pred_check_branch
      %38 = sbr.rel (0) target = $region45
    $region44: #{hrom_block_pallas.1} parent=1 // pred_region
      _
    $region45: #{hrom_block_pallas.1} parent=1 // pred_fallthru
      _
    %v39 = vld [vmem:[%s0] sm:$0xff]
    %v40 = vld [vmem:[%s0 + $0x8] sm:$0xff]
    %v41 = vld [vmem:[%s1] sm:$0xff]
    %v42 = vld [vmem:[%s1 + $0x8] sm:$0xff]
    %v43 = vld [vmem:[%s2] sm:$0xff]
    %v44 = vld [vmem:[%s2 + $0x8] sm:$0xff]
    %v45 = vld [vmem:[%s3] sm:$0xff]
    %v46 = vld [vmem:[%s3 + $0x8] sm:$0xff]
    %v47 = vld [vmem:[%s10] sm:$0x1]
    %s48 = scalar_lea.vmem %s10, 1
    %v49 = vld [vmem:[%s48] sm:$0x1]
    %s50 = scalar_lea.vmem %s10, 2
    %v51 = vld [vmem:[%s50] sm:$0x1]
    %s52 = scalar_lea.vmem %s10, 3
    %v53 = vld [vmem:[%s52] sm:$0x1]
    %s54 = scalar_lea.vmem %s10, 4
    %v55 = vld [vmem:[%s54] sm:$0x1]
    %s56 = scalar_lea.vmem %s10, 5
    %v57 = vld [vmem:[%s56] sm:$0x1]
    %v58 = vlaneseq
    %v59 = vshrl.u32 %v58, 7
    %v60 = vlaneseq
    %v61 = vand.u32 %v60, 127
    %v62 = vsub.s32 %v59, %v61
    %vm63 = vcmp.eq.s32.totalorder %v62, 4
    %v64 = vsel %vm63, -1.0, 0.0
    %v65 = vsub.s32 %v61, %v59
    %vm66 = vcmp.eq.s32.totalorder %v65, 4
    %v67 = vsel %vm66, 1.0, 0.0
    %v68 = vadd.f32 %v64, %v67
    %vm69 = vcmask 261120
    %v70 = vsel %vm69, %v39, 0.0
    %71 = vadd.xlane.f32.xlu0 %v70
    %v72 = vpop.xlane.xlu0 %71
    %v73 = vsel %vm69, %v40, 0.0
    %74 = vadd.xlane.f32.xlu0 %v73
    %v75 = vpop.xlane.xlu0 %74
    %v76 = vrcp.pop 32.0
    %v77 = vmul.f32 %v72, %v76
    %v78 = vmul.f32 %v75, %v76
    %v79 = vsub.f32 %v39, %v77
    %v80 = vsub.f32 %v40, %v78
    %v81 = vmul.f32 %v79, %v79
    %v82 = vmul.f32 %v80, %v80
    %v83 = vsel %vm69, %v81, 0.0
    %84 = vadd.xlane.f32.xlu0 %v83
    %v85 = vpop.xlane.xlu0 %84
    %v86 = vsel %vm69, %v82, 0.0
    %87 = vadd.xlane.f32.xlu0 %v86
    %v88 = vpop.xlane.xlu0 %87
    %v89 = vmul.f32 %v85, %v76
    %v90 = vmul.f32 %v88, %v76
    %v91 = vadd.f32 %v89, 1e-05
    %v92 = vadd.f32 %v90, 1e-05
    %v93 = vrsqrt.pop %v91
    %v94 = vrsqrt.pop %v92
    %v95 = vmul.f32 %v79, %v93
    %v96 = vmul.f32 %v80, %v94
    %v98 = vlaneseq
    %v99 = vshrl.u32 %v98, 7
    %v100 = vsub.s32 0, %v99
    %v101 = vrot.slane %v47, %v100
    %v103 = vmul.f32 %v95, %v101
    %v104 = vmul.f32 %v96, %v101
    %v106 = vlaneseq
    %v107 = vshrl.u32 %v106, 7
    %v108 = vsub.s32 0, %v107
    %v109 = vrot.slane %v49, %v108
    %v111 = vadd.f32 %v103, %v109
    %v112 = vadd.f32 %v104, %v109
    %v113 = vld [vmem:[%s4] sm:$0xff]
    %v114 = vld [vmem:[%s4 + $0x8] sm:$0xff]
    %v115 = vld [vmem:[%s4 + $0x10] sm:$0xff]
    %v116 = vld [vmem:[%s4 + $0x18] sm:$0xff]
    %v117 = vld [vmem:[%s5] sm:$0x1]
    %v119 = vlaneseq
    %v120 = vshrl.u32 %v119, 7
    %v121 = vsub.s32 0, %v120
    %v122 = vrot.slane %v117, %v121
    %v125 = vsel %vm69, %v111, 0
    %v128 = vsel %vm69, %v112, 0
    %130 = vmatprep.subr.mxu0 0.0
    %131 = vmatpush1.msra.mxu0 0.0
    %132 = vmatprep.subr.mxu0 0.0
    %133 = vmatpush1.msra.mxu0 0.0
    %134 = vmatprep.subr.mxu0 0.0
    %135 = vmatpush1.msra.mxu0 0.0
    %136 = vmatprep.subr.mxu0 0.0
    %137 = vmatpush1.msra.mxu0 0.0
    %138 = vmatprep.subr.mxu0 0.0
    %139 = vmatpush1.msra.mxu0 0.0
    %140 = vmatprep.subr.mxu0 0.0
    %141 = vmatpush1.msra.mxu0 0.0
    %142 = vmatprep.subr.mxu0 0.0
    %143 = vmatpush1.msra.mxu0 0.0
    %144 = vmatprep.subr.mxu0 0.0
    %145 = vmatpush1.msra.mxu0 0.0
    %146 = vmatprep.subr.mxu0 0.0
    %147 = vmatpush1.msra.mxu0 0.0
    %148 = vmatprep.subr.mxu0 0.0
    %149 = vmatpush1.msra.mxu0 0.0
    %150 = vmatprep.subr.mxu0 0.0
    %151 = vmatpush1.msra.mxu0 0.0
    %152 = vmatprep.subr.mxu0 0.0
    %153 = vmatpush1.msra.mxu0 0.0
    %154 = vmatprep.subr.mxu0 0.0
    %155 = vmatpush1.msra.mxu0 %v116
    %156 = vmatprep.subr.mxu0 0.0
    %157 = vmatpush1.msra.mxu0 %v115
    %158 = vmatprep.subr.mxu0 0.0
    %159 = vmatpush1.msra.mxu0 %v114
    %160 = vmatprep.subr.mxu0 0.0
    %161 = vmatpush1.msra.mxu0 %v113
    %162 = vmatprep.subr.mxu0 0.0
    %163 = vmatpush2.msra.mxu0 0.0
    %164 = vmatprep.subr.mxu0 0.0
    %165 = vmatpush2.msra.mxu0 0.0
    %166 = vmatprep.subr.mxu0 0.0
    %167 = vmatpush2.msra.mxu0 0.0
    %168 = vmatprep.subr.mxu0 0.0
    %169 = vmatpush2.msra.mxu0 0.0
    %170 = vmatprep.subr.mxu0 0.0
    %171 = vmatpush2.msra.mxu0 0.0
    %172 = vmatprep.subr.mxu0 0.0
    %173 = vmatpush2.msra.mxu0 0.0
    %174 = vmatprep.subr.mxu0 0.0
    %175 = vmatpush2.msra.mxu0 0.0
    %176 = vmatprep.subr.mxu0 0.0
    %177 = vmatpush2.msra.mxu0 0.0
    %178 = vmatprep.subr.mxu0 0.0
    %179 = vmatpush2.msra.mxu0 0.0
    %180 = vmatprep.subr.mxu0 0.0
    %181 = vmatpush2.msra.mxu0 0.0
    %182 = vmatprep.subr.mxu0 0.0
    %183 = vmatpush2.msra.mxu0 0.0
    %184 = vmatprep.subr.mxu0 0.0
    %185 = vmatpush2.msra.mxu0 0.0
    %186 = vmatprep.subr.mxu0 0.0
    %187 = vmatpush2.msra.mxu0 0.0
    %188 = vmatprep.subr.mxu0 0.0
    %189 = vmatpush2.msra.mxu0 0.0
    %190 = vmatprep.subr.mxu0 0.0
    %191 = vmatpush2.msra.mxu0 0.0
    %192 = vmatprep.subr.mxu0 0.0
    %193 = vmatpush2.msra.mxu0 0.0
    %194 = vmatprep.mubr.f32.mxu0 0.0
    %195 = vmatmul.mubr.f32.gmra.mxu0 %v125
    %v196 = vpop.f32.mrf.mxu0
    %v197 = vadd.f32 %v122, %v196
    %v198 = vpop.f32.mrf.mxu0
    %199 = vmatprep.mubr.f32.mxu0 0.0
    %200 = vmatmul.mubr.f32.gmra.mxu0 %v128
    %v201 = vpop.f32.mrf.mxu0
    %v202 = vadd.f32 %v122, %v201
    %v203 = vpop.f32.mrf.mxu0
    %204 = vdwg.mxu0
    %s205 = scalar_lea.vmem %s4, 128
    %v206 = vld [vmem:[%s205] sm:$0xff]
    %v207 = vld [vmem:[%s205 + $0x8] sm:$0xff]
    %v208 = vld [vmem:[%s205 + $0x10] sm:$0xff]
    %v209 = vld [vmem:[%s205 + $0x18] sm:$0xff]
    %s210 = scalar_lea.vmem %s5, 4
    %v211 = vld [vmem:[%s210] sm:$0x1]
    %v213 = vlaneseq
    %v214 = vshrl.u32 %v213, 7
    %v215 = vsub.s32 0, %v214
    %v216 = vrot.slane %v211, %v215
    %218 = vmatprep.subr.mxu0 0.0
    %219 = vmatpush1.msra.mxu0 0.0
    %220 = vmatprep.subr.mxu0 0.0
    %221 = vmatpush1.msra.mxu0 0.0
    %222 = vmatprep.subr.mxu0 0.0
    %223 = vmatpush1.msra.mxu0 0.0
    %224 = vmatprep.subr.mxu0 0.0
    %225 = vmatpush1.msra.mxu0 0.0
    %226 = vmatprep.subr.mxu0 0.0
    %227 = vmatpush1.msra.mxu0 0.0
    %228 = vmatprep.subr.mxu0 0.0
    %229 = vmatpush1.msra.mxu0 0.0
    %230 = vmatprep.subr.mxu0 0.0
    %231 = vmatpush1.msra.mxu0 0.0
    %232 = vmatprep.subr.mxu0 0.0
    %233 = vmatpush1.msra.mxu0 0.0
    %234 = vmatprep.subr.mxu0 0.0
    %235 = vmatpush1.msra.mxu0 0.0
    %236 = vmatprep.subr.mxu0 0.0
    %237 = vmatpush1.msra.mxu0 0.0
    %238 = vmatprep.subr.mxu0 0.0
    %239 = vmatpush1.msra.mxu0 0.0
    %240 = vmatprep.subr.mxu0 0.0
    %241 = vmatpush1.msra.mxu0 0.0
    %242 = vmatprep.subr.mxu0 0.0
    %243 = vmatpush1.msra.mxu0 %v209
    %244 = vmatprep.subr.mxu0 0.0
    %245 = vmatpush1.msra.mxu0 %v208
    %246 = vmatprep.subr.mxu0 0.0
    %247 = vmatpush1.msra.mxu0 %v207
    %248 = vmatprep.subr.mxu0 0.0
    %249 = vmatpush1.msra.mxu0 %v206
    %250 = vmatprep.subr.mxu0 0.0
    %251 = vmatpush2.msra.mxu0 0.0
    %252 = vmatprep.subr.mxu0 0.0
    %253 = vmatpush2.msra.mxu0 0.0
    %254 = vmatprep.subr.mxu0 0.0
    %255 = vmatpush2.msra.mxu0 0.0
    %256 = vmatprep.subr.mxu0 0.0
    %257 = vmatpush2.msra.mxu0 0.0
    %258 = vmatprep.subr.mxu0 0.0
    %259 = vmatpush2.msra.mxu0 0.0
    %260 = vmatprep.subr.mxu0 0.0
    %261 = vmatpush2.msra.mxu0 0.0
    %262 = vmatprep.subr.mxu0 0.0
    %263 = vmatpush2.msra.mxu0 0.0
    %264 = vmatprep.subr.mxu0 0.0
    %265 = vmatpush2.msra.mxu0 0.0
    %266 = vmatprep.subr.mxu0 0.0
    %267 = vmatpush2.msra.mxu0 0.0
    %268 = vmatprep.subr.mxu0 0.0
    %269 = vmatpush2.msra.mxu0 0.0
    %270 = vmatprep.subr.mxu0 0.0
    %271 = vmatpush2.msra.mxu0 0.0
    %272 = vmatprep.subr.mxu0 0.0
    %273 = vmatpush2.msra.mxu0 0.0
    %274 = vmatprep.subr.mxu0 0.0
    %275 = vmatpush2.msra.mxu0 0.0
    %276 = vmatprep.subr.mxu0 0.0
    %277 = vmatpush2.msra.mxu0 0.0
    %278 = vmatprep.subr.mxu0 0.0
    %279 = vmatpush2.msra.mxu0 0.0
    %280 = vmatprep.subr.mxu0 0.0
    %281 = vmatpush2.msra.mxu0 0.0
    %282 = vmatprep.mubr.f32.mxu0 0.0
    %283 = vmatmul.mubr.f32.gmra.mxu0 %v125
    %v284 = vpop.f32.mrf.mxu0
    %v285 = vadd.f32 %v216, %v284
    %v286 = vpop.f32.mrf.mxu0
    %287 = vmatprep.mubr.f32.mxu0 0.0
    %288 = vmatmul.mubr.f32.gmra.mxu0 %v128
    %v289 = vpop.f32.mrf.mxu0
    %v290 = vadd.f32 %v216, %v289
    %v291 = vpop.f32.mrf.mxu0
    %292 = vdwg.mxu0
    %s293 = scalar_lea.vmem %s4, 256
    %v294 = vld [vmem:[%s293] sm:$0xff]
    %v295 = vld [vmem:[%s293 + $0x8] sm:$0xff]
    %v296 = vld [vmem:[%s293 + $0x10] sm:$0xff]
    %v297 = vld [vmem:[%s293 + $0x18] sm:$0xff]
    %s298 = scalar_lea.vmem %s5, 8
    %v299 = vld [vmem:[%s298] sm:$0x1]
    %v301 = vlaneseq
    %v302 = vshrl.u32 %v301, 7
    %v303 = vsub.s32 0, %v302
    %v304 = vrot.slane %v299, %v303
    %306 = vmatprep.subr.mxu0 0.0
    %307 = vmatpush1.msra.mxu0 0.0
    %308 = vmatprep.subr.mxu0 0.0
    %309 = vmatpush1.msra.mxu0 0.0
    %310 = vmatprep.subr.mxu0 0.0
    %311 = vmatpush1.msra.mxu0 0.0
    %312 = vmatprep.subr.mxu0 0.0
    %313 = vmatpush1.msra.mxu0 0.0
    %314 = vmatprep.subr.mxu0 0.0
    %315 = vmatpush1.msra.mxu0 0.0
    %316 = vmatprep.subr.mxu0 0.0
    %317 = vmatpush1.msra.mxu0 0.0
    %318 = vmatprep.subr.mxu0 0.0
    %319 = vmatpush1.msra.mxu0 0.0
    %320 = vmatprep.subr.mxu0 0.0
    %321 = vmatpush1.msra.mxu0 0.0
    %322 = vmatprep.subr.mxu0 0.0
    %323 = vmatpush1.msra.mxu0 0.0
    %324 = vmatprep.subr.mxu0 0.0
    %325 = vmatpush1.msra.mxu0 0.0
    %326 = vmatprep.subr.mxu0 0.0
    %327 = vmatpush1.msra.mxu0 0.0
    %328 = vmatprep.subr.mxu0 0.0
    %329 = vmatpush1.msra.mxu0 0.0
    %330 = vmatprep.subr.mxu0 0.0
    %331 = vmatpush1.msra.mxu0 %v297
    %332 = vmatprep.subr.mxu0 0.0
    %333 = vmatpush1.msra.mxu0 %v296
    %334 = vmatprep.subr.mxu0 0.0
    %335 = vmatpush1.msra.mxu0 %v295
    %336 = vmatprep.subr.mxu0 0.0
    %337 = vmatpush1.msra.mxu0 %v294
    %338 = vmatprep.subr.mxu0 0.0
    %339 = vmatpush2.msra.mxu0 0.0
    %340 = vmatprep.subr.mxu0 0.0
    %341 = vmatpush2.msra.mxu0 0.0
    %342 = vmatprep.subr.mxu0 0.0
    %343 = vmatpush2.msra.mxu0 0.0
    %344 = vmatprep.subr.mxu0 0.0
    %345 = vmatpush2.msra.mxu0 0.0
    %346 = vmatprep.subr.mxu0 0.0
    %347 = vmatpush2.msra.mxu0 0.0
    %348 = vmatprep.subr.mxu0 0.0
    %349 = vmatpush2.msra.mxu0 0.0
    %350 = vmatprep.subr.mxu0 0.0
    %351 = vmatpush2.msra.mxu0 0.0
    %352 = vmatprep.subr.mxu0 0.0
    %353 = vmatpush2.msra.mxu0 0.0
    %354 = vmatprep.subr.mxu0 0.0
    %355 = vmatpush2.msra.mxu0 0.0
    %356 = vmatprep.subr.mxu0 0.0
    %357 = vmatpush2.msra.mxu0 0.0
    %358 = vmatprep.subr.mxu0 0.0
    %359 = vmatpush2.msra.mxu0 0.0
    %360 = vmatprep.subr.mxu0 0.0
    %361 = vmatpush2.msra.mxu0 0.0
    %362 = vmatprep.subr.mxu0 0.0
    %363 = vmatpush2.msra.mxu0 0.0
    %364 = vmatprep.subr.mxu0 0.0
    %365 = vmatpush2.msra.mxu0 0.0
    %366 = vmatprep.subr.mxu0 0.0
    %367 = vmatpush2.msra.mxu0 0.0
    %368 = vmatprep.subr.mxu0 0.0
    %369 = vmatpush2.msra.mxu0 0.0
    %370 = vmatprep.mubr.f32.mxu0 0.0
    %371 = vmatmul.mubr.f32.gmra.mxu0 %v125
    %v372 = vpop.f32.mrf.mxu0
    %v373 = vadd.f32 %v304, %v372
    %v374 = vpop.f32.mrf.mxu0
    %375 = vmatprep.mubr.f32.mxu0 0.0
    %376 = vmatmul.mubr.f32.gmra.mxu0 %v128
    %v377 = vpop.f32.mrf.mxu0
    %v378 = vadd.f32 %v304, %v377
    %v379 = vpop.f32.mrf.mxu0
    %380 = vdwg.mxu0
    %v381 = vmul.f32 %v197, %v41
    %v382 = vmul.f32 %v202, %v42
    %vm383 = vcmask 64512
    %v385 = vsel %vm383, %v197, 0
    %v388 = vsel %vm383, %v202, 0
    %390 = vmatprep.subr.mxu0 0.0
    %391 = vmatpush1.msra.mxu0 0.0
    %392 = vmatprep.subr.mxu0 0.0
    %393 = vmatpush1.msra.mxu0 0.0
    %394 = vmatprep.subr.mxu0 0.0
    %395 = vmatpush1.msra.mxu0 0.0
    %396 = vmatprep.subr.mxu0 0.0
    %397 = vmatpush1.msra.mxu0 0.0
    %398 = vmatprep.subr.mxu0 0.0
    %399 = vmatpush1.msra.mxu0 0.0
    %400 = vmatprep.subr.mxu0 0.0
    %401 = vmatpush1.msra.mxu0 0.0
    %402 = vmatprep.subr.mxu0 0.0
    %403 = vmatpush1.msra.mxu0 0.0
    %404 = vmatprep.subr.mxu0 0.0
    %405 = vmatpush1.msra.mxu0 0.0
    %406 = vmatprep.subr.mxu0 0.0
    %407 = vmatpush1.msra.mxu0 0.0
    %408 = vmatprep.subr.mxu0 0.0
    %409 = vmatpush1.msra.mxu0 0.0
    %410 = vmatprep.subr.mxu0 0.0
    %411 = vmatpush1.msra.mxu0 0.0
    %412 = vmatprep.subr.mxu0 0.0
    %413 = vmatpush1.msra.mxu0 0.0
    %414 = vmatprep.subr.mxu0 0.0
    %415 = vmatpush1.msra.mxu0 0.0
    %416 = vmatprep.subr.mxu0 0.0
    %417 = vmatpush1.msra.mxu0 0.0
    %418 = vmatprep.subr.mxu0 0.0
    %419 = vmatpush1.msra.mxu0 0.0
    %420 = vmatprep.subr.mxu0 0.0
    %421 = vmatpush1.msra.mxu0 %v68
    %422 = vmatprep.subr.mxu0 0.0
    %423 = vmatpush2.msra.mxu0 0.0
    %424 = vmatprep.subr.mxu0 0.0
    %425 = vmatpush2.msra.mxu0 0.0
    %426 = vmatprep.subr.mxu0 0.0
    %427 = vmatpush2.msra.mxu0 0.0
    %428 = vmatprep.subr.mxu0 0.0
    %429 = vmatpush2.msra.mxu0 0.0
    %430 = vmatprep.subr.mxu0 0.0
    %431 = vmatpush2.msra.mxu0 0.0
    %432 = vmatprep.subr.mxu0 0.0
    %433 = vmatpush2.msra.mxu0 0.0
    %434 = vmatprep.subr.mxu0 0.0
    %435 = vmatpush2.msra.mxu0 0.0
    %436 = vmatprep.subr.mxu0 0.0
    %437 = vmatpush2.msra.mxu0 0.0
    %438 = vmatprep.subr.mxu0 0.0
    %439 = vmatpush2.msra.mxu0 0.0
    %440 = vmatprep.subr.mxu0 0.0
    %441 = vmatpush2.msra.mxu0 0.0
    %442 = vmatprep.subr.mxu0 0.0
    %443 = vmatpush2.msra.mxu0 0.0
    %444 = vmatprep.subr.mxu0 0.0
    %445 = vmatpush2.msra.mxu0 0.0
    %446 = vmatprep.subr.mxu0 0.0
    %447 = vmatpush2.msra.mxu0 0.0
    %448 = vmatprep.subr.mxu0 0.0
    %449 = vmatpush2.msra.mxu0 0.0
    %450 = vmatprep.subr.mxu0 0.0
    %451 = vmatpush2.msra.mxu0 0.0
    %452 = vmatprep.subr.mxu0 0.0
    %453 = vmatpush2.msra.mxu0 0.0
    %454 = vmatprep.mubr.f32.mxu0 0.0
    %455 = vmatmul.mubr.f32.gmra.mxu0 %v385
    %v456 = vpop.f32.mrf.mxu0
    %v457 = vadd.f32 0.0, %v456
    %v458 = vpop.f32.mrf.mxu0
    %459 = vmatprep.mubr.f32.mxu0 0.0
    %460 = vmatmul.mubr.f32.gmra.mxu0 %v388
    %v461 = vpop.f32.mrf.mxu0
    %v462 = vadd.f32 0.0, %v461
    %v463 = vpop.f32.mrf.mxu0
    %464 = vdwg.mxu0
    %v465 = vmul.f32 %v457, %v43
    %v466 = vmul.f32 %v462, %v44
    %v467 = vadd.f32 %v381, %v465
    %v468 = vadd.f32 %v382, %v466
    %v469 = vmul.f32 %v285, %v41
    %v470 = vmul.f32 %v290, %v42
    %v472 = vsel %vm383, %v285, 0
    %v475 = vsel %vm383, %v290, 0
    %477 = vmatprep.subr.mxu0 0.0
    %478 = vmatpush1.msra.mxu0 0.0
    %479 = vmatprep.subr.mxu0 0.0
    %480 = vmatpush1.msra.mxu0 0.0
    %481 = vmatprep.subr.mxu0 0.0
    %482 = vmatpush1.msra.mxu0 0.0
    %483 = vmatprep.subr.mxu0 0.0
    %484 = vmatpush1.msra.mxu0 0.0
    %485 = vmatprep.subr.mxu0 0.0
    %486 = vmatpush1.msra.mxu0 0.0
    %487 = vmatprep.subr.mxu0 0.0
    %488 = vmatpush1.msra.mxu0 0.0
    %489 = vmatprep.subr.mxu0 0.0
    %490 = vmatpush1.msra.mxu0 0.0
    %491 = vmatprep.subr.mxu0 0.0
    %492 = vmatpush1.msra.mxu0 0.0
    %493 = vmatprep.subr.mxu0 0.0
    %494 = vmatpush1.msra.mxu0 0.0
    %495 = vmatprep.subr.mxu0 0.0
    %496 = vmatpush1.msra.mxu0 0.0
    %497 = vmatprep.subr.mxu0 0.0
    %498 = vmatpush1.msra.mxu0 0.0
    %499 = vmatprep.subr.mxu0 0.0
    %500 = vmatpush1.msra.mxu0 0.0
    %501 = vmatprep.subr.mxu0 0.0
    %502 = vmatpush1.msra.mxu0 0.0
    %503 = vmatprep.subr.mxu0 0.0
    %504 = vmatpush1.msra.mxu0 0.0
    %505 = vmatprep.subr.mxu0 0.0
    %506 = vmatpush1.msra.mxu0 0.0
    %507 = vmatprep.subr.mxu0 0.0
    %508 = vmatpush1.msra.mxu0 %v68
    %509 = vmatprep.subr.mxu0 0.0
    %510 = vmatpush2.msra.mxu0 0.0
    %511 = vmatprep.subr.mxu0 0.0
    %512 = vmatpush2.msra.mxu0 0.0
    %513 = vmatprep.subr.mxu0 0.0
    %514 = vmatpush2.msra.mxu0 0.0
    %515 = vmatprep.subr.mxu0 0.0
    %516 = vmatpush2.msra.mxu0 0.0
    %517 = vmatprep.subr.mxu0 0.0
    %518 = vmatpush2.msra.mxu0 0.0
    %519 = vmatprep.subr.mxu0 0.0
    %520 = vmatpush2.msra.mxu0 0.0
    %521 = vmatprep.subr.mxu0 0.0
    %522 = vmatpush2.msra.mxu0 0.0
    %523 = vmatprep.subr.mxu0 0.0
    %524 = vmatpush2.msra.mxu0 0.0
    %525 = vmatprep.subr.mxu0 0.0
    %526 = vmatpush2.msra.mxu0 0.0
    %527 = vmatprep.subr.mxu0 0.0
    %528 = vmatpush2.msra.mxu0 0.0
    %529 = vmatprep.subr.mxu0 0.0
    %530 = vmatpush2.msra.mxu0 0.0
    %531 = vmatprep.subr.mxu0 0.0
    %532 = vmatpush2.msra.mxu0 0.0
    %533 = vmatprep.subr.mxu0 0.0
    %534 = vmatpush2.msra.mxu0 0.0
    %535 = vmatprep.subr.mxu0 0.0
    %536 = vmatpush2.msra.mxu0 0.0
    %537 = vmatprep.subr.mxu0 0.0
    %538 = vmatpush2.msra.mxu0 0.0
    %539 = vmatprep.subr.mxu0 0.0
    %540 = vmatpush2.msra.mxu0 0.0
    %541 = vmatprep.mubr.f32.mxu0 0.0
    %542 = vmatmul.mubr.f32.gmra.mxu0 %v472
    %v543 = vpop.f32.mrf.mxu0
    %v544 = vadd.f32 0.0, %v543
    %v545 = vpop.f32.mrf.mxu0
    %546 = vmatprep.mubr.f32.mxu0 0.0
    %547 = vmatmul.mubr.f32.gmra.mxu0 %v475
    %v548 = vpop.f32.mrf.mxu0
    %v549 = vadd.f32 0.0, %v548
    %v550 = vpop.f32.mrf.mxu0
    %551 = vdwg.mxu0
    %v552 = vmul.f32 %v544, %v43
    %v553 = vmul.f32 %v549, %v44
    %v554 = vadd.f32 %v469, %v552
    %v555 = vadd.f32 %v470, %v553
    %v557 = vsel %vm383, %v467, 0
    %v560 = vsel %vm383, %v468, 0
    %v563 = vsel %vm383, %v554, 0
    %v566 = vsel %vm383, %v555, 0
    %568 = vmatprep.subr.mxu0 0.0
    %569 = vmatpush1.xpose.msra.mxu0 0.0
    %570 = vmatprep.subr.mxu0 0.0
    %571 = vmatpush1.xpose.msra.mxu0 0.0
    %572 = vmatprep.subr.mxu0 0.0
    %573 = vmatpush1.xpose.msra.mxu0 0.0
    %574 = vmatprep.subr.mxu0 0.0
    %575 = vmatpush1.xpose.msra.mxu0 0.0
    %576 = vmatprep.subr.mxu0 0.0
    %577 = vmatpush1.xpose.msra.mxu0 0.0
    %578 = vmatprep.subr.mxu0 0.0
    %579 = vmatpush1.xpose.msra.mxu0 0.0
    %580 = vmatprep.subr.mxu0 0.0
    %581 = vmatpush1.xpose.msra.mxu0 0.0
    %582 = vmatprep.subr.mxu0 0.0
    %583 = vmatpush1.xpose.msra.mxu0 0.0
    %584 = vmatprep.subr.mxu0 0.0
    %585 = vmatpush1.xpose.msra.mxu0 0.0
    %586 = vmatprep.subr.mxu0 0.0
    %587 = vmatpush1.xpose.msra.mxu0 0.0
    %588 = vmatprep.subr.mxu0 0.0
    %589 = vmatpush1.xpose.msra.mxu0 0.0
    %590 = vmatprep.subr.mxu0 0.0
    %591 = vmatpush1.xpose.msra.mxu0 0.0
    %592 = vmatprep.subr.mxu0 0.0
    %593 = vmatpush1.xpose.msra.mxu0 0.0
    %594 = vmatprep.subr.mxu0 0.0
    %595 = vmatpush1.xpose.msra.mxu0 0.0
    %596 = vmatprep.subr.mxu0 0.0
    %597 = vmatpush1.xpose.msra.mxu0 %v566
    %598 = vmatprep.subr.mxu0 0.0
    %599 = vmatpush1.xpose.msra.mxu0 %v563
    %600 = vmatprep.subr.mxu0 0.0
    %601 = vmatpush2.xpose.msra.mxu0 0.0
    %602 = vmatprep.subr.mxu0 0.0
    %603 = vmatpush2.xpose.msra.mxu0 0.0
    %604 = vmatprep.subr.mxu0 0.0
    %605 = vmatpush2.xpose.msra.mxu0 0.0
    %606 = vmatprep.subr.mxu0 0.0
    %607 = vmatpush2.xpose.msra.mxu0 0.0
    %608 = vmatprep.subr.mxu0 0.0
    %609 = vmatpush2.xpose.msra.mxu0 0.0
    %610 = vmatprep.subr.mxu0 0.0
    %611 = vmatpush2.xpose.msra.mxu0 0.0
    %612 = vmatprep.subr.mxu0 0.0
    %613 = vmatpush2.xpose.msra.mxu0 0.0
    %614 = vmatprep.subr.mxu0 0.0
    %615 = vmatpush2.xpose.msra.mxu0 0.0
    %616 = vmatprep.subr.mxu0 0.0
    %617 = vmatpush2.xpose.msra.mxu0 0.0
    %618 = vmatprep.subr.mxu0 0.0
    %619 = vmatpush2.xpose.msra.mxu0 0.0
    %620 = vmatprep.subr.mxu0 0.0
    %621 = vmatpush2.xpose.msra.mxu0 0.0
    %622 = vmatprep.subr.mxu0 0.0
    %623 = vmatpush2.xpose.msra.mxu0 0.0
    %624 = vmatprep.subr.mxu0 0.0
    %625 = vmatpush2.xpose.msra.mxu0 0.0
    %626 = vmatprep.subr.mxu0 0.0
    %627 = vmatpush2.xpose.msra.mxu0 0.0
    %628 = vmatprep.subr.mxu0 0.0
    %629 = vmatpush2.xpose.msra.mxu0 0.0
    %630 = vmatprep.subr.mxu0 0.0
    %631 = vmatpush2.xpose.msra.mxu0 0.0
    %632 = vmatprep.mubr.f32.mxu0 0.0
    %633 = vmatmul.mubr.f32.gmra.mxu0 %v557
    %v634 = vpop.f32.mrf.mxu0
    %v635 = vadd.f32 0.0, %v634
    %v636 = vpop.f32.mrf.mxu0
    %637 = vmatprep.mubr.f32.mxu0 0.0
    %638 = vmatmul.mubr.f32.gmra.mxu0 %v560
    %v639 = vpop.f32.mrf.mxu0
    %v640 = vadd.f32 0.0, %v639
    %v641 = vpop.f32.mrf.mxu0
    %642 = vdwg.mxu0
    %v643 = vmul.f32 %v635, 0.35355338
    %v644 = vmul.f32 %v640, 0.35355338
    %v645 = vadd.f32 %v643, %v45
    %v646 = vadd.f32 %v644, %v46
    %vm647 = vcmask 130048
    %v648 = vsel %vm647, %v645, -inf
    %649 = vmax.xlane.f32.xlu0 %v648
    %v650 = vpop.xlane.xlu0 %649
    %v651 = vsel %vm647, %v646, -inf
    %652 = vmax.xlane.f32.xlu0 %v651
    %v653 = vpop.xlane.xlu0 %652
    %v654 = vsub.f32 %v645, %v650
    %v655 = vsub.f32 %v646, %v653
    %v656 = vmul.f32 %v654, 1.442695
    %v657 = vpow.pop %v656
    %v658 = vmul.f32 %v655, 1.442695
    %v659 = vpow.pop %v658
    %v660 = vsel %vm647, %v657, 0.0
    %661 = vadd.xlane.f32.xlu0 %v660
    %v662 = vpop.xlane.xlu0 %661
    %v663 = vsel %vm647, %v659, 0.0
    %664 = vadd.xlane.f32.xlu0 %v663
    %v665 = vpop.xlane.xlu0 %664
    %v666 = vrcp.pop %v662
    %v667 = vrcp.pop %v665
    %v668 = vmul.f32 %v662, %v666
    %v669 = vmul.f32 %v665, %v667
    %v670 = vsub.f32 2.0, %v668
    %v671 = vsub.f32 2.0, %v669
    %v672 = vmul.f32 %v666, %v670
    %v673 = vmul.f32 %v667, %v671
    %v674 = vmul.f32 %v657, %v672
    %v675 = vmul.f32 %v659, %v673
    %v677 = vsel %vm647, %v674, 0
    %v680 = vsel %vm647, %v675, 0
    %682 = vmatprep.subr.mxu0 0.0
    %683 = vmatpush1.msra.mxu0 0.0
    %684 = vmatprep.subr.mxu0 0.0
    %685 = vmatpush1.msra.mxu0 0.0
    %686 = vmatprep.subr.mxu0 0.0
    %687 = vmatpush1.msra.mxu0 0.0
    %688 = vmatprep.subr.mxu0 0.0
    %689 = vmatpush1.msra.mxu0 0.0
    %690 = vmatprep.subr.mxu0 0.0
    %691 = vmatpush1.msra.mxu0 0.0
    %692 = vmatprep.subr.mxu0 0.0
    %693 = vmatpush1.msra.mxu0 0.0
    %694 = vmatprep.subr.mxu0 0.0
    %695 = vmatpush1.msra.mxu0 0.0
    %696 = vmatprep.subr.mxu0 0.0
    %697 = vmatpush1.msra.mxu0 0.0
    %698 = vmatprep.subr.mxu0 0.0
    %699 = vmatpush1.msra.mxu0 0.0
    %700 = vmatprep.subr.mxu0 0.0
    %701 = vmatpush1.msra.mxu0 0.0
    %702 = vmatprep.subr.mxu0 0.0
    %703 = vmatpush1.msra.mxu0 0.0
    %704 = vmatprep.subr.mxu0 0.0
    %705 = vmatpush1.msra.mxu0 0.0
    %706 = vmatprep.subr.mxu0 0.0
    %707 = vmatpush1.msra.mxu0 0.0
    %708 = vmatprep.subr.mxu0 0.0
    %709 = vmatpush1.msra.mxu0 0.0
    %710 = vmatprep.subr.mxu0 0.0
    %711 = vmatpush1.msra.mxu0 %v378
    %712 = vmatprep.subr.mxu0 0.0
    %713 = vmatpush1.msra.mxu0 %v373
    %714 = vmatprep.subr.mxu0 0.0
    %715 = vmatpush2.msra.mxu0 0.0
    %716 = vmatprep.subr.mxu0 0.0
    %717 = vmatpush2.msra.mxu0 0.0
    %718 = vmatprep.subr.mxu0 0.0
    %719 = vmatpush2.msra.mxu0 0.0
    %720 = vmatprep.subr.mxu0 0.0
    %721 = vmatpush2.msra.mxu0 0.0
    %722 = vmatprep.subr.mxu0 0.0
    %723 = vmatpush2.msra.mxu0 0.0
    %724 = vmatprep.subr.mxu0 0.0
    %725 = vmatpush2.msra.mxu0 0.0
    %726 = vmatprep.subr.mxu0 0.0
    %727 = vmatpush2.msra.mxu0 0.0
    %728 = vmatprep.subr.mxu0 0.0
    %729 = vmatpush2.msra.mxu0 0.0
    %730 = vmatprep.subr.mxu0 0.0
    %731 = vmatpush2.msra.mxu0 0.0
    %732 = vmatprep.subr.mxu0 0.0
    %733 = vmatpush2.msra.mxu0 0.0
    %734 = vmatprep.subr.mxu0 0.0
    %735 = vmatpush2.msra.mxu0 0.0
    %736 = vmatprep.subr.mxu0 0.0
    %737 = vmatpush2.msra.mxu0 0.0
    %738 = vmatprep.subr.mxu0 0.0
    %739 = vmatpush2.msra.mxu0 0.0
    %740 = vmatprep.subr.mxu0 0.0
    %741 = vmatpush2.msra.mxu0 0.0
    %742 = vmatprep.subr.mxu0 0.0
    %743 = vmatpush2.msra.mxu0 0.0
    %744 = vmatprep.subr.mxu0 0.0
    %745 = vmatpush2.msra.mxu0 0.0
    %746 = vmatprep.mubr.f32.mxu0 0.0
    %747 = vmatmul.mubr.f32.gmra.mxu0 %v677
    %v748 = vpop.f32.mrf.mxu0
    %v749 = vadd.f32 0.0, %v748
    %v750 = vpop.f32.mrf.mxu0
    %751 = vmatprep.mubr.f32.mxu0 0.0
    %752 = vmatmul.mubr.f32.gmra.mxu0 %v680
    %v753 = vpop.f32.mrf.mxu0
    %v754 = vadd.f32 0.0, %v753
    %v755 = vpop.f32.mrf.mxu0
    %756 = vdwg.mxu0
    %v757 = vld [vmem:[%s6] sm:$0xff]
    %s758 = scalar_lea.vmem %s4, 32
    %v759 = vld [vmem:[%s758] sm:$0xff]
    %v760 = vld [vmem:[%s758 + $0x8] sm:$0xff]
    %v761 = vld [vmem:[%s758 + $0x10] sm:$0xff]
    %v762 = vld [vmem:[%s758 + $0x18] sm:$0xff]
    %s763 = scalar_lea.vmem %s5, 1
    %v764 = vld [vmem:[%s763] sm:$0x1]
    %v766 = vlaneseq
    %v767 = vshrl.u32 %v766, 7
    %v768 = vsub.s32 0, %v767
    %v769 = vrot.slane %v764, %v768
    %771 = vmatprep.subr.mxu0 0.0
    %772 = vmatpush1.msra.mxu0 0.0
    %773 = vmatprep.subr.mxu0 0.0
    %774 = vmatpush1.msra.mxu0 0.0
    %775 = vmatprep.subr.mxu0 0.0
    %776 = vmatpush1.msra.mxu0 0.0
    %777 = vmatprep.subr.mxu0 0.0
    %778 = vmatpush1.msra.mxu0 0.0
    %779 = vmatprep.subr.mxu0 0.0
    %780 = vmatpush1.msra.mxu0 0.0
    %781 = vmatprep.subr.mxu0 0.0
    %782 = vmatpush1.msra.mxu0 0.0
    %783 = vmatprep.subr.mxu0 0.0
    %784 = vmatpush1.msra.mxu0 0.0
    %785 = vmatprep.subr.mxu0 0.0
    %786 = vmatpush1.msra.mxu0 0.0
    %787 = vmatprep.subr.mxu0 0.0
    %788 = vmatpush1.msra.mxu0 0.0
    %789 = vmatprep.subr.mxu0 0.0
    %790 = vmatpush1.msra.mxu0 0.0
    %791 = vmatprep.subr.mxu0 0.0
    %792 = vmatpush1.msra.mxu0 0.0
    %793 = vmatprep.subr.mxu0 0.0
    %794 = vmatpush1.msra.mxu0 0.0
    %795 = vmatprep.subr.mxu0 0.0
    %796 = vmatpush1.msra.mxu0 %v762
    %797 = vmatprep.subr.mxu0 0.0
    %798 = vmatpush1.msra.mxu0 %v761
    %799 = vmatprep.subr.mxu0 0.0
    %800 = vmatpush1.msra.mxu0 %v760
    %801 = vmatprep.subr.mxu0 0.0
    %802 = vmatpush1.msra.mxu0 %v759
    %803 = vmatprep.subr.mxu0 0.0
    %804 = vmatpush2.msra.mxu0 0.0
    %805 = vmatprep.subr.mxu0 0.0
    %806 = vmatpush2.msra.mxu0 0.0
    %807 = vmatprep.subr.mxu0 0.0
    %808 = vmatpush2.msra.mxu0 0.0
    %809 = vmatprep.subr.mxu0 0.0
    %810 = vmatpush2.msra.mxu0 0.0
    %811 = vmatprep.subr.mxu0 0.0
    %812 = vmatpush2.msra.mxu0 0.0
    %813 = vmatprep.subr.mxu0 0.0
    %814 = vmatpush2.msra.mxu0 0.0
    %815 = vmatprep.subr.mxu0 0.0
    %816 = vmatpush2.msra.mxu0 0.0
    %817 = vmatprep.subr.mxu0 0.0
    %818 = vmatpush2.msra.mxu0 0.0
    %819 = vmatprep.subr.mxu0 0.0
    %820 = vmatpush2.msra.mxu0 0.0
    %821 = vmatprep.subr.mxu0 0.0
    %822 = vmatpush2.msra.mxu0 0.0
    %823 = vmatprep.subr.mxu0 0.0
    %824 = vmatpush2.msra.mxu0 0.0
    %825 = vmatprep.subr.mxu0 0.0
    %826 = vmatpush2.msra.mxu0 0.0
    %827 = vmatprep.subr.mxu0 0.0
    %828 = vmatpush2.msra.mxu0 0.0
    %829 = vmatprep.subr.mxu0 0.0
    %830 = vmatpush2.msra.mxu0 0.0
    %831 = vmatprep.subr.mxu0 0.0
    %832 = vmatpush2.msra.mxu0 0.0
    %833 = vmatprep.subr.mxu0 0.0
    %834 = vmatpush2.msra.mxu0 0.0
    %835 = vmatprep.mubr.f32.mxu0 0.0
    %836 = vmatmul.mubr.f32.gmra.mxu0 %v125
    %v837 = vpop.f32.mrf.mxu0
    %v838 = vadd.f32 %v769, %v837
    %v839 = vpop.f32.mrf.mxu0
    %840 = vmatprep.mubr.f32.mxu0 0.0
    %841 = vmatmul.mubr.f32.gmra.mxu0 %v128
    %v842 = vpop.f32.mrf.mxu0
    %v843 = vadd.f32 %v769, %v842
    %v844 = vpop.f32.mrf.mxu0
    %845 = vdwg.mxu0
    %s846 = scalar_lea.vmem %s4, 160
    %v847 = vld [vmem:[%s846] sm:$0xff]
    %v848 = vld [vmem:[%s846 + $0x8] sm:$0xff]
    %v849 = vld [vmem:[%s846 + $0x10] sm:$0xff]
    %v850 = vld [vmem:[%s846 + $0x18] sm:$0xff]
    %s851 = scalar_lea.vmem %s5, 5
    %v852 = vld [vmem:[%s851] sm:$0x1]
    %v854 = vlaneseq
    %v855 = vshrl.u32 %v854, 7
    %v856 = vsub.s32 0, %v855
    %v857 = vrot.slane %v852, %v856
    %859 = vmatprep.subr.mxu0 0.0
    %860 = vmatpush1.msra.mxu0 0.0
    %861 = vmatprep.subr.mxu0 0.0
    %862 = vmatpush1.msra.mxu0 0.0
    %863 = vmatprep.subr.mxu0 0.0
    %864 = vmatpush1.msra.mxu0 0.0
    %865 = vmatprep.subr.mxu0 0.0
    %866 = vmatpush1.msra.mxu0 0.0
    %867 = vmatprep.subr.mxu0 0.0
    %868 = vmatpush1.msra.mxu0 0.0
    %869 = vmatprep.subr.mxu0 0.0
    %870 = vmatpush1.msra.mxu0 0.0
    %871 = vmatprep.subr.mxu0 0.0
    %872 = vmatpush1.msra.mxu0 0.0
    %873 = vmatprep.subr.mxu0 0.0
    %874 = vmatpush1.msra.mxu0 0.0
    %875 = vmatprep.subr.mxu0 0.0
    %876 = vmatpush1.msra.mxu0 0.0
    %877 = vmatprep.subr.mxu0 0.0
    %878 = vmatpush1.msra.mxu0 0.0
    %879 = vmatprep.subr.mxu0 0.0
    %880 = vmatpush1.msra.mxu0 0.0
    %881 = vmatprep.subr.mxu0 0.0
    %882 = vmatpush1.msra.mxu0 0.0
    %883 = vmatprep.subr.mxu0 0.0
    %884 = vmatpush1.msra.mxu0 %v850
    %885 = vmatprep.subr.mxu0 0.0
    %886 = vmatpush1.msra.mxu0 %v849
    %887 = vmatprep.subr.mxu0 0.0
    %888 = vmatpush1.msra.mxu0 %v848
    %889 = vmatprep.subr.mxu0 0.0
    %890 = vmatpush1.msra.mxu0 %v847
    %891 = vmatprep.subr.mxu0 0.0
    %892 = vmatpush2.msra.mxu0 0.0
    %893 = vmatprep.subr.mxu0 0.0
    %894 = vmatpush2.msra.mxu0 0.0
    %895 = vmatprep.subr.mxu0 0.0
    %896 = vmatpush2.msra.mxu0 0.0
    %897 = vmatprep.subr.mxu0 0.0
    %898 = vmatpush2.msra.mxu0 0.0
    %899 = vmatprep.subr.mxu0 0.0
    %900 = vmatpush2.msra.mxu0 0.0
    %901 = vmatprep.subr.mxu0 0.0
    %902 = vmatpush2.msra.mxu0 0.0
    %903 = vmatprep.subr.mxu0 0.0
    %904 = vmatpush2.msra.mxu0 0.0
    %905 = vmatprep.subr.mxu0 0.0
    %906 = vmatpush2.msra.mxu0 0.0
    %907 = vmatprep.subr.mxu0 0.0
    %908 = vmatpush2.msra.mxu0 0.0
    %909 = vmatprep.subr.mxu0 0.0
    %910 = vmatpush2.msra.mxu0 0.0
    %911 = vmatprep.subr.mxu0 0.0
    %912 = vmatpush2.msra.mxu0 0.0
    %913 = vmatprep.subr.mxu0 0.0
    %914 = vmatpush2.msra.mxu0 0.0
    %915 = vmatprep.subr.mxu0 0.0
    %916 = vmatpush2.msra.mxu0 0.0
    %917 = vmatprep.subr.mxu0 0.0
    %918 = vmatpush2.msra.mxu0 0.0
    %919 = vmatprep.subr.mxu0 0.0
    %920 = vmatpush2.msra.mxu0 0.0
    %921 = vmatprep.subr.mxu0 0.0
    %922 = vmatpush2.msra.mxu0 0.0
    %923 = vmatprep.mubr.f32.mxu0 0.0
    %924 = vmatmul.mubr.f32.gmra.mxu0 %v125
    %v925 = vpop.f32.mrf.mxu0
    %v926 = vadd.f32 %v857, %v925
    %v927 = vpop.f32.mrf.mxu0
    %928 = vmatprep.mubr.f32.mxu0 0.0
    %929 = vmatmul.mubr.f32.gmra.mxu0 %v128
    %v930 = vpop.f32.mrf.mxu0
    %v931 = vadd.f32 %v857, %v930
    %v932 = vpop.f32.mrf.mxu0
    %933 = vdwg.mxu0
    %s934 = scalar_lea.vmem %s4, 288
    %v935 = vld [vmem:[%s934] sm:$0xff]
    %v936 = vld [vmem:[%s934 + $0x8] sm:$0xff]
    %v937 = vld [vmem:[%s934 + $0x10] sm:$0xff]
    %v938 = vld [vmem:[%s934 + $0x18] sm:$0xff]
    %s939 = scalar_lea.vmem %s5, 9
    %v940 = vld [vmem:[%s939] sm:$0x1]
    %v942 = vlaneseq
    %v943 = vshrl.u32 %v942, 7
    %v944 = vsub.s32 0, %v943
    %v945 = vrot.slane %v940, %v944
    %947 = vmatprep.subr.mxu0 0.0
    %948 = vmatpush1.msra.mxu0 0.0
    %949 = vmatprep.subr.mxu0 0.0
    %950 = vmatpush1.msra.mxu0 0.0
    %951 = vmatprep.subr.mxu0 0.0
    %952 = vmatpush1.msra.mxu0 0.0
    %953 = vmatprep.subr.mxu0 0.0
    %954 = vmatpush1.msra.mxu0 0.0
    %955 = vmatprep.subr.mxu0 0.0
    %956 = vmatpush1.msra.mxu0 0.0
    %957 = vmatprep.subr.mxu0 0.0
    %958 = vmatpush1.msra.mxu0 0.0
    %959 = vmatprep.subr.mxu0 0.0
    %960 = vmatpush1.msra.mxu0 0.0
    %961 = vmatprep.subr.mxu0 0.0
    %962 = vmatpush1.msra.mxu0 0.0
    %963 = vmatprep.subr.mxu0 0.0
    %964 = vmatpush1.msra.mxu0 0.0
    %965 = vmatprep.subr.mxu0 0.0
    %966 = vmatpush1.msra.mxu0 0.0
    %967 = vmatprep.subr.mxu0 0.0
    %968 = vmatpush1.msra.mxu0 0.0
    %969 = vmatprep.subr.mxu0 0.0
    %970 = vmatpush1.msra.mxu0 0.0
    %971 = vmatprep.subr.mxu0 0.0
    %972 = vmatpush1.msra.mxu0 %v938
    %973 = vmatprep.subr.mxu0 0.0
    %974 = vmatpush1.msra.mxu0 %v937
    %975 = vmatprep.subr.mxu0 0.0
    %976 = vmatpush1.msra.mxu0 %v936
    %977 = vmatprep.subr.mxu0 0.0
    %978 = vmatpush1.msra.mxu0 %v935
    %979 = vmatprep.subr.mxu0 0.0
    %980 = vmatpush2.msra.mxu0 0.0
    %981 = vmatprep.subr.mxu0 0.0
    %982 = vmatpush2.msra.mxu0 0.0
    %983 = vmatprep.subr.mxu0 0.0
    %984 = vmatpush2.msra.mxu0 0.0
    %985 = vmatprep.subr.mxu0 0.0
    %986 = vmatpush2.msra.mxu0 0.0
    %987 = vmatprep.subr.mxu0 0.0
    %988 = vmatpush2.msra.mxu0 0.0
    %989 = vmatprep.subr.mxu0 0.0
    %990 = vmatpush2.msra.mxu0 0.0
    %991 = vmatprep.subr.mxu0 0.0
    %992 = vmatpush2.msra.mxu0 0.0
    %993 = vmatprep.subr.mxu0 0.0
    %994 = vmatpush2.msra.mxu0 0.0
    %995 = vmatprep.subr.mxu0 0.0
    %996 = vmatpush2.msra.mxu0 0.0
    %997 = vmatprep.subr.mxu0 0.0
    %998 = vmatpush2.msra.mxu0 0.0
    %999 = vmatprep.subr.mxu0 0.0
    %1000 = vmatpush2.msra.mxu0 0.0
    %1001 = vmatprep.subr.mxu0 0.0
    %1002 = vmatpush2.msra.mxu0 0.0
    %1003 = vmatprep.subr.mxu0 0.0
    %1004 = vmatpush2.msra.mxu0 0.0
    %1005 = vmatprep.subr.mxu0 0.0
    %1006 = vmatpush2.msra.mxu0 0.0
    %1007 = vmatprep.subr.mxu0 0.0
    %1008 = vmatpush2.msra.mxu0 0.0
    %1009 = vmatprep.subr.mxu0 0.0
    %1010 = vmatpush2.msra.mxu0 0.0
    %1011 = vmatprep.mubr.f32.mxu0 0.0
    %1012 = vmatmul.mubr.f32.gmra.mxu0 %v125
    %v1013 = vpop.f32.mrf.mxu0
    %v1014 = vadd.f32 %v945, %v1013
    %v1015 = vpop.f32.mrf.mxu0
    %1016 = vmatprep.mubr.f32.mxu0 0.0
    %1017 = vmatmul.mubr.f32.gmra.mxu0 %v128
    %v1018 = vpop.f32.mrf.mxu0
    %v1019 = vadd.f32 %v945, %v1018
    %v1020 = vpop.f32.mrf.mxu0
    %1021 = vdwg.mxu0
    %v1022 = vmul.f32 %v838, %v41
    %v1023 = vmul.f32 %v843, %v42
    %v1025 = vsel %vm383, %v838, 0
    %v1028 = vsel %vm383, %v843, 0
    %1030 = vmatprep.subr.mxu0 0.0
    %1031 = vmatpush1.msra.mxu0 0.0
    %1032 = vmatprep.subr.mxu0 0.0
    %1033 = vmatpush1.msra.mxu0 0.0
    %1034 = vmatprep.subr.mxu0 0.0
    %1035 = vmatpush1.msra.mxu0 0.0
    %1036 = vmatprep.subr.mxu0 0.0
    %1037 = vmatpush1.msra.mxu0 0.0
    %1038 = vmatprep.subr.mxu0 0.0
    %1039 = vmatpush1.msra.mxu0 0.0
    %1040 = vmatprep.subr.mxu0 0.0
    %1041 = vmatpush1.msra.mxu0 0.0
    %1042 = vmatprep.subr.mxu0 0.0
    %1043 = vmatpush1.msra.mxu0 0.0
    %1044 = vmatprep.subr.mxu0 0.0
    %1045 = vmatpush1.msra.mxu0 0.0
    %1046 = vmatprep.subr.mxu0 0.0
    %1047 = vmatpush1.msra.mxu0 0.0
    %1048 = vmatprep.subr.mxu0 0.0
    %1049 = vmatpush1.msra.mxu0 0.0
    %1050 = vmatprep.subr.mxu0 0.0
    %1051 = vmatpush1.msra.mxu0 0.0
    %1052 = vmatprep.subr.mxu0 0.0
    %1053 = vmatpush1.msra.mxu0 0.0
    %1054 = vmatprep.subr.mxu0 0.0
    %1055 = vmatpush1.msra.mxu0 0.0
    %1056 = vmatprep.subr.mxu0 0.0
    %1057 = vmatpush1.msra.mxu0 0.0
    %1058 = vmatprep.subr.mxu0 0.0
    %1059 = vmatpush1.msra.mxu0 0.0
    %1060 = vmatprep.subr.mxu0 0.0
    %1061 = vmatpush1.msra.mxu0 %v68
    %1062 = vmatprep.subr.mxu0 0.0
    %1063 = vmatpush2.msra.mxu0 0.0
    %1064 = vmatprep.subr.mxu0 0.0
    %1065 = vmatpush2.msra.mxu0 0.0
    %1066 = vmatprep.subr.mxu0 0.0
    %1067 = vmatpush2.msra.mxu0 0.0
    %1068 = vmatprep.subr.mxu0 0.0
    %1069 = vmatpush2.msra.mxu0 0.0
    %1070 = vmatprep.subr.mxu0 0.0
    %1071 = vmatpush2.msra.mxu0 0.0
    %1072 = vmatprep.subr.mxu0 0.0
    %1073 = vmatpush2.msra.mxu0 0.0
    %1074 = vmatprep.subr.mxu0 0.0
    %1075 = vmatpush2.msra.mxu0 0.0
    %1076 = vmatprep.subr.mxu0 0.0
    %1077 = vmatpush2.msra.mxu0 0.0
    %1078 = vmatprep.subr.mxu0 0.0
    %1079 = vmatpush2.msra.mxu0 0.0
    %1080 = vmatprep.subr.mxu0 0.0
    %1081 = vmatpush2.msra.mxu0 0.0
    %1082 = vmatprep.subr.mxu0 0.0
    %1083 = vmatpush2.msra.mxu0 0.0
    %1084 = vmatprep.subr.mxu0 0.0
    %1085 = vmatpush2.msra.mxu0 0.0
    %1086 = vmatprep.subr.mxu0 0.0
    %1087 = vmatpush2.msra.mxu0 0.0
    %1088 = vmatprep.subr.mxu0 0.0
    %1089 = vmatpush2.msra.mxu0 0.0
    %1090 = vmatprep.subr.mxu0 0.0
    %1091 = vmatpush2.msra.mxu0 0.0
    %1092 = vmatprep.subr.mxu0 0.0
    %1093 = vmatpush2.msra.mxu0 0.0
    %1094 = vmatprep.mubr.f32.mxu0 0.0
    %1095 = vmatmul.mubr.f32.gmra.mxu0 %v1025
    %v1096 = vpop.f32.mrf.mxu0
    %v1097 = vadd.f32 0.0, %v1096
    %v1098 = vpop.f32.mrf.mxu0
    %1099 = vmatprep.mubr.f32.mxu0 0.0
    %1100 = vmatmul.mubr.f32.gmra.mxu0 %v1028
    %v1101 = vpop.f32.mrf.mxu0
    %v1102 = vadd.f32 0.0, %v1101
    %v1103 = vpop.f32.mrf.mxu0
    %1104 = vdwg.mxu0
    %v1105 = vmul.f32 %v1097, %v43
    %v1106 = vmul.f32 %v1102, %v44
    %v1107 = vadd.f32 %v1022, %v1105
    %v1108 = vadd.f32 %v1023, %v1106
    %v1109 = vmul.f32 %v926, %v41
    %v1110 = vmul.f32 %v931, %v42
    %v1112 = vsel %vm383, %v926, 0
    %v1115 = vsel %vm383, %v931, 0
    %1117 = vmatprep.subr.mxu0 0.0
    %1118 = vmatpush1.msra.mxu0 0.0
    %1119 = vmatprep.subr.mxu0 0.0
    %1120 = vmatpush1.msra.mxu0 0.0
    %1121 = vmatprep.subr.mxu0 0.0
    %1122 = vmatpush1.msra.mxu0 0.0
    %1123 = vmatprep.subr.mxu0 0.0
    %1124 = vmatpush1.msra.mxu0 0.0
    %1125 = vmatprep.subr.mxu0 0.0
    %1126 = vmatpush1.msra.mxu0 0.0
    %1127 = vmatprep.subr.mxu0 0.0
    %1128 = vmatpush1.msra.mxu0 0.0
    %1129 = vmatprep.subr.mxu0 0.0
    %1130 = vmatpush1.msra.mxu0 0.0
    %1131 = vmatprep.subr.mxu0 0.0
    %1132 = vmatpush1.msra.mxu0 0.0
    %1133 = vmatprep.subr.mxu0 0.0
    %1134 = vmatpush1.msra.mxu0 0.0
    %1135 = vmatprep.subr.mxu0 0.0
    %1136 = vmatpush1.msra.mxu0 0.0
    %1137 = vmatprep.subr.mxu0 0.0
    %1138 = vmatpush1.msra.mxu0 0.0
    %1139 = vmatprep.subr.mxu0 0.0
    %1140 = vmatpush1.msra.mxu0 0.0
    %1141 = vmatprep.subr.mxu0 0.0
    %1142 = vmatpush1.msra.mxu0 0.0
    %1143 = vmatprep.subr.mxu0 0.0
    %1144 = vmatpush1.msra.mxu0 0.0
    %1145 = vmatprep.subr.mxu0 0.0
    %1146 = vmatpush1.msra.mxu0 0.0
    %1147 = vmatprep.subr.mxu0 0.0
    %1148 = vmatpush1.msra.mxu0 %v68
    %1149 = vmatprep.subr.mxu0 0.0
    %1150 = vmatpush2.msra.mxu0 0.0
    %1151 = vmatprep.subr.mxu0 0.0
    %1152 = vmatpush2.msra.mxu0 0.0
    %1153 = vmatprep.subr.mxu0 0.0
    %1154 = vmatpush2.msra.mxu0 0.0
    %1155 = vmatprep.subr.mxu0 0.0
    %1156 = vmatpush2.msra.mxu0 0.0
    %1157 = vmatprep.subr.mxu0 0.0
    %1158 = vmatpush2.msra.mxu0 0.0
    %1159 = vmatprep.subr.mxu0 0.0
    %1160 = vmatpush2.msra.mxu0 0.0
    %1161 = vmatprep.subr.mxu0 0.0
    %1162 = vmatpush2.msra.mxu0 0.0
    %1163 = vmatprep.subr.mxu0 0.0
    %1164 = vmatpush2.msra.mxu0 0.0
    %1165 = vmatprep.subr.mxu0 0.0
    %1166 = vmatpush2.msra.mxu0 0.0
    %1167 = vmatprep.subr.mxu0 0.0
    %1168 = vmatpush2.msra.mxu0 0.0
    %1169 = vmatprep.subr.mxu0 0.0
    %1170 = vmatpush2.msra.mxu0 0.0
    %1171 = vmatprep.subr.mxu0 0.0
    %1172 = vmatpush2.msra.mxu0 0.0
    %1173 = vmatprep.subr.mxu0 0.0
    %1174 = vmatpush2.msra.mxu0 0.0
    %1175 = vmatprep.subr.mxu0 0.0
    %1176 = vmatpush2.msra.mxu0 0.0
    %1177 = vmatprep.subr.mxu0 0.0
    %1178 = vmatpush2.msra.mxu0 0.0
    %1179 = vmatprep.subr.mxu0 0.0
    %1180 = vmatpush2.msra.mxu0 0.0
    %1181 = vmatprep.mubr.f32.mxu0 0.0
    %1182 = vmatmul.mubr.f32.gmra.mxu0 %v1112
    %v1183 = vpop.f32.mrf.mxu0
    %v1184 = vadd.f32 0.0, %v1183
    %v1185 = vpop.f32.mrf.mxu0
    %1186 = vmatprep.mubr.f32.mxu0 0.0
    %1187 = vmatmul.mubr.f32.gmra.mxu0 %v1115
    %v1188 = vpop.f32.mrf.mxu0
    %v1189 = vadd.f32 0.0, %v1188
    %v1190 = vpop.f32.mrf.mxu0
    %1191 = vdwg.mxu0
    %v1192 = vmul.f32 %v1184, %v43
    %v1193 = vmul.f32 %v1189, %v44
    %v1194 = vadd.f32 %v1109, %v1192
    %v1195 = vadd.f32 %v1110, %v1193
    %v1197 = vsel %vm383, %v1107, 0
    %v1200 = vsel %vm383, %v1108, 0
    %v1203 = vsel %vm383, %v1194, 0
    %v1206 = vsel %vm383, %v1195, 0
    %1208 = vmatprep.subr.mxu0 0.0
    %1209 = vmatpush1.xpose.msra.mxu0 0.0
    %1210 = vmatprep.subr.mxu0 0.0
    %1211 = vmatpush1.xpose.msra.mxu0 0.0
    %1212 = vmatprep.subr.mxu0 0.0
    %1213 = vmatpush1.xpose.msra.mxu0 0.0
    %1214 = vmatprep.subr.mxu0 0.0
    %1215 = vmatpush1.xpose.msra.mxu0 0.0
    %1216 = vmatprep.subr.mxu0 0.0
    %1217 = vmatpush1.xpose.msra.mxu0 0.0
    %1218 = vmatprep.subr.mxu0 0.0
    %1219 = vmatpush1.xpose.msra.mxu0 0.0
    %1220 = vmatprep.subr.mxu0 0.0
    %1221 = vmatpush1.xpose.msra.mxu0 0.0
    %1222 = vmatprep.subr.mxu0 0.0
    %1223 = vmatpush1.xpose.msra.mxu0 0.0
    %1224 = vmatprep.subr.mxu0 0.0
    %1225 = vmatpush1.xpose.msra.mxu0 0.0
    %1226 = vmatprep.subr.mxu0 0.0
    %1227 = vmatpush1.xpose.msra.mxu0 0.0
    %1228 = vmatprep.subr.mxu0 0.0
    %1229 = vmatpush1.xpose.msra.mxu0 0.0
    %1230 = vmatprep.subr.mxu0 0.0
    %1231 = vmatpush1.xpose.msra.mxu0 0.0
    %1232 = vmatprep.subr.mxu0 0.0
    %1233 = vmatpush1.xpose.msra.mxu0 0.0
    %1234 = vmatprep.subr.mxu0 0.0
    %1235 = vmatpush1.xpose.msra.mxu0 0.0
    %1236 = vmatprep.subr.mxu0 0.0
    %1237 = vmatpush1.xpose.msra.mxu0 %v1206
    %1238 = vmatprep.subr.mxu0 0.0
    %1239 = vmatpush1.xpose.msra.mxu0 %v1203
    %1240 = vmatprep.subr.mxu0 0.0
    %1241 = vmatpush2.xpose.msra.mxu0 0.0
    %1242 = vmatprep.subr.mxu0 0.0
    %1243 = vmatpush2.xpose.msra.mxu0 0.0
    %1244 = vmatprep.subr.mxu0 0.0
    %1245 = vmatpush2.xpose.msra.mxu0 0.0
    %1246 = vmatprep.subr.mxu0 0.0
    %1247 = vmatpush2.xpose.msra.mxu0 0.0
    %1248 = vmatprep.subr.mxu0 0.0
    %1249 = vmatpush2.xpose.msra.mxu0 0.0
    %1250 = vmatprep.subr.mxu0 0.0
    %1251 = vmatpush2.xpose.msra.mxu0 0.0
    %1252 = vmatprep.subr.mxu0 0.0
    %1253 = vmatpush2.xpose.msra.mxu0 0.0
    %1254 = vmatprep.subr.mxu0 0.0
    %1255 = vmatpush2.xpose.msra.mxu0 0.0
    %1256 = vmatprep.subr.mxu0 0.0
    %1257 = vmatpush2.xpose.msra.mxu0 0.0
    %1258 = vmatprep.subr.mxu0 0.0
    %1259 = vmatpush2.xpose.msra.mxu0 0.0
    %1260 = vmatprep.subr.mxu0 0.0
    %1261 = vmatpush2.xpose.msra.mxu0 0.0
    %1262 = vmatprep.subr.mxu0 0.0
    %1263 = vmatpush2.xpose.msra.mxu0 0.0
    %1264 = vmatprep.subr.mxu0 0.0
    %1265 = vmatpush2.xpose.msra.mxu0 0.0
    %1266 = vmatprep.subr.mxu0 0.0
    %1267 = vmatpush2.xpose.msra.mxu0 0.0
    %1268 = vmatprep.subr.mxu0 0.0
    %1269 = vmatpush2.xpose.msra.mxu0 0.0
    %1270 = vmatprep.subr.mxu0 0.0
    %1271 = vmatpush2.xpose.msra.mxu0 0.0
    %1272 = vmatprep.mubr.f32.mxu0 0.0
    %1273 = vmatmul.mubr.f32.gmra.mxu0 %v1197
    %v1274 = vpop.f32.mrf.mxu0
    %v1275 = vadd.f32 0.0, %v1274
    %v1276 = vpop.f32.mrf.mxu0
    %1277 = vmatprep.mubr.f32.mxu0 0.0
    %1278 = vmatmul.mubr.f32.gmra.mxu0 %v1200
    %v1279 = vpop.f32.mrf.mxu0
    %v1280 = vadd.f32 0.0, %v1279
    %v1281 = vpop.f32.mrf.mxu0
    %1282 = vdwg.mxu0
    %v1283 = vmul.f32 %v1275, 0.35355338
    %v1284 = vmul.f32 %v1280, 0.35355338
    %v1285 = vadd.f32 %v1283, %v45
    %v1286 = vadd.f32 %v1284, %v46
    %v1287 = vsel %vm647, %v1285, -inf
    %1288 = vmax.xlane.f32.xlu0 %v1287
    %v1289 = vpop.xlane.xlu0 %1288
    %v1290 = vsel %vm647, %v1286, -inf
    %1291 = vmax.xlane.f32.xlu0 %v1290
    %v1292 = vpop.xlane.xlu0 %1291
    %v1293 = vsub.f32 %v1285, %v1289
    %v1294 = vsub.f32 %v1286, %v1292
    %v1295 = vmul.f32 %v1293, 1.442695
    %v1296 = vpow.pop %v1295
    %v1297 = vmul.f32 %v1294, 1.442695
    %v1298 = vpow.pop %v1297
    %v1299 = vsel %vm647, %v1296, 0.0
    %1300 = vadd.xlane.f32.xlu0 %v1299
    %v1301 = vpop.xlane.xlu0 %1300
    %v1302 = vsel %vm647, %v1298, 0.0
    %1303 = vadd.xlane.f32.xlu0 %v1302
    %v1304 = vpop.xlane.xlu0 %1303
    %v1305 = vrcp.pop %v1301
    %v1306 = vrcp.pop %v1304
    %v1307 = vmul.f32 %v1301, %v1305
    %v1308 = vmul.f32 %v1304, %v1306
    %v1309 = vsub.f32 2.0, %v1307
    %v1310 = vsub.f32 2.0, %v1308
    %v1311 = vmul.f32 %v1305, %v1309
    %v1312 = vmul.f32 %v1306, %v1310
    %v1313 = vmul.f32 %v1296, %v1311
    %v1314 = vmul.f32 %v1298, %v1312
    %v1316 = vsel %vm647, %v1313, 0
    %v1319 = vsel %vm647, %v1314, 0
    %1321 = vmatprep.subr.mxu0 0.0
    %1322 = vmatpush1.msra.mxu0 0.0
    %1323 = vmatprep.subr.mxu0 0.0
    %1324 = vmatpush1.msra.mxu0 0.0
    %1325 = vmatprep.subr.mxu0 0.0
    %1326 = vmatpush1.msra.mxu0 0.0
    %1327 = vmatprep.subr.mxu0 0.0
    %1328 = vmatpush1.msra.mxu0 0.0
    %1329 = vmatprep.subr.mxu0 0.0
    %1330 = vmatpush1.msra.mxu0 0.0
    %1331 = vmatprep.subr.mxu0 0.0
    %1332 = vmatpush1.msra.mxu0 0.0
    %1333 = vmatprep.subr.mxu0 0.0
    %1334 = vmatpush1.msra.mxu0 0.0
    %1335 = vmatprep.subr.mxu0 0.0
    %1336 = vmatpush1.msra.mxu0 0.0
    %1337 = vmatprep.subr.mxu0 0.0
    %1338 = vmatpush1.msra.mxu0 0.0
    %1339 = vmatprep.subr.mxu0 0.0
    %1340 = vmatpush1.msra.mxu0 0.0
    %1341 = vmatprep.subr.mxu0 0.0
    %1342 = vmatpush1.msra.mxu0 0.0
    %1343 = vmatprep.subr.mxu0 0.0
    %1344 = vmatpush1.msra.mxu0 0.0
    %1345 = vmatprep.subr.mxu0 0.0
    %1346 = vmatpush1.msra.mxu0 0.0
    %1347 = vmatprep.subr.mxu0 0.0
    %1348 = vmatpush1.msra.mxu0 0.0
    %1349 = vmatprep.subr.mxu0 0.0
    %1350 = vmatpush1.msra.mxu0 %v1019
    %1351 = vmatprep.subr.mxu0 0.0
    %1352 = vmatpush1.msra.mxu0 %v1014
    %1353 = vmatprep.subr.mxu0 0.0
    %1354 = vmatpush2.msra.mxu0 0.0
    %1355 = vmatprep.subr.mxu0 0.0
    %1356 = vmatpush2.msra.mxu0 0.0
    %1357 = vmatprep.subr.mxu0 0.0
    %1358 = vmatpush2.msra.mxu0 0.0
    %1359 = vmatprep.subr.mxu0 0.0
    %1360 = vmatpush2.msra.mxu0 0.0
    %1361 = vmatprep.subr.mxu0 0.0
    %1362 = vmatpush2.msra.mxu0 0.0
    %1363 = vmatprep.subr.mxu0 0.0
    %1364 = vmatpush2.msra.mxu0 0.0
    %1365 = vmatprep.subr.mxu0 0.0
    %1366 = vmatpush2.msra.mxu0 0.0
    %1367 = vmatprep.subr.mxu0 0.0
    %1368 = vmatpush2.msra.mxu0 0.0
    %1369 = vmatprep.subr.mxu0 0.0
    %1370 = vmatpush2.msra.mxu0 0.0
    %1371 = vmatprep.subr.mxu0 0.0
    %1372 = vmatpush2.msra.mxu0 0.0
    %1373 = vmatprep.subr.mxu0 0.0
    %1374 = vmatpush2.msra.mxu0 0.0
    %1375 = vmatprep.subr.mxu0 0.0
    %1376 = vmatpush2.msra.mxu0 0.0
    %1377 = vmatprep.subr.mxu0 0.0
    %1378 = vmatpush2.msra.mxu0 0.0
    %1379 = vmatprep.subr.mxu0 0.0
    %1380 = vmatpush2.msra.mxu0 0.0
    %1381 = vmatprep.subr.mxu0 0.0
    %1382 = vmatpush2.msra.mxu0 0.0
    %1383 = vmatprep.subr.mxu0 0.0
    %1384 = vmatpush2.msra.mxu0 0.0
    %1385 = vmatprep.mubr.f32.mxu0 0.0
    %1386 = vmatmul.mubr.f32.gmra.mxu0 %v1316
    %v1387 = vpop.f32.mrf.mxu0
    %v1388 = vadd.f32 0.0, %v1387
    %v1389 = vpop.f32.mrf.mxu0
    %1390 = vmatprep.mubr.f32.mxu0 0.0
    %1391 = vmatmul.mubr.f32.gmra.mxu0 %v1319
    %v1392 = vpop.f32.mrf.mxu0
    %v1393 = vadd.f32 0.0, %v1392
    %v1394 = vpop.f32.mrf.mxu0
    %1395 = vdwg.mxu0
    %s1396 = scalar_lea.vmem %s6, 8
    %v1397 = vld [vmem:[%s1396] sm:$0xff]
    %v1399 = vsel %vm383, %v1388, 0
    %v1402 = vsel %vm383, %v1393, 0
    %1404 = vmatprep.subr.mxu0 0.0
    %1405 = vmatpush1.msra.mxu0 0.0
    %1406 = vmatprep.subr.mxu0 0.0
    %1407 = vmatpush1.msra.mxu0 0.0
    %1408 = vmatprep.subr.mxu0 0.0
    %1409 = vmatpush1.msra.mxu0 0.0
    %1410 = vmatprep.subr.mxu0 0.0
    %1411 = vmatpush1.msra.mxu0 0.0
    %1412 = vmatprep.subr.mxu0 0.0
    %1413 = vmatpush1.msra.mxu0 0.0
    %1414 = vmatprep.subr.mxu0 0.0
    %1415 = vmatpush1.msra.mxu0 0.0
    %1416 = vmatprep.subr.mxu0 0.0
    %1417 = vmatpush1.msra.mxu0 0.0
    %1418 = vmatprep.subr.mxu0 0.0
    %1419 = vmatpush1.msra.mxu0 0.0
    %1420 = vmatprep.subr.mxu0 0.0
    %1421 = vmatpush1.msra.mxu0 0.0
    %1422 = vmatprep.subr.mxu0 0.0
    %1423 = vmatpush1.msra.mxu0 0.0
    %1424 = vmatprep.subr.mxu0 0.0
    %1425 = vmatpush1.msra.mxu0 0.0
    %1426 = vmatprep.subr.mxu0 0.0
    %1427 = vmatpush1.msra.mxu0 0.0
    %1428 = vmatprep.subr.mxu0 0.0
    %1429 = vmatpush1.msra.mxu0 0.0
    %1430 = vmatprep.subr.mxu0 0.0
    %1431 = vmatpush1.msra.mxu0 0.0
    %1432 = vmatprep.subr.mxu0 0.0
    %1433 = vmatpush1.msra.mxu0 0.0
    %1434 = vmatprep.subr.mxu0 0.0
    %1435 = vmatpush1.msra.mxu0 %v1397
    %1436 = vmatprep.subr.mxu0 0.0
    %1437 = vmatpush2.msra.mxu0 0.0
    %1438 = vmatprep.subr.mxu0 0.0
    %1439 = vmatpush2.msra.mxu0 0.0
    %1440 = vmatprep.subr.mxu0 0.0
    %1441 = vmatpush2.msra.mxu0 0.0
    %1442 = vmatprep.subr.mxu0 0.0
    %1443 = vmatpush2.msra.mxu0 0.0
    %1444 = vmatprep.subr.mxu0 0.0
    %1445 = vmatpush2.msra.mxu0 0.0
    %1446 = vmatprep.subr.mxu0 0.0
    %1447 = vmatpush2.msra.mxu0 0.0
    %1448 = vmatprep.subr.mxu0 0.0
    %1449 = vmatpush2.msra.mxu0 0.0
    %1450 = vmatprep.subr.mxu0 0.0
    %1451 = vmatpush2.msra.mxu0 0.0
    %1452 = vmatprep.subr.mxu0 0.0
    %1453 = vmatpush2.msra.mxu0 0.0
    %1454 = vmatprep.subr.mxu0 0.0
    %1455 = vmatpush2.msra.mxu0 0.0
    %1456 = vmatprep.subr.mxu0 0.0
    %1457 = vmatpush2.msra.mxu0 0.0
    %1458 = vmatprep.subr.mxu0 0.0
    %1459 = vmatpush2.msra.mxu0 0.0
    %1460 = vmatprep.subr.mxu0 0.0
    %1461 = vmatpush2.msra.mxu0 0.0
    %1462 = vmatprep.subr.mxu0 0.0
    %1463 = vmatpush2.msra.mxu0 0.0
    %1464 = vmatprep.subr.mxu0 0.0
    %1465 = vmatpush2.msra.mxu0 0.0
    %1466 = vmatprep.subr.mxu0 0.0
    %1467 = vmatpush2.msra.mxu0 0.0
    %1468 = vmatprep.mubr.f32.mxu0 0.0
    %1469 = vmatmul.mubr.f32.gmra.mxu0 %v1399
    %v1470 = vpop.f32.mrf.mxu0
    %v1471 = vadd.f32 0.0, %v1470
    %v1472 = vpop.f32.mrf.mxu0
    %1473 = vmatprep.mubr.f32.mxu0 0.0
    %1474 = vmatmul.mubr.f32.gmra.mxu0 %v1402
    %v1475 = vpop.f32.mrf.mxu0
    %v1476 = vadd.f32 0.0, %v1475
    %v1477 = vpop.f32.mrf.mxu0
    %1478 = vdwg.mxu0
    %v1480 = vsel %vm383, %v749, 0
    %v1483 = vsel %vm383, %v754, 0
    %1485 = vmatprep.subr.mxu0 0.0
    %1486 = vmatpush1.msra.mxu0 0.0
    %1487 = vmatprep.subr.mxu0 0.0
    %1488 = vmatpush1.msra.mxu0 0.0
    %1489 = vmatprep.subr.mxu0 0.0
    %1490 = vmatpush1.msra.mxu0 0.0
    %1491 = vmatprep.subr.mxu0 0.0
    %1492 = vmatpush1.msra.mxu0 0.0
    %1493 = vmatprep.subr.mxu0 0.0
    %1494 = vmatpush1.msra.mxu0 0.0
    %1495 = vmatprep.subr.mxu0 0.0
    %1496 = vmatpush1.msra.mxu0 0.0
    %1497 = vmatprep.subr.mxu0 0.0
    %1498 = vmatpush1.msra.mxu0 0.0
    %1499 = vmatprep.subr.mxu0 0.0
    %1500 = vmatpush1.msra.mxu0 0.0
    %1501 = vmatprep.subr.mxu0 0.0
    %1502 = vmatpush1.msra.mxu0 0.0
    %1503 = vmatprep.subr.mxu0 0.0
    %1504 = vmatpush1.msra.mxu0 0.0
    %1505 = vmatprep.subr.mxu0 0.0
    %1506 = vmatpush1.msra.mxu0 0.0
    %1507 = vmatprep.subr.mxu0 0.0
    %1508 = vmatpush1.msra.mxu0 0.0
    %1509 = vmatprep.subr.mxu0 0.0
    %1510 = vmatpush1.msra.mxu0 0.0
    %1511 = vmatprep.subr.mxu0 0.0
    %1512 = vmatpush1.msra.mxu0 0.0
    %1513 = vmatprep.subr.mxu0 0.0
    %1514 = vmatpush1.msra.mxu0 0.0
    %1515 = vmatprep.subr.mxu0 0.0
    %1516 = vmatpush1.msra.mxu0 %v757
    %1517 = vmatprep.subr.mxu0 0.0
    %1518 = vmatpush2.msra.mxu0 0.0
    %1519 = vmatprep.subr.mxu0 0.0
    %1520 = vmatpush2.msra.mxu0 0.0
    %1521 = vmatprep.subr.mxu0 0.0
    %1522 = vmatpush2.msra.mxu0 0.0
    %1523 = vmatprep.subr.mxu0 0.0
    %1524 = vmatpush2.msra.mxu0 0.0
    %1525 = vmatprep.subr.mxu0 0.0
    %1526 = vmatpush2.msra.mxu0 0.0
    %1527 = vmatprep.subr.mxu0 0.0
    %1528 = vmatpush2.msra.mxu0 0.0
    %1529 = vmatprep.subr.mxu0 0.0
    %1530 = vmatpush2.msra.mxu0 0.0
    %1531 = vmatprep.subr.mxu0 0.0
    %1532 = vmatpush2.msra.mxu0 0.0
    %1533 = vmatprep.subr.mxu0 0.0
    %1534 = vmatpush2.msra.mxu0 0.0
    %1535 = vmatprep.subr.mxu0 0.0
    %1536 = vmatpush2.msra.mxu0 0.0
    %1537 = vmatprep.subr.mxu0 0.0
    %1538 = vmatpush2.msra.mxu0 0.0
    %1539 = vmatprep.subr.mxu0 0.0
    %1540 = vmatpush2.msra.mxu0 0.0
    %1541 = vmatprep.subr.mxu0 0.0
    %1542 = vmatpush2.msra.mxu0 0.0
    %1543 = vmatprep.subr.mxu0 0.0
    %1544 = vmatpush2.msra.mxu0 0.0
    %1545 = vmatprep.subr.mxu0 0.0
    %1546 = vmatpush2.msra.mxu0 0.0
    %1547 = vmatprep.subr.mxu0 0.0
    %1548 = vmatpush2.msra.mxu0 0.0
    %1549 = vmatprep.mubr.f32.mxu0 0.0
    %1550 = vmatmul.mubr.f32.gmra.mxu0 %v1480
    %v1551 = vpop.f32.mrf.mxu0
    %v1552 = vadd.f32 %v1471, %v1551
    %v1553 = vpop.f32.mrf.mxu0
    %1554 = vmatprep.mubr.f32.mxu0 0.0
    %1555 = vmatmul.mubr.f32.gmra.mxu0 %v1483
    %v1556 = vpop.f32.mrf.mxu0
    %v1557 = vadd.f32 %v1476, %v1556
    %v1558 = vpop.f32.mrf.mxu0
    %1559 = vdwg.mxu0
    %s1560 = scalar_lea.vmem %s4, 64
    %v1561 = vld [vmem:[%s1560] sm:$0xff]
    %v1562 = vld [vmem:[%s1560 + $0x8] sm:$0xff]
    %v1563 = vld [vmem:[%s1560 + $0x10] sm:$0xff]
    %v1564 = vld [vmem:[%s1560 + $0x18] sm:$0xff]
    %s1565 = scalar_lea.vmem %s5, 2
    %v1566 = vld [vmem:[%s1565] sm:$0x1]
    %v1568 = vlaneseq
    %v1569 = vshrl.u32 %v1568, 7
    %v1570 = vsub.s32 0, %v1569
    %v1571 = vrot.slane %v1566, %v1570
    %1573 = vmatprep.subr.mxu0 0.0
    %1574 = vmatpush1.msra.mxu0 0.0
    %1575 = vmatprep.subr.mxu0 0.0
    %1576 = vmatpush1.msra.mxu0 0.0
    %1577 = vmatprep.subr.mxu0 0.0
    %1578 = vmatpush1.msra.mxu0 0.0
    %1579 = vmatprep.subr.mxu0 0.0
    %1580 = vmatpush1.msra.mxu0 0.0
    %1581 = vmatprep.subr.mxu0 0.0
    %1582 = vmatpush1.msra.mxu0 0.0
    %1583 = vmatprep.subr.mxu0 0.0
    %1584 = vmatpush1.msra.mxu0 0.0
    %1585 = vmatprep.subr.mxu0 0.0
    %1586 = vmatpush1.msra.mxu0 0.0
    %1587 = vmatprep.subr.mxu0 0.0
    %1588 = vmatpush1.msra.mxu0 0.0
    %1589 = vmatprep.subr.mxu0 0.0
    %1590 = vmatpush1.msra.mxu0 0.0
    %1591 = vmatprep.subr.mxu0 0.0
    %1592 = vmatpush1.msra.mxu0 0.0
    %1593 = vmatprep.subr.mxu0 0.0
    %1594 = vmatpush1.msra.mxu0 0.0
    %1595 = vmatprep.subr.mxu0 0.0
    %1596 = vmatpush1.msra.mxu0 0.0
    %1597 = vmatprep.subr.mxu0 0.0
    %1598 = vmatpush1.msra.mxu0 %v1564
    %1599 = vmatprep.subr.mxu0 0.0
    %1600 = vmatpush1.msra.mxu0 %v1563
    %1601 = vmatprep.subr.mxu0 0.0
    %1602 = vmatpush1.msra.mxu0 %v1562
    %1603 = vmatprep.subr.mxu0 0.0
    %1604 = vmatpush1.msra.mxu0 %v1561
    %1605 = vmatprep.subr.mxu0 0.0
    %1606 = vmatpush2.msra.mxu0 0.0
    %1607 = vmatprep.subr.mxu0 0.0
    %1608 = vmatpush2.msra.mxu0 0.0
    %1609 = vmatprep.subr.mxu0 0.0
    %1610 = vmatpush2.msra.mxu0 0.0
    %1611 = vmatprep.subr.mxu0 0.0
    %1612 = vmatpush2.msra.mxu0 0.0
    %1613 = vmatprep.subr.mxu0 0.0
    %1614 = vmatpush2.msra.mxu0 0.0
    %1615 = vmatprep.subr.mxu0 0.0
    %1616 = vmatpush2.msra.mxu0 0.0
    %1617 = vmatprep.subr.mxu0 0.0
    %1618 = vmatpush2.msra.mxu0 0.0
    %1619 = vmatprep.subr.mxu0 0.0
    %1620 = vmatpush2.msra.mxu0 0.0
    %1621 = vmatprep.subr.mxu0 0.0
    %1622 = vmatpush2.msra.mxu0 0.0
    %1623 = vmatprep.subr.mxu0 0.0
    %1624 = vmatpush2.msra.mxu0 0.0
    %1625 = vmatprep.subr.mxu0 0.0
    %1626 = vmatpush2.msra.mxu0 0.0
    %1627 = vmatprep.subr.mxu0 0.0
    %1628 = vmatpush2.msra.mxu0 0.0
    %1629 = vmatprep.subr.mxu0 0.0
    %1630 = vmatpush2.msra.mxu0 0.0
    %1631 = vmatprep.subr.mxu0 0.0
    %1632 = vmatpush2.msra.mxu0 0.0
    %1633 = vmatprep.subr.mxu0 0.0
    %1634 = vmatpush2.msra.mxu0 0.0
    %1635 = vmatprep.subr.mxu0 0.0
    %1636 = vmatpush2.msra.mxu0 0.0
    %1637 = vmatprep.mubr.f32.mxu0 0.0
    %1638 = vmatmul.mubr.f32.gmra.mxu0 %v125
    %v1639 = vpop.f32.mrf.mxu0
    %v1640 = vadd.f32 %v1571, %v1639
    %v1641 = vpop.f32.mrf.mxu0
    %1642 = vmatprep.mubr.f32.mxu0 0.0
    %1643 = vmatmul.mubr.f32.gmra.mxu0 %v128
    %v1644 = vpop.f32.mrf.mxu0
    %v1645 = vadd.f32 %v1571, %v1644
    %v1646 = vpop.f32.mrf.mxu0
    %1647 = vdwg.mxu0
    %s1648 = scalar_lea.vmem %s4, 192
    %v1649 = vld [vmem:[%s1648] sm:$0xff]
    %v1650 = vld [vmem:[%s1648 + $0x8] sm:$0xff]
    %v1651 = vld [vmem:[%s1648 + $0x10] sm:$0xff]
    %v1652 = vld [vmem:[%s1648 + $0x18] sm:$0xff]
    %s1653 = scalar_lea.vmem %s5, 6
    %v1654 = vld [vmem:[%s1653] sm:$0x1]
    %v1656 = vlaneseq
    %v1657 = vshrl.u32 %v1656, 7
    %v1658 = vsub.s32 0, %v1657
    %v1659 = vrot.slane %v1654, %v1658
    %1661 = vmatprep.subr.mxu0 0.0
    %1662 = vmatpush1.msra.mxu0 0.0
    %1663 = vmatprep.subr.mxu0 0.0
    %1664 = vmatpush1.msra.mxu0 0.0
    %1665 = vmatprep.subr.mxu0 0.0
    %1666 = vmatpush1.msra.mxu0 0.0
    %1667 = vmatprep.subr.mxu0 0.0
    %1668 = vmatpush1.msra.mxu0 0.0
    %1669 = vmatprep.subr.mxu0 0.0
    %1670 = vmatpush1.msra.mxu0 0.0
    %1671 = vmatprep.subr.mxu0 0.0
    %1672 = vmatpush1.msra.mxu0 0.0
    %1673 = vmatprep.subr.mxu0 0.0
    %1674 = vmatpush1.msra.mxu0 0.0
    %1675 = vmatprep.subr.mxu0 0.0
    %1676 = vmatpush1.msra.mxu0 0.0
    %1677 = vmatprep.subr.mxu0 0.0
    %1678 = vmatpush1.msra.mxu0 0.0
    %1679 = vmatprep.subr.mxu0 0.0
    %1680 = vmatpush1.msra.mxu0 0.0
    %1681 = vmatprep.subr.mxu0 0.0
    %1682 = vmatpush1.msra.mxu0 0.0
    %1683 = vmatprep.subr.mxu0 0.0
    %1684 = vmatpush1.msra.mxu0 0.0
    %1685 = vmatprep.subr.mxu0 0.0
    %1686 = vmatpush1.msra.mxu0 %v1652
    %1687 = vmatprep.subr.mxu0 0.0
    %1688 = vmatpush1.msra.mxu0 %v1651
    %1689 = vmatprep.subr.mxu0 0.0
    %1690 = vmatpush1.msra.mxu0 %v1650
    %1691 = vmatprep.subr.mxu0 0.0
    %1692 = vmatpush1.msra.mxu0 %v1649
    %1693 = vmatprep.subr.mxu0 0.0
    %1694 = vmatpush2.msra.mxu0 0.0
    %1695 = vmatprep.subr.mxu0 0.0
    %1696 = vmatpush2.msra.mxu0 0.0
    %1697 = vmatprep.subr.mxu0 0.0
    %1698 = vmatpush2.msra.mxu0 0.0
    %1699 = vmatprep.subr.mxu0 0.0
    %1700 = vmatpush2.msra.mxu0 0.0
    %1701 = vmatprep.subr.mxu0 0.0
    %1702 = vmatpush2.msra.mxu0 0.0
    %1703 = vmatprep.subr.mxu0 0.0
    %1704 = vmatpush2.msra.mxu0 0.0
    %1705 = vmatprep.subr.mxu0 0.0
    %1706 = vmatpush2.msra.mxu0 0.0
    %1707 = vmatprep.subr.mxu0 0.0
    %1708 = vmatpush2.msra.mxu0 0.0
    %1709 = vmatprep.subr.mxu0 0.0
    %1710 = vmatpush2.msra.mxu0 0.0
    %1711 = vmatprep.subr.mxu0 0.0
    %1712 = vmatpush2.msra.mxu0 0.0
    %1713 = vmatprep.subr.mxu0 0.0
    %1714 = vmatpush2.msra.mxu0 0.0
    %1715 = vmatprep.subr.mxu0 0.0
    %1716 = vmatpush2.msra.mxu0 0.0
    %1717 = vmatprep.subr.mxu0 0.0
    %1718 = vmatpush2.msra.mxu0 0.0
    %1719 = vmatprep.subr.mxu0 0.0
    %1720 = vmatpush2.msra.mxu0 0.0
    %1721 = vmatprep.subr.mxu0 0.0
    %1722 = vmatpush2.msra.mxu0 0.0
    %1723 = vmatprep.subr.mxu0 0.0
    %1724 = vmatpush2.msra.mxu0 0.0
    %1725 = vmatprep.mubr.f32.mxu0 0.0
    %1726 = vmatmul.mubr.f32.gmra.mxu0 %v125
    %v1727 = vpop.f32.mrf.mxu0
    %v1728 = vadd.f32 %v1659, %v1727
    %v1729 = vpop.f32.mrf.mxu0
    %1730 = vmatprep.mubr.f32.mxu0 0.0
    %1731 = vmatmul.mubr.f32.gmra.mxu0 %v128
    %v1732 = vpop.f32.mrf.mxu0
    %v1733 = vadd.f32 %v1659, %v1732
    %v1734 = vpop.f32.mrf.mxu0
    %1735 = vdwg.mxu0
    %s1736 = scalar_lea.vmem %s4, 320
    %v1737 = vld [vmem:[%s1736] sm:$0xff]
    %v1738 = vld [vmem:[%s1736 + $0x8] sm:$0xff]
    %v1739 = vld [vmem:[%s1736 + $0x10] sm:$0xff]
    %v1740 = vld [vmem:[%s1736 + $0x18] sm:$0xff]
    %s1741 = scalar_lea.vmem %s5, 10
    %v1742 = vld [vmem:[%s1741] sm:$0x1]
    %v1744 = vlaneseq
    %v1745 = vshrl.u32 %v1744, 7
    %v1746 = vsub.s32 0, %v1745
    %v1747 = vrot.slane %v1742, %v1746
    %1749 = vmatprep.subr.mxu0 0.0
    %1750 = vmatpush1.msra.mxu0 0.0
    %1751 = vmatprep.subr.mxu0 0.0
    %1752 = vmatpush1.msra.mxu0 0.0
    %1753 = vmatprep.subr.mxu0 0.0
    %1754 = vmatpush1.msra.mxu0 0.0
    %1755 = vmatprep.subr.mxu0 0.0
    %1756 = vmatpush1.msra.mxu0 0.0
    %1757 = vmatprep.subr.mxu0 0.0
    %1758 = vmatpush1.msra.mxu0 0.0
    %1759 = vmatprep.subr.mxu0 0.0
    %1760 = vmatpush1.msra.mxu0 0.0
    %1761 = vmatprep.subr.mxu0 0.0
    %1762 = vmatpush1.msra.mxu0 0.0
    %1763 = vmatprep.subr.mxu0 0.0
    %1764 = vmatpush1.msra.mxu0 0.0
    %1765 = vmatprep.subr.mxu0 0.0
    %1766 = vmatpush1.msra.mxu0 0.0
    %1767 = vmatprep.subr.mxu0 0.0
    %1768 = vmatpush1.msra.mxu0 0.0
    %1769 = vmatprep.subr.mxu0 0.0
    %1770 = vmatpush1.msra.mxu0 0.0
    %1771 = vmatprep.subr.mxu0 0.0
    %1772 = vmatpush1.msra.mxu0 0.0
    %1773 = vmatprep.subr.mxu0 0.0
    %1774 = vmatpush1.msra.mxu0 %v1740
    %1775 = vmatprep.subr.mxu0 0.0
    %1776 = vmatpush1.msra.mxu0 %v1739
    %1777 = vmatprep.subr.mxu0 0.0
    %1778 = vmatpush1.msra.mxu0 %v1738
    %1779 = vmatprep.subr.mxu0 0.0
    %1780 = vmatpush1.msra.mxu0 %v1737
    %1781 = vmatprep.subr.mxu0 0.0
    %1782 = vmatpush2.msra.mxu0 0.0
    %1783 = vmatprep.subr.mxu0 0.0
    %1784 = vmatpush2.msra.mxu0 0.0
    %1785 = vmatprep.subr.mxu0 0.0
    %1786 = vmatpush2.msra.mxu0 0.0
    %1787 = vmatprep.subr.mxu0 0.0
    %1788 = vmatpush2.msra.mxu0 0.0
    %1789 = vmatprep.subr.mxu0 0.0
    %1790 = vmatpush2.msra.mxu0 0.0
    %1791 = vmatprep.subr.mxu0 0.0
    %1792 = vmatpush2.msra.mxu0 0.0
    %1793 = vmatprep.subr.mxu0 0.0
    %1794 = vmatpush2.msra.mxu0 0.0
    %1795 = vmatprep.subr.mxu0 0.0
    %1796 = vmatpush2.msra.mxu0 0.0
    %1797 = vmatprep.subr.mxu0 0.0
    %1798 = vmatpush2.msra.mxu0 0.0
    %1799 = vmatprep.subr.mxu0 0.0
    %1800 = vmatpush2.msra.mxu0 0.0
    %1801 = vmatprep.subr.mxu0 0.0
    %1802 = vmatpush2.msra.mxu0 0.0
    %1803 = vmatprep.subr.mxu0 0.0
    %1804 = vmatpush2.msra.mxu0 0.0
    %1805 = vmatprep.subr.mxu0 0.0
    %1806 = vmatpush2.msra.mxu0 0.0
    %1807 = vmatprep.subr.mxu0 0.0
    %1808 = vmatpush2.msra.mxu0 0.0
    %1809 = vmatprep.subr.mxu0 0.0
    %1810 = vmatpush2.msra.mxu0 0.0
    %1811 = vmatprep.subr.mxu0 0.0
    %1812 = vmatpush2.msra.mxu0 0.0
    %1813 = vmatprep.mubr.f32.mxu0 0.0
    %1814 = vmatmul.mubr.f32.gmra.mxu0 %v125
    %v1815 = vpop.f32.mrf.mxu0
    %v1816 = vadd.f32 %v1747, %v1815
    %v1817 = vpop.f32.mrf.mxu0
    %1818 = vmatprep.mubr.f32.mxu0 0.0
    %1819 = vmatmul.mubr.f32.gmra.mxu0 %v128
    %v1820 = vpop.f32.mrf.mxu0
    %v1821 = vadd.f32 %v1747, %v1820
    %v1822 = vpop.f32.mrf.mxu0
    %1823 = vdwg.mxu0
    %v1824 = vmul.f32 %v1640, %v41
    %v1825 = vmul.f32 %v1645, %v42
    %v1827 = vsel %vm383, %v1640, 0
    %v1830 = vsel %vm383, %v1645, 0
    %1832 = vmatprep.subr.mxu0 0.0
    %1833 = vmatpush1.msra.mxu0 0.0
    %1834 = vmatprep.subr.mxu0 0.0
    %1835 = vmatpush1.msra.mxu0 0.0
    %1836 = vmatprep.subr.mxu0 0.0
    %1837 = vmatpush1.msra.mxu0 0.0
    %1838 = vmatprep.subr.mxu0 0.0
    %1839 = vmatpush1.msra.mxu0 0.0
    %1840 = vmatprep.subr.mxu0 0.0
    %1841 = vmatpush1.msra.mxu0 0.0
    %1842 = vmatprep.subr.mxu0 0.0
    %1843 = vmatpush1.msra.mxu0 0.0
    %1844 = vmatprep.subr.mxu0 0.0
    %1845 = vmatpush1.msra.mxu0 0.0
    %1846 = vmatprep.subr.mxu0 0.0
    %1847 = vmatpush1.msra.mxu0 0.0
    %1848 = vmatprep.subr.mxu0 0.0
    %1849 = vmatpush1.msra.mxu0 0.0
    %1850 = vmatprep.subr.mxu0 0.0
    %1851 = vmatpush1.msra.mxu0 0.0
    %1852 = vmatprep.subr.mxu0 0.0
    %1853 = vmatpush1.msra.mxu0 0.0
    %1854 = vmatprep.subr.mxu0 0.0
    %1855 = vmatpush1.msra.mxu0 0.0
    %1856 = vmatprep.subr.mxu0 0.0
    %1857 = vmatpush1.msra.mxu0 0.0
    %1858 = vmatprep.subr.mxu0 0.0
    %1859 = vmatpush1.msra.mxu0 0.0
    %1860 = vmatprep.subr.mxu0 0.0
    %1861 = vmatpush1.msra.mxu0 0.0
    %1862 = vmatprep.subr.mxu0 0.0
    %1863 = vmatpush1.msra.mxu0 %v68
    %1864 = vmatprep.subr.mxu0 0.0
    %1865 = vmatpush2.msra.mxu0 0.0
    %1866 = vmatprep.subr.mxu0 0.0
    %1867 = vmatpush2.msra.mxu0 0.0
    %1868 = vmatprep.subr.mxu0 0.0
    %1869 = vmatpush2.msra.mxu0 0.0
    %1870 = vmatprep.subr.mxu0 0.0
    %1871 = vmatpush2.msra.mxu0 0.0
    %1872 = vmatprep.subr.mxu0 0.0
    %1873 = vmatpush2.msra.mxu0 0.0
    %1874 = vmatprep.subr.mxu0 0.0
    %1875 = vmatpush2.msra.mxu0 0.0
    %1876 = vmatprep.subr.mxu0 0.0
    %1877 = vmatpush2.msra.mxu0 0.0
    %1878 = vmatprep.subr.mxu0 0.0
    %1879 = vmatpush2.msra.mxu0 0.0
    %1880 = vmatprep.subr.mxu0 0.0
    %1881 = vmatpush2.msra.mxu0 0.0
    %1882 = vmatprep.subr.mxu0 0.0
    %1883 = vmatpush2.msra.mxu0 0.0
    %1884 = vmatprep.subr.mxu0 0.0
    %1885 = vmatpush2.msra.mxu0 0.0
    %1886 = vmatprep.subr.mxu0 0.0
    %1887 = vmatpush2.msra.mxu0 0.0
    %1888 = vmatprep.subr.mxu0 0.0
    %1889 = vmatpush2.msra.mxu0 0.0
    %1890 = vmatprep.subr.mxu0 0.0
    %1891 = vmatpush2.msra.mxu0 0.0
    %1892 = vmatprep.subr.mxu0 0.0
    %1893 = vmatpush2.msra.mxu0 0.0
    %1894 = vmatprep.subr.mxu0 0.0
    %1895 = vmatpush2.msra.mxu0 0.0
    %1896 = vmatprep.mubr.f32.mxu0 0.0
    %1897 = vmatmul.mubr.f32.gmra.mxu0 %v1827
    %v1898 = vpop.f32.mrf.mxu0
    %v1899 = vadd.f32 0.0, %v1898
    %v1900 = vpop.f32.mrf.mxu0
    %1901 = vmatprep.mubr.f32.mxu0 0.0
    %1902 = vmatmul.mubr.f32.gmra.mxu0 %v1830
    %v1903 = vpop.f32.mrf.mxu0
    %v1904 = vadd.f32 0.0, %v1903
    %v1905 = vpop.f32.mrf.mxu0
    %1906 = vdwg.mxu0
    %v1907 = vmul.f32 %v1899, %v43
    %v1908 = vmul.f32 %v1904, %v44
    %v1909 = vadd.f32 %v1824, %v1907
    %v1910 = vadd.f32 %v1825, %v1908
    %v1911 = vmul.f32 %v1728, %v41
    %v1912 = vmul.f32 %v1733, %v42
    %v1914 = vsel %vm383, %v1728, 0
    %v1917 = vsel %vm383, %v1733, 0
    %1919 = vmatprep.subr.mxu0 0.0
    %1920 = vmatpush1.msra.mxu0 0.0
    %1921 = vmatprep.subr.mxu0 0.0
    %1922 = vmatpush1.msra.mxu0 0.0
    %1923 = vmatprep.subr.mxu0 0.0
    %1924 = vmatpush1.msra.mxu0 0.0
    %1925 = vmatprep.subr.mxu0 0.0
    %1926 = vmatpush1.msra.mxu0 0.0
    %1927 = vmatprep.subr.mxu0 0.0
    %1928 = vmatpush1.msra.mxu0 0.0
    %1929 = vmatprep.subr.mxu0 0.0
    %1930 = vmatpush1.msra.mxu0 0.0
    %1931 = vmatprep.subr.mxu0 0.0
    %1932 = vmatpush1.msra.mxu0 0.0
    %1933 = vmatprep.subr.mxu0 0.0
    %1934 = vmatpush1.msra.mxu0 0.0
    %1935 = vmatprep.subr.mxu0 0.0
    %1936 = vmatpush1.msra.mxu0 0.0
    %1937 = vmatprep.subr.mxu0 0.0
    %1938 = vmatpush1.msra.mxu0 0.0
    %1939 = vmatprep.subr.mxu0 0.0
    %1940 = vmatpush1.msra.mxu0 0.0
    %1941 = vmatprep.subr.mxu0 0.0
    %1942 = vmatpush1.msra.mxu0 0.0
    %1943 = vmatprep.subr.mxu0 0.0
    %1944 = vmatpush1.msra.mxu0 0.0
    %1945 = vmatprep.subr.mxu0 0.0
    %1946 = vmatpush1.msra.mxu0 0.0
    %1947 = vmatprep.subr.mxu0 0.0
    %1948 = vmatpush1.msra.mxu0 0.0
    %1949 = vmatprep.subr.mxu0 0.0
    %1950 = vmatpush1.msra.mxu0 %v68
    %1951 = vmatprep.subr.mxu0 0.0
    %1952 = vmatpush2.msra.mxu0 0.0
    %1953 = vmatprep.subr.mxu0 0.0
    %1954 = vmatpush2.msra.mxu0 0.0
    %1955 = vmatprep.subr.mxu0 0.0
    %1956 = vmatpush2.msra.mxu0 0.0
    %1957 = vmatprep.subr.mxu0 0.0
    %1958 = vmatpush2.msra.mxu0 0.0
    %1959 = vmatprep.subr.mxu0 0.0
    %1960 = vmatpush2.msra.mxu0 0.0
    %1961 = vmatprep.subr.mxu0 0.0
    %1962 = vmatpush2.msra.mxu0 0.0
    %1963 = vmatprep.subr.mxu0 0.0
    %1964 = vmatpush2.msra.mxu0 0.0
    %1965 = vmatprep.subr.mxu0 0.0
    %1966 = vmatpush2.msra.mxu0 0.0
    %1967 = vmatprep.subr.mxu0 0.0
    %1968 = vmatpush2.msra.mxu0 0.0
    %1969 = vmatprep.subr.mxu0 0.0
    %1970 = vmatpush2.msra.mxu0 0.0
    %1971 = vmatprep.subr.mxu0 0.0
    %1972 = vmatpush2.msra.mxu0 0.0
    %1973 = vmatprep.subr.mxu0 0.0
    %1974 = vmatpush2.msra.mxu0 0.0
    %1975 = vmatprep.subr.mxu0 0.0
    %1976 = vmatpush2.msra.mxu0 0.0
    %1977 = vmatprep.subr.mxu0 0.0
    %1978 = vmatpush2.msra.mxu0 0.0
    %1979 = vmatprep.subr.mxu0 0.0
    %1980 = vmatpush2.msra.mxu0 0.0
    %1981 = vmatprep.subr.mxu0 0.0
    %1982 = vmatpush2.msra.mxu0 0.0
    %1983 = vmatprep.mubr.f32.mxu0 0.0
    %1984 = vmatmul.mubr.f32.gmra.mxu0 %v1914
    %v1985 = vpop.f32.mrf.mxu0
    %v1986 = vadd.f32 0.0, %v1985
    %v1987 = vpop.f32.mrf.mxu0
    %1988 = vmatprep.mubr.f32.mxu0 0.0
    %1989 = vmatmul.mubr.f32.gmra.mxu0 %v1917
    %v1990 = vpop.f32.mrf.mxu0
    %v1991 = vadd.f32 0.0, %v1990
    %v1992 = vpop.f32.mrf.mxu0
    %1993 = vdwg.mxu0
    %v1994 = vmul.f32 %v1986, %v43
    %v1995 = vmul.f32 %v1991, %v44
    %v1996 = vadd.f32 %v1911, %v1994
    %v1997 = vadd.f32 %v1912, %v1995
    %v1999 = vsel %vm383, %v1909, 0
    %v2002 = vsel %vm383, %v1910, 0
    %v2005 = vsel %vm383, %v1996, 0
    %v2008 = vsel %vm383, %v1997, 0
    %2010 = vmatprep.subr.mxu0 0.0
    %2011 = vmatpush1.xpose.msra.mxu0 0.0
    %2012 = vmatprep.subr.mxu0 0.0
    %2013 = vmatpush1.xpose.msra.mxu0 0.0
    %2014 = vmatprep.subr.mxu0 0.0
    %2015 = vmatpush1.xpose.msra.mxu0 0.0
    %2016 = vmatprep.subr.mxu0 0.0
    %2017 = vmatpush1.xpose.msra.mxu0 0.0
    %2018 = vmatprep.subr.mxu0 0.0
    %2019 = vmatpush1.xpose.msra.mxu0 0.0
    %2020 = vmatprep.subr.mxu0 0.0
    %2021 = vmatpush1.xpose.msra.mxu0 0.0
    %2022 = vmatprep.subr.mxu0 0.0
    %2023 = vmatpush1.xpose.msra.mxu0 0.0
    %2024 = vmatprep.subr.mxu0 0.0
    %2025 = vmatpush1.xpose.msra.mxu0 0.0
    %2026 = vmatprep.subr.mxu0 0.0
    %2027 = vmatpush1.xpose.msra.mxu0 0.0
    %2028 = vmatprep.subr.mxu0 0.0
    %2029 = vmatpush1.xpose.msra.mxu0 0.0
    %2030 = vmatprep.subr.mxu0 0.0
    %2031 = vmatpush1.xpose.msra.mxu0 0.0
    %2032 = vmatprep.subr.mxu0 0.0
    %2033 = vmatpush1.xpose.msra.mxu0 0.0
    %2034 = vmatprep.subr.mxu0 0.0
    %2035 = vmatpush1.xpose.msra.mxu0 0.0
    %2036 = vmatprep.subr.mxu0 0.0
    %2037 = vmatpush1.xpose.msra.mxu0 0.0
    %2038 = vmatprep.subr.mxu0 0.0
    %2039 = vmatpush1.xpose.msra.mxu0 %v2008
    %2040 = vmatprep.subr.mxu0 0.0
    %2041 = vmatpush1.xpose.msra.mxu0 %v2005
    %2042 = vmatprep.subr.mxu0 0.0
    %2043 = vmatpush2.xpose.msra.mxu0 0.0
    %2044 = vmatprep.subr.mxu0 0.0
    %2045 = vmatpush2.xpose.msra.mxu0 0.0
    %2046 = vmatprep.subr.mxu0 0.0
    %2047 = vmatpush2.xpose.msra.mxu0 0.0
    %2048 = vmatprep.subr.mxu0 0.0
    %2049 = vmatpush2.xpose.msra.mxu0 0.0
    %2050 = vmatprep.subr.mxu0 0.0
    %2051 = vmatpush2.xpose.msra.mxu0 0.0
    %2052 = vmatprep.subr.mxu0 0.0
    %2053 = vmatpush2.xpose.msra.mxu0 0.0
    %2054 = vmatprep.subr.mxu0 0.0
    %2055 = vmatpush2.xpose.msra.mxu0 0.0
    %2056 = vmatprep.subr.mxu0 0.0
    %2057 = vmatpush2.xpose.msra.mxu0 0.0
    %2058 = vmatprep.subr.mxu0 0.0
    %2059 = vmatpush2.xpose.msra.mxu0 0.0
    %2060 = vmatprep.subr.mxu0 0.0
    %2061 = vmatpush2.xpose.msra.mxu0 0.0
    %2062 = vmatprep.subr.mxu0 0.0
    %2063 = vmatpush2.xpose.msra.mxu0 0.0
    %2064 = vmatprep.subr.mxu0 0.0
    %2065 = vmatpush2.xpose.msra.mxu0 0.0
    %2066 = vmatprep.subr.mxu0 0.0
    %2067 = vmatpush2.xpose.msra.mxu0 0.0
    %2068 = vmatprep.subr.mxu0 0.0
    %2069 = vmatpush2.xpose.msra.mxu0 0.0
    %2070 = vmatprep.subr.mxu0 0.0
    %2071 = vmatpush2.xpose.msra.mxu0 0.0
    %2072 = vmatprep.subr.mxu0 0.0
    %2073 = vmatpush2.xpose.msra.mxu0 0.0
    %2074 = vmatprep.mubr.f32.mxu0 0.0
    %2075 = vmatmul.mubr.f32.gmra.mxu0 %v1999
    %v2076 = vpop.f32.mrf.mxu0
    %v2077 = vadd.f32 0.0, %v2076
    %v2078 = vpop.f32.mrf.mxu0
    %2079 = vmatprep.mubr.f32.mxu0 0.0
    %2080 = vmatmul.mubr.f32.gmra.mxu0 %v2002
    %v2081 = vpop.f32.mrf.mxu0
    %v2082 = vadd.f32 0.0, %v2081
    %v2083 = vpop.f32.mrf.mxu0
    %2084 = vdwg.mxu0
    %v2085 = vmul.f32 %v2077, 0.35355338
    %v2086 = vmul.f32 %v2082, 0.35355338
    %v2087 = vadd.f32 %v2085, %v45
    %v2088 = vadd.f32 %v2086, %v46
    %v2089 = vsel %vm647, %v2087, -inf
    %2090 = vmax.xlane.f32.xlu0 %v2089
    %v2091 = vpop.xlane.xlu0 %2090
    %v2092 = vsel %vm647, %v2088, -inf
    %2093 = vmax.xlane.f32.xlu0 %v2092
    %v2094 = vpop.xlane.xlu0 %2093
    %v2095 = vsub.f32 %v2087, %v2091
    %v2096 = vsub.f32 %v2088, %v2094
    %v2097 = vmul.f32 %v2095, 1.442695
    %v2098 = vpow.pop %v2097
    %v2099 = vmul.f32 %v2096, 1.442695
    %v2100 = vpow.pop %v2099
    %v2101 = vsel %vm647, %v2098, 0.0
    %2102 = vadd.xlane.f32.xlu0 %v2101
    %v2103 = vpop.xlane.xlu0 %2102
    %v2104 = vsel %vm647, %v2100, 0.0
    %2105 = vadd.xlane.f32.xlu0 %v2104
    %v2106 = vpop.xlane.xlu0 %2105
    %v2107 = vrcp.pop %v2103
    %v2108 = vrcp.pop %v2106
    %v2109 = vmul.f32 %v2103, %v2107
    %v2110 = vmul.f32 %v2106, %v2108
    %v2111 = vsub.f32 2.0, %v2109
    %v2112 = vsub.f32 2.0, %v2110
    %v2113 = vmul.f32 %v2107, %v2111
    %v2114 = vmul.f32 %v2108, %v2112
    %v2115 = vmul.f32 %v2098, %v2113
    %v2116 = vmul.f32 %v2100, %v2114
    %v2118 = vsel %vm647, %v2115, 0
    %v2121 = vsel %vm647, %v2116, 0
    %2123 = vmatprep.subr.mxu0 0.0
    %2124 = vmatpush1.msra.mxu0 0.0
    %2125 = vmatprep.subr.mxu0 0.0
    %2126 = vmatpush1.msra.mxu0 0.0
    %2127 = vmatprep.subr.mxu0 0.0
    %2128 = vmatpush1.msra.mxu0 0.0
    %2129 = vmatprep.subr.mxu0 0.0
    %2130 = vmatpush1.msra.mxu0 0.0
    %2131 = vmatprep.subr.mxu0 0.0
    %2132 = vmatpush1.msra.mxu0 0.0
    %2133 = vmatprep.subr.mxu0 0.0
    %2134 = vmatpush1.msra.mxu0 0.0
    %2135 = vmatprep.subr.mxu0 0.0
    %2136 = vmatpush1.msra.mxu0 0.0
    %2137 = vmatprep.subr.mxu0 0.0
    %2138 = vmatpush1.msra.mxu0 0.0
    %2139 = vmatprep.subr.mxu0 0.0
    %2140 = vmatpush1.msra.mxu0 0.0
    %2141 = vmatprep.subr.mxu0 0.0
    %2142 = vmatpush1.msra.mxu0 0.0
    %2143 = vmatprep.subr.mxu0 0.0
    %2144 = vmatpush1.msra.mxu0 0.0
    %2145 = vmatprep.subr.mxu0 0.0
    %2146 = vmatpush1.msra.mxu0 0.0
    %2147 = vmatprep.subr.mxu0 0.0
    %2148 = vmatpush1.msra.mxu0 0.0
    %2149 = vmatprep.subr.mxu0 0.0
    %2150 = vmatpush1.msra.mxu0 0.0
    %2151 = vmatprep.subr.mxu0 0.0
    %2152 = vmatpush1.msra.mxu0 %v1821
    %2153 = vmatprep.subr.mxu0 0.0
    %2154 = vmatpush1.msra.mxu0 %v1816
    %2155 = vmatprep.subr.mxu0 0.0
    %2156 = vmatpush2.msra.mxu0 0.0
    %2157 = vmatprep.subr.mxu0 0.0
    %2158 = vmatpush2.msra.mxu0 0.0
    %2159 = vmatprep.subr.mxu0 0.0
    %2160 = vmatpush2.msra.mxu0 0.0
    %2161 = vmatprep.subr.mxu0 0.0
    %2162 = vmatpush2.msra.mxu0 0.0
    %2163 = vmatprep.subr.mxu0 0.0
    %2164 = vmatpush2.msra.mxu0 0.0
    %2165 = vmatprep.subr.mxu0 0.0
    %2166 = vmatpush2.msra.mxu0 0.0
    %2167 = vmatprep.subr.mxu0 0.0
    %2168 = vmatpush2.msra.mxu0 0.0
    %2169 = vmatprep.subr.mxu0 0.0
    %2170 = vmatpush2.msra.mxu0 0.0
    %2171 = vmatprep.subr.mxu0 0.0
    %2172 = vmatpush2.msra.mxu0 0.0
    %2173 = vmatprep.subr.mxu0 0.0
    %2174 = vmatpush2.msra.mxu0 0.0
    %2175 = vmatprep.subr.mxu0 0.0
    %2176 = vmatpush2.msra.mxu0 0.0
    %2177 = vmatprep.subr.mxu0 0.0
    %2178 = vmatpush2.msra.mxu0 0.0
    %2179 = vmatprep.subr.mxu0 0.0
    %2180 = vmatpush2.msra.mxu0 0.0
    %2181 = vmatprep.subr.mxu0 0.0
    %2182 = vmatpush2.msra.mxu0 0.0
    %2183 = vmatprep.subr.mxu0 0.0
    %2184 = vmatpush2.msra.mxu0 0.0
    %2185 = vmatprep.subr.mxu0 0.0
    %2186 = vmatpush2.msra.mxu0 0.0
    %2187 = vmatprep.mubr.f32.mxu0 0.0
    %2188 = vmatmul.mubr.f32.gmra.mxu0 %v2118
    %v2189 = vpop.f32.mrf.mxu0
    %v2190 = vadd.f32 0.0, %v2189
    %v2191 = vpop.f32.mrf.mxu0
    %2192 = vmatprep.mubr.f32.mxu0 0.0
    %2193 = vmatmul.mubr.f32.gmra.mxu0 %v2121
    %v2194 = vpop.f32.mrf.mxu0
    %v2195 = vadd.f32 0.0, %v2194
    %v2196 = vpop.f32.mrf.mxu0
    %2197 = vdwg.mxu0
    %s2198 = scalar_lea.vmem %s6, 16
    %v2199 = vld [vmem:[%s2198] sm:$0xff]
    %v2201 = vsel %vm383, %v2190, 0
    %v2204 = vsel %vm383, %v2195, 0
    %2206 = vmatprep.subr.mxu0 0.0
    %2207 = vmatpush1.msra.mxu0 0.0
    %2208 = vmatprep.subr.mxu0 0.0
    %2209 = vmatpush1.msra.mxu0 0.0
    %2210 = vmatprep.subr.mxu0 0.0
    %2211 = vmatpush1.msra.mxu0 0.0
    %2212 = vmatprep.subr.mxu0 0.0
    %2213 = vmatpush1.msra.mxu0 0.0
    %2214 = vmatprep.subr.mxu0 0.0
    %2215 = vmatpush1.msra.mxu0 0.0
    %2216 = vmatprep.subr.mxu0 0.0
    %2217 = vmatpush1.msra.mxu0 0.0
    %2218 = vmatprep.subr.mxu0 0.0
    %2219 = vmatpush1.msra.mxu0 0.0
    %2220 = vmatprep.subr.mxu0 0.0
    %2221 = vmatpush1.msra.mxu0 0.0
    %2222 = vmatprep.subr.mxu0 0.0
    %2223 = vmatpush1.msra.mxu0 0.0
    %2224 = vmatprep.subr.mxu0 0.0
    %2225 = vmatpush1.msra.mxu0 0.0
    %2226 = vmatprep.subr.mxu0 0.0
    %2227 = vmatpush1.msra.mxu0 0.0
    %2228 = vmatprep.subr.mxu0 0.0
    %2229 = vmatpush1.msra.mxu0 0.0
    %2230 = vmatprep.subr.mxu0 0.0
    %2231 = vmatpush1.msra.mxu0 0.0
    %2232 = vmatprep.subr.mxu0 0.0
    %2233 = vmatpush1.msra.mxu0 0.0
    %2234 = vmatprep.subr.mxu0 0.0
    %2235 = vmatpush1.msra.mxu0 0.0
    %2236 = vmatprep.subr.mxu0 0.0
    %2237 = vmatpush1.msra.mxu0 %v2199
    %2238 = vmatprep.subr.mxu0 0.0
    %2239 = vmatpush2.msra.mxu0 0.0
    %2240 = vmatprep.subr.mxu0 0.0
    %2241 = vmatpush2.msra.mxu0 0.0
    %2242 = vmatprep.subr.mxu0 0.0
    %2243 = vmatpush2.msra.mxu0 0.0
    %2244 = vmatprep.subr.mxu0 0.0
    %2245 = vmatpush2.msra.mxu0 0.0
    %2246 = vmatprep.subr.mxu0 0.0
    %2247 = vmatpush2.msra.mxu0 0.0
    %2248 = vmatprep.subr.mxu0 0.0
    %2249 = vmatpush2.msra.mxu0 0.0
    %2250 = vmatprep.subr.mxu0 0.0
    %2251 = vmatpush2.msra.mxu0 0.0
    %2252 = vmatprep.subr.mxu0 0.0
    %2253 = vmatpush2.msra.mxu0 0.0
    %2254 = vmatprep.subr.mxu0 0.0
    %2255 = vmatpush2.msra.mxu0 0.0
    %2256 = vmatprep.subr.mxu0 0.0
    %2257 = vmatpush2.msra.mxu0 0.0
    %2258 = vmatprep.subr.mxu0 0.0
    %2259 = vmatpush2.msra.mxu0 0.0
    %2260 = vmatprep.subr.mxu0 0.0
    %2261 = vmatpush2.msra.mxu0 0.0
    %2262 = vmatprep.subr.mxu0 0.0
    %2263 = vmatpush2.msra.mxu0 0.0
    %2264 = vmatprep.subr.mxu0 0.0
    %2265 = vmatpush2.msra.mxu0 0.0
    %2266 = vmatprep.subr.mxu0 0.0
    %2267 = vmatpush2.msra.mxu0 0.0
    %2268 = vmatprep.subr.mxu0 0.0
    %2269 = vmatpush2.msra.mxu0 0.0
    %2270 = vmatprep.mubr.f32.mxu0 0.0
    %2271 = vmatmul.mubr.f32.gmra.mxu0 %v2201
    %v2272 = vpop.f32.mrf.mxu0
    %v2273 = vadd.f32 0.0, %v2272
    %v2274 = vpop.f32.mrf.mxu0
    %2275 = vmatprep.mubr.f32.mxu0 0.0
    %2276 = vmatmul.mubr.f32.gmra.mxu0 %v2204
    %v2277 = vpop.f32.mrf.mxu0
    %v2278 = vadd.f32 0.0, %v2277
    %v2279 = vpop.f32.mrf.mxu0
    %2280 = vdwg.mxu0
    %v2281 = vadd.f32 %v1552, %v2273
    %v2282 = vadd.f32 %v1557, %v2278
    %s2283 = scalar_lea.vmem %s4, 96
    %v2284 = vld [vmem:[%s2283] sm:$0xff]
    %v2285 = vld [vmem:[%s2283 + $0x8] sm:$0xff]
    %v2286 = vld [vmem:[%s2283 + $0x10] sm:$0xff]
    %v2287 = vld [vmem:[%s2283 + $0x18] sm:$0xff]
    %s2288 = scalar_lea.vmem %s5, 3
    %v2289 = vld [vmem:[%s2288] sm:$0x1]
    %v2291 = vlaneseq
    %v2292 = vshrl.u32 %v2291, 7
    %v2293 = vsub.s32 0, %v2292
    %v2294 = vrot.slane %v2289, %v2293
    %2296 = vmatprep.subr.mxu0 0.0
    %2297 = vmatpush1.msra.mxu0 0.0
    %2298 = vmatprep.subr.mxu0 0.0
    %2299 = vmatpush1.msra.mxu0 0.0
    %2300 = vmatprep.subr.mxu0 0.0
    %2301 = vmatpush1.msra.mxu0 0.0
    %2302 = vmatprep.subr.mxu0 0.0
    %2303 = vmatpush1.msra.mxu0 0.0
    %2304 = vmatprep.subr.mxu0 0.0
    %2305 = vmatpush1.msra.mxu0 0.0
    %2306 = vmatprep.subr.mxu0 0.0
    %2307 = vmatpush1.msra.mxu0 0.0
    %2308 = vmatprep.subr.mxu0 0.0
    %2309 = vmatpush1.msra.mxu0 0.0
    %2310 = vmatprep.subr.mxu0 0.0
    %2311 = vmatpush1.msra.mxu0 0.0
    %2312 = vmatprep.subr.mxu0 0.0
    %2313 = vmatpush1.msra.mxu0 0.0
    %2314 = vmatprep.subr.mxu0 0.0
    %2315 = vmatpush1.msra.mxu0 0.0
    %2316 = vmatprep.subr.mxu0 0.0
    %2317 = vmatpush1.msra.mxu0 0.0
    %2318 = vmatprep.subr.mxu0 0.0
    %2319 = vmatpush1.msra.mxu0 0.0
    %2320 = vmatprep.subr.mxu0 0.0
    %2321 = vmatpush1.msra.mxu0 %v2287
    %2322 = vmatprep.subr.mxu0 0.0
    %2323 = vmatpush1.msra.mxu0 %v2286
    %2324 = vmatprep.subr.mxu0 0.0
    %2325 = vmatpush1.msra.mxu0 %v2285
    %2326 = vmatprep.subr.mxu0 0.0
    %2327 = vmatpush1.msra.mxu0 %v2284
    %2328 = vmatprep.subr.mxu0 0.0
    %2329 = vmatpush2.msra.mxu0 0.0
    %2330 = vmatprep.subr.mxu0 0.0
    %2331 = vmatpush2.msra.mxu0 0.0
    %2332 = vmatprep.subr.mxu0 0.0
    %2333 = vmatpush2.msra.mxu0 0.0
    %2334 = vmatprep.subr.mxu0 0.0
    %2335 = vmatpush2.msra.mxu0 0.0
    %2336 = vmatprep.subr.mxu0 0.0
    %2337 = vmatpush2.msra.mxu0 0.0
    %2338 = vmatprep.subr.mxu0 0.0
    %2339 = vmatpush2.msra.mxu0 0.0
    %2340 = vmatprep.subr.mxu0 0.0
    %2341 = vmatpush2.msra.mxu0 0.0
    %2342 = vmatprep.subr.mxu0 0.0
    %2343 = vmatpush2.msra.mxu0 0.0
    %2344 = vmatprep.subr.mxu0 0.0
    %2345 = vmatpush2.msra.mxu0 0.0
    %2346 = vmatprep.subr.mxu0 0.0
    %2347 = vmatpush2.msra.mxu0 0.0
    %2348 = vmatprep.subr.mxu0 0.0
    %2349 = vmatpush2.msra.mxu0 0.0
    %2350 = vmatprep.subr.mxu0 0.0
    %2351 = vmatpush2.msra.mxu0 0.0
    %2352 = vmatprep.subr.mxu0 0.0
    %2353 = vmatpush2.msra.mxu0 0.0
    %2354 = vmatprep.subr.mxu0 0.0
    %2355 = vmatpush2.msra.mxu0 0.0
    %2356 = vmatprep.subr.mxu0 0.0
    %2357 = vmatpush2.msra.mxu0 0.0
    %2358 = vmatprep.subr.mxu0 0.0
    %2359 = vmatpush2.msra.mxu0 0.0
    %2360 = vmatprep.mubr.f32.mxu0 0.0
    %2361 = vmatmul.mubr.f32.gmra.mxu0 %v125
    %v2362 = vpop.f32.mrf.mxu0
    %v2363 = vadd.f32 %v2294, %v2362
    %v2364 = vpop.f32.mrf.mxu0
    %2365 = vmatprep.mubr.f32.mxu0 0.0
    %2366 = vmatmul.mubr.f32.gmra.mxu0 %v128
    %v2367 = vpop.f32.mrf.mxu0
    %v2368 = vadd.f32 %v2294, %v2367
    %v2369 = vpop.f32.mrf.mxu0
    %2370 = vdwg.mxu0
    %s2371 = scalar_lea.vmem %s4, 224
    %v2372 = vld [vmem:[%s2371] sm:$0xff]
    %v2373 = vld [vmem:[%s2371 + $0x8] sm:$0xff]
    %v2374 = vld [vmem:[%s2371 + $0x10] sm:$0xff]
    %v2375 = vld [vmem:[%s2371 + $0x18] sm:$0xff]
    %s2376 = scalar_lea.vmem %s5, 7
    %v2377 = vld [vmem:[%s2376] sm:$0x1]
    %v2379 = vlaneseq
    %v2380 = vshrl.u32 %v2379, 7
    %v2381 = vsub.s32 0, %v2380
    %v2382 = vrot.slane %v2377, %v2381
    %2384 = vmatprep.subr.mxu0 0.0
    %2385 = vmatpush1.msra.mxu0 0.0
    %2386 = vmatprep.subr.mxu0 0.0
    %2387 = vmatpush1.msra.mxu0 0.0
    %2388 = vmatprep.subr.mxu0 0.0
    %2389 = vmatpush1.msra.mxu0 0.0
    %2390 = vmatprep.subr.mxu0 0.0
    %2391 = vmatpush1.msra.mxu0 0.0
    %2392 = vmatprep.subr.mxu0 0.0
    %2393 = vmatpush1.msra.mxu0 0.0
    %2394 = vmatprep.subr.mxu0 0.0
    %2395 = vmatpush1.msra.mxu0 0.0
    %2396 = vmatprep.subr.mxu0 0.0
    %2397 = vmatpush1.msra.mxu0 0.0
    %2398 = vmatprep.subr.mxu0 0.0
    %2399 = vmatpush1.msra.mxu0 0.0
    %2400 = vmatprep.subr.mxu0 0.0
    %2401 = vmatpush1.msra.mxu0 0.0
    %2402 = vmatprep.subr.mxu0 0.0
    %2403 = vmatpush1.msra.mxu0 0.0
    %2404 = vmatprep.subr.mxu0 0.0
    %2405 = vmatpush1.msra.mxu0 0.0
    %2406 = vmatprep.subr.mxu0 0.0
    %2407 = vmatpush1.msra.mxu0 0.0
    %2408 = vmatprep.subr.mxu0 0.0
    %2409 = vmatpush1.msra.mxu0 %v2375
    %2410 = vmatprep.subr.mxu0 0.0
    %2411 = vmatpush1.msra.mxu0 %v2374
    %2412 = vmatprep.subr.mxu0 0.0
    %2413 = vmatpush1.msra.mxu0 %v2373
    %2414 = vmatprep.subr.mxu0 0.0
    %2415 = vmatpush1.msra.mxu0 %v2372
    %2416 = vmatprep.subr.mxu0 0.0
    %2417 = vmatpush2.msra.mxu0 0.0
    %2418 = vmatprep.subr.mxu0 0.0
    %2419 = vmatpush2.msra.mxu0 0.0
    %2420 = vmatprep.subr.mxu0 0.0
    %2421 = vmatpush2.msra.mxu0 0.0
    %2422 = vmatprep.subr.mxu0 0.0
    %2423 = vmatpush2.msra.mxu0 0.0
    %2424 = vmatprep.subr.mxu0 0.0
    %2425 = vmatpush2.msra.mxu0 0.0
    %2426 = vmatprep.subr.mxu0 0.0
    %2427 = vmatpush2.msra.mxu0 0.0
    %2428 = vmatprep.subr.mxu0 0.0
    %2429 = vmatpush2.msra.mxu0 0.0
    %2430 = vmatprep.subr.mxu0 0.0
    %2431 = vmatpush2.msra.mxu0 0.0
    %2432 = vmatprep.subr.mxu0 0.0
    %2433 = vmatpush2.msra.mxu0 0.0
    %2434 = vmatprep.subr.mxu0 0.0
    %2435 = vmatpush2.msra.mxu0 0.0
    %2436 = vmatprep.subr.mxu0 0.0
    %2437 = vmatpush2.msra.mxu0 0.0
    %2438 = vmatprep.subr.mxu0 0.0
    %2439 = vmatpush2.msra.mxu0 0.0
    %2440 = vmatprep.subr.mxu0 0.0
    %2441 = vmatpush2.msra.mxu0 0.0
    %2442 = vmatprep.subr.mxu0 0.0
    %2443 = vmatpush2.msra.mxu0 0.0
    %2444 = vmatprep.subr.mxu0 0.0
    %2445 = vmatpush2.msra.mxu0 0.0
    %2446 = vmatprep.subr.mxu0 0.0
    %2447 = vmatpush2.msra.mxu0 0.0
    %2448 = vmatprep.mubr.f32.mxu0 0.0
    %2449 = vmatmul.mubr.f32.gmra.mxu0 %v125
    %v2450 = vpop.f32.mrf.mxu0
    %v2451 = vadd.f32 %v2382, %v2450
    %v2452 = vpop.f32.mrf.mxu0
    %2453 = vmatprep.mubr.f32.mxu0 0.0
    %2454 = vmatmul.mubr.f32.gmra.mxu0 %v128
    %v2455 = vpop.f32.mrf.mxu0
    %v2456 = vadd.f32 %v2382, %v2455
    %v2457 = vpop.f32.mrf.mxu0
    %2458 = vdwg.mxu0
    %s2459 = scalar_lea.vmem %s4, 352
    %v2460 = vld [vmem:[%s2459] sm:$0xff]
    %v2461 = vld [vmem:[%s2459 + $0x8] sm:$0xff]
    %v2462 = vld [vmem:[%s2459 + $0x10] sm:$0xff]
    %v2463 = vld [vmem:[%s2459 + $0x18] sm:$0xff]
    %s2464 = scalar_lea.vmem %s5, 11
    %v2465 = vld [vmem:[%s2464] sm:$0x1]
    %v2467 = vlaneseq
    %v2468 = vshrl.u32 %v2467, 7
    %v2469 = vsub.s32 0, %v2468
    %v2470 = vrot.slane %v2465, %v2469
    %2472 = vmatprep.subr.mxu0 0.0
    %2473 = vmatpush1.msra.mxu0 0.0
    %2474 = vmatprep.subr.mxu0 0.0
    %2475 = vmatpush1.msra.mxu0 0.0
    %2476 = vmatprep.subr.mxu0 0.0
    %2477 = vmatpush1.msra.mxu0 0.0
    %2478 = vmatprep.subr.mxu0 0.0
    %2479 = vmatpush1.msra.mxu0 0.0
    %2480 = vmatprep.subr.mxu0 0.0
    %2481 = vmatpush1.msra.mxu0 0.0
    %2482 = vmatprep.subr.mxu0 0.0
    %2483 = vmatpush1.msra.mxu0 0.0
    %2484 = vmatprep.subr.mxu0 0.0
    %2485 = vmatpush1.msra.mxu0 0.0
    %2486 = vmatprep.subr.mxu0 0.0
    %2487 = vmatpush1.msra.mxu0 0.0
    %2488 = vmatprep.subr.mxu0 0.0
    %2489 = vmatpush1.msra.mxu0 0.0
    %2490 = vmatprep.subr.mxu0 0.0
    %2491 = vmatpush1.msra.mxu0 0.0
    %2492 = vmatprep.subr.mxu0 0.0
    %2493 = vmatpush1.msra.mxu0 0.0
    %2494 = vmatprep.subr.mxu0 0.0
    %2495 = vmatpush1.msra.mxu0 0.0
    %2496 = vmatprep.subr.mxu0 0.0
    %2497 = vmatpush1.msra.mxu0 %v2463
    %2498 = vmatprep.subr.mxu0 0.0
    %2499 = vmatpush1.msra.mxu0 %v2462
    %2500 = vmatprep.subr.mxu0 0.0
    %2501 = vmatpush1.msra.mxu0 %v2461
    %2502 = vmatprep.subr.mxu0 0.0
    %2503 = vmatpush1.msra.mxu0 %v2460
    %2504 = vmatprep.subr.mxu0 0.0
    %2505 = vmatpush2.msra.mxu0 0.0
    %2506 = vmatprep.subr.mxu0 0.0
    %2507 = vmatpush2.msra.mxu0 0.0
    %2508 = vmatprep.subr.mxu0 0.0
    %2509 = vmatpush2.msra.mxu0 0.0
    %2510 = vmatprep.subr.mxu0 0.0
    %2511 = vmatpush2.msra.mxu0 0.0
    %2512 = vmatprep.subr.mxu0 0.0
    %2513 = vmatpush2.msra.mxu0 0.0
    %2514 = vmatprep.subr.mxu0 0.0
    %2515 = vmatpush2.msra.mxu0 0.0
    %2516 = vmatprep.subr.mxu0 0.0
    %2517 = vmatpush2.msra.mxu0 0.0
    %2518 = vmatprep.subr.mxu0 0.0
    %2519 = vmatpush2.msra.mxu0 0.0
    %2520 = vmatprep.subr.mxu0 0.0
    %2521 = vmatpush2.msra.mxu0 0.0
    %2522 = vmatprep.subr.mxu0 0.0
    %2523 = vmatpush2.msra.mxu0 0.0
    %2524 = vmatprep.subr.mxu0 0.0
    %2525 = vmatpush2.msra.mxu0 0.0
    %2526 = vmatprep.subr.mxu0 0.0
    %2527 = vmatpush2.msra.mxu0 0.0
    %2528 = vmatprep.subr.mxu0 0.0
    %2529 = vmatpush2.msra.mxu0 0.0
    %2530 = vmatprep.subr.mxu0 0.0
    %2531 = vmatpush2.msra.mxu0 0.0
    %2532 = vmatprep.subr.mxu0 0.0
    %2533 = vmatpush2.msra.mxu0 0.0
    %2534 = vmatprep.subr.mxu0 0.0
    %2535 = vmatpush2.msra.mxu0 0.0
    %2536 = vmatprep.mubr.f32.mxu0 0.0
    %2537 = vmatmul.mubr.f32.gmra.mxu0 %v125
    %v2538 = vpop.f32.mrf.mxu0
    %v2539 = vadd.f32 %v2470, %v2538
    %v2540 = vpop.f32.mrf.mxu0
    %2541 = vmatprep.mubr.f32.mxu0 0.0
    %2542 = vmatmul.mubr.f32.gmra.mxu0 %v128
    %v2543 = vpop.f32.mrf.mxu0
    %v2544 = vadd.f32 %v2470, %v2543
    %v2545 = vpop.f32.mrf.mxu0
    %2546 = vdwg.mxu0
    %v2547 = vmul.f32 %v2363, %v41
    %v2548 = vmul.f32 %v2368, %v42
    %v2550 = vsel %vm383, %v2363, 0
    %v2553 = vsel %vm383, %v2368, 0
    %2555 = vmatprep.subr.mxu0 0.0
    %2556 = vmatpush1.msra.mxu0 0.0
    %2557 = vmatprep.subr.mxu0 0.0
    %2558 = vmatpush1.msra.mxu0 0.0
    %2559 = vmatprep.subr.mxu0 0.0
    %2560 = vmatpush1.msra.mxu0 0.0
    %2561 = vmatprep.subr.mxu0 0.0
    %2562 = vmatpush1.msra.mxu0 0.0
    %2563 = vmatprep.subr.mxu0 0.0
    %2564 = vmatpush1.msra.mxu0 0.0
    %2565 = vmatprep.subr.mxu0 0.0
    %2566 = vmatpush1.msra.mxu0 0.0
    %2567 = vmatprep.subr.mxu0 0.0
    %2568 = vmatpush1.msra.mxu0 0.0
    %2569 = vmatprep.subr.mxu0 0.0
    %2570 = vmatpush1.msra.mxu0 0.0
    %2571 = vmatprep.subr.mxu0 0.0
    %2572 = vmatpush1.msra.mxu0 0.0
    %2573 = vmatprep.subr.mxu0 0.0
    %2574 = vmatpush1.msra.mxu0 0.0
    %2575 = vmatprep.subr.mxu0 0.0
    %2576 = vmatpush1.msra.mxu0 0.0
    %2577 = vmatprep.subr.mxu0 0.0
    %2578 = vmatpush1.msra.mxu0 0.0
    %2579 = vmatprep.subr.mxu0 0.0
    %2580 = vmatpush1.msra.mxu0 0.0
    %2581 = vmatprep.subr.mxu0 0.0
    %2582 = vmatpush1.msra.mxu0 0.0
    %2583 = vmatprep.subr.mxu0 0.0
    %2584 = vmatpush1.msra.mxu0 0.0
    %2585 = vmatprep.subr.mxu0 0.0
    %2586 = vmatpush1.msra.mxu0 %v68
    %2587 = vmatprep.subr.mxu0 0.0
    %2588 = vmatpush2.msra.mxu0 0.0
    %2589 = vmatprep.subr.mxu0 0.0
    %2590 = vmatpush2.msra.mxu0 0.0
    %2591 = vmatprep.subr.mxu0 0.0
    %2592 = vmatpush2.msra.mxu0 0.0
    %2593 = vmatprep.subr.mxu0 0.0
    %2594 = vmatpush2.msra.mxu0 0.0
    %2595 = vmatprep.subr.mxu0 0.0
    %2596 = vmatpush2.msra.mxu0 0.0
    %2597 = vmatprep.subr.mxu0 0.0
    %2598 = vmatpush2.msra.mxu0 0.0
    %2599 = vmatprep.subr.mxu0 0.0
    %2600 = vmatpush2.msra.mxu0 0.0
    %2601 = vmatprep.subr.mxu0 0.0
    %2602 = vmatpush2.msra.mxu0 0.0
    %2603 = vmatprep.subr.mxu0 0.0
    %2604 = vmatpush2.msra.mxu0 0.0
    %2605 = vmatprep.subr.mxu0 0.0
    %2606 = vmatpush2.msra.mxu0 0.0
    %2607 = vmatprep.subr.mxu0 0.0
    %2608 = vmatpush2.msra.mxu0 0.0
    %2609 = vmatprep.subr.mxu0 0.0
    %2610 = vmatpush2.msra.mxu0 0.0
    %2611 = vmatprep.subr.mxu0 0.0
    %2612 = vmatpush2.msra.mxu0 0.0
    %2613 = vmatprep.subr.mxu0 0.0
    %2614 = vmatpush2.msra.mxu0 0.0
    %2615 = vmatprep.subr.mxu0 0.0
    %2616 = vmatpush2.msra.mxu0 0.0
    %2617 = vmatprep.subr.mxu0 0.0
    %2618 = vmatpush2.msra.mxu0 0.0
    %2619 = vmatprep.mubr.f32.mxu0 0.0
    %2620 = vmatmul.mubr.f32.gmra.mxu0 %v2550
    %v2621 = vpop.f32.mrf.mxu0
    %v2622 = vadd.f32 0.0, %v2621
    %v2623 = vpop.f32.mrf.mxu0
    %2624 = vmatprep.mubr.f32.mxu0 0.0
    %2625 = vmatmul.mubr.f32.gmra.mxu0 %v2553
    %v2626 = vpop.f32.mrf.mxu0
    %v2627 = vadd.f32 0.0, %v2626
    %v2628 = vpop.f32.mrf.mxu0
    %2629 = vdwg.mxu0
    %v2630 = vmul.f32 %v2622, %v43
    %v2631 = vmul.f32 %v2627, %v44
    %v2632 = vadd.f32 %v2547, %v2630
    %v2633 = vadd.f32 %v2548, %v2631
    %v2634 = vmul.f32 %v2451, %v41
    %v2635 = vmul.f32 %v2456, %v42
    %v2637 = vsel %vm383, %v2451, 0
    %v2640 = vsel %vm383, %v2456, 0
    %2642 = vmatprep.subr.mxu0 0.0
    %2643 = vmatpush1.msra.mxu0 0.0
    %2644 = vmatprep.subr.mxu0 0.0
    %2645 = vmatpush1.msra.mxu0 0.0
    %2646 = vmatprep.subr.mxu0 0.0
    %2647 = vmatpush1.msra.mxu0 0.0
    %2648 = vmatprep.subr.mxu0 0.0
    %2649 = vmatpush1.msra.mxu0 0.0
    %2650 = vmatprep.subr.mxu0 0.0
    %2651 = vmatpush1.msra.mxu0 0.0
    %2652 = vmatprep.subr.mxu0 0.0
    %2653 = vmatpush1.msra.mxu0 0.0
    %2654 = vmatprep.subr.mxu0 0.0
    %2655 = vmatpush1.msra.mxu0 0.0
    %2656 = vmatprep.subr.mxu0 0.0
    %2657 = vmatpush1.msra.mxu0 0.0
    %2658 = vmatprep.subr.mxu0 0.0
    %2659 = vmatpush1.msra.mxu0 0.0
    %2660 = vmatprep.subr.mxu0 0.0
    %2661 = vmatpush1.msra.mxu0 0.0
    %2662 = vmatprep.subr.mxu0 0.0
    %2663 = vmatpush1.msra.mxu0 0.0
    %2664 = vmatprep.subr.mxu0 0.0
    %2665 = vmatpush1.msra.mxu0 0.0
    %2666 = vmatprep.subr.mxu0 0.0
    %2667 = vmatpush1.msra.mxu0 0.0
    %2668 = vmatprep.subr.mxu0 0.0
    %2669 = vmatpush1.msra.mxu0 0.0
    %2670 = vmatprep.subr.mxu0 0.0
    %2671 = vmatpush1.msra.mxu0 0.0
    %2672 = vmatprep.subr.mxu0 0.0
    %2673 = vmatpush1.msra.mxu0 %v68
    %2674 = vmatprep.subr.mxu0 0.0
    %2675 = vmatpush2.msra.mxu0 0.0
    %2676 = vmatprep.subr.mxu0 0.0
    %2677 = vmatpush2.msra.mxu0 0.0
    %2678 = vmatprep.subr.mxu0 0.0
    %2679 = vmatpush2.msra.mxu0 0.0
    %2680 = vmatprep.subr.mxu0 0.0
    %2681 = vmatpush2.msra.mxu0 0.0
    %2682 = vmatprep.subr.mxu0 0.0
    %2683 = vmatpush2.msra.mxu0 0.0
    %2684 = vmatprep.subr.mxu0 0.0
    %2685 = vmatpush2.msra.mxu0 0.0
    %2686 = vmatprep.subr.mxu0 0.0
    %2687 = vmatpush2.msra.mxu0 0.0
    %2688 = vmatprep.subr.mxu0 0.0
    %2689 = vmatpush2.msra.mxu0 0.0
    %2690 = vmatprep.subr.mxu0 0.0
    %2691 = vmatpush2.msra.mxu0 0.0
    %2692 = vmatprep.subr.mxu0 0.0
    %2693 = vmatpush2.msra.mxu0 0.0
    %2694 = vmatprep.subr.mxu0 0.0
    %2695 = vmatpush2.msra.mxu0 0.0
    %2696 = vmatprep.subr.mxu0 0.0
    %2697 = vmatpush2.msra.mxu0 0.0
    %2698 = vmatprep.subr.mxu0 0.0
    %2699 = vmatpush2.msra.mxu0 0.0
    %2700 = vmatprep.subr.mxu0 0.0
    %2701 = vmatpush2.msra.mxu0 0.0
    %2702 = vmatprep.subr.mxu0 0.0
    %2703 = vmatpush2.msra.mxu0 0.0
    %2704 = vmatprep.subr.mxu0 0.0
    %2705 = vmatpush2.msra.mxu0 0.0
    %2706 = vmatprep.mubr.f32.mxu0 0.0
    %2707 = vmatmul.mubr.f32.gmra.mxu0 %v2637
    %v2708 = vpop.f32.mrf.mxu0
    %v2709 = vadd.f32 0.0, %v2708
    %v2710 = vpop.f32.mrf.mxu0
    %2711 = vmatprep.mubr.f32.mxu0 0.0
    %2712 = vmatmul.mubr.f32.gmra.mxu0 %v2640
    %v2713 = vpop.f32.mrf.mxu0
    %v2714 = vadd.f32 0.0, %v2713
    %v2715 = vpop.f32.mrf.mxu0
    %2716 = vdwg.mxu0
    %v2717 = vmul.f32 %v2709, %v43
    %v2718 = vmul.f32 %v2714, %v44
    %v2719 = vadd.f32 %v2634, %v2717
    %v2720 = vadd.f32 %v2635, %v2718
    %v2722 = vsel %vm383, %v2632, 0
    %v2725 = vsel %vm383, %v2633, 0
    %v2728 = vsel %vm383, %v2719, 0
    %v2731 = vsel %vm383, %v2720, 0
    %2733 = vmatprep.subr.mxu0 0.0
    %2734 = vmatpush1.xpose.msra.mxu0 0.0
    %2735 = vmatprep.subr.mxu0 0.0
    %2736 = vmatpush1.xpose.msra.mxu0 0.0
    %2737 = vmatprep.subr.mxu0 0.0
    %2738 = vmatpush1.xpose.msra.mxu0 0.0
    %2739 = vmatprep.subr.mxu0 0.0
    %2740 = vmatpush1.xpose.msra.mxu0 0.0
    %2741 = vmatprep.subr.mxu0 0.0
    %2742 = vmatpush1.xpose.msra.mxu0 0.0
    %2743 = vmatprep.subr.mxu0 0.0
    %2744 = vmatpush1.xpose.msra.mxu0 0.0
    %2745 = vmatprep.subr.mxu0 0.0
    %2746 = vmatpush1.xpose.msra.mxu0 0.0
    %2747 = vmatprep.subr.mxu0 0.0
    %2748 = vmatpush1.xpose.msra.mxu0 0.0
    %2749 = vmatprep.subr.mxu0 0.0
    %2750 = vmatpush1.xpose.msra.mxu0 0.0
    %2751 = vmatprep.subr.mxu0 0.0
    %2752 = vmatpush1.xpose.msra.mxu0 0.0
    %2753 = vmatprep.subr.mxu0 0.0
    %2754 = vmatpush1.xpose.msra.mxu0 0.0
    %2755 = vmatprep.subr.mxu0 0.0
    %2756 = vmatpush1.xpose.msra.mxu0 0.0
    %2757 = vmatprep.subr.mxu0 0.0
    %2758 = vmatpush1.xpose.msra.mxu0 0.0
    %2759 = vmatprep.subr.mxu0 0.0
    %2760 = vmatpush1.xpose.msra.mxu0 0.0
    %2761 = vmatprep.subr.mxu0 0.0
    %2762 = vmatpush1.xpose.msra.mxu0 %v2731
    %2763 = vmatprep.subr.mxu0 0.0
    %2764 = vmatpush1.xpose.msra.mxu0 %v2728
    %2765 = vmatprep.subr.mxu0 0.0
    %2766 = vmatpush2.xpose.msra.mxu0 0.0
    %2767 = vmatprep.subr.mxu0 0.0
    %2768 = vmatpush2.xpose.msra.mxu0 0.0
    %2769 = vmatprep.subr.mxu0 0.0
    %2770 = vmatpush2.xpose.msra.mxu0 0.0
    %2771 = vmatprep.subr.mxu0 0.0
    %2772 = vmatpush2.xpose.msra.mxu0 0.0
    %2773 = vmatprep.subr.mxu0 0.0
    %2774 = vmatpush2.xpose.msra.mxu0 0.0
    %2775 = vmatprep.subr.mxu0 0.0
    %2776 = vmatpush2.xpose.msra.mxu0 0.0
    %2777 = vmatprep.subr.mxu0 0.0
    %2778 = vmatpush2.xpose.msra.mxu0 0.0
    %2779 = vmatprep.subr.mxu0 0.0
    %2780 = vmatpush2.xpose.msra.mxu0 0.0
    %2781 = vmatprep.subr.mxu0 0.0
    %2782 = vmatpush2.xpose.msra.mxu0 0.0
    %2783 = vmatprep.subr.mxu0 0.0
    %2784 = vmatpush2.xpose.msra.mxu0 0.0
    %2785 = vmatprep.subr.mxu0 0.0
    %2786 = vmatpush2.xpose.msra.mxu0 0.0
    %2787 = vmatprep.subr.mxu0 0.0
    %2788 = vmatpush2.xpose.msra.mxu0 0.0
    %2789 = vmatprep.subr.mxu0 0.0
    %2790 = vmatpush2.xpose.msra.mxu0 0.0
    %2791 = vmatprep.subr.mxu0 0.0
    %2792 = vmatpush2.xpose.msra.mxu0 0.0
    %2793 = vmatprep.subr.mxu0 0.0
    %2794 = vmatpush2.xpose.msra.mxu0 0.0
    %2795 = vmatprep.subr.mxu0 0.0
    %2796 = vmatpush2.xpose.msra.mxu0 0.0
    %2797 = vmatprep.mubr.f32.mxu0 0.0
    %2798 = vmatmul.mubr.f32.gmra.mxu0 %v2722
    %v2799 = vpop.f32.mrf.mxu0
    %v2800 = vadd.f32 0.0, %v2799
    %v2801 = vpop.f32.mrf.mxu0
    %2802 = vmatprep.mubr.f32.mxu0 0.0
    %2803 = vmatmul.mubr.f32.gmra.mxu0 %v2725
    %v2804 = vpop.f32.mrf.mxu0
    %v2805 = vadd.f32 0.0, %v2804
    %v2806 = vpop.f32.mrf.mxu0
    %2807 = vdwg.mxu0
    %v2808 = vmul.f32 %v2800, 0.35355338
    %v2809 = vmul.f32 %v2805, 0.35355338
    %v2810 = vadd.f32 %v2808, %v45
    %v2811 = vadd.f32 %v2809, %v46
    %v2812 = vsel %vm647, %v2810, -inf
    %2813 = vmax.xlane.f32.xlu0 %v2812
    %v2814 = vpop.xlane.xlu0 %2813
    %v2815 = vsel %vm647, %v2811, -inf
    %2816 = vmax.xlane.f32.xlu0 %v2815
    %v2817 = vpop.xlane.xlu0 %2816
    %v2818 = vsub.f32 %v2810, %v2814
    %v2819 = vsub.f32 %v2811, %v2817
    %v2820 = vmul.f32 %v2818, 1.442695
    %v2821 = vpow.pop %v2820
    %v2822 = vmul.f32 %v2819, 1.442695
    %v2823 = vpow.pop %v2822
    %v2824 = vsel %vm647, %v2821, 0.0
    %2825 = vadd.xlane.f32.xlu0 %v2824
    %v2826 = vpop.xlane.xlu0 %2825
    %v2827 = vsel %vm647, %v2823, 0.0
    %2828 = vadd.xlane.f32.xlu0 %v2827
    %v2829 = vpop.xlane.xlu0 %2828
    %v2830 = vrcp.pop %v2826
    %v2831 = vrcp.pop %v2829
    %v2832 = vmul.f32 %v2826, %v2830
    %v2833 = vmul.f32 %v2829, %v2831
    %v2834 = vsub.f32 2.0, %v2832
    %v2835 = vsub.f32 2.0, %v2833
    %v2836 = vmul.f32 %v2830, %v2834
    %v2837 = vmul.f32 %v2831, %v2835
    %v2838 = vmul.f32 %v2821, %v2836
    %v2839 = vmul.f32 %v2823, %v2837
    %v2841 = vsel %vm647, %v2838, 0
    %v2844 = vsel %vm647, %v2839, 0
    %2846 = vmatprep.subr.mxu0 0.0
    %2847 = vmatpush1.msra.mxu0 0.0
    %2848 = vmatprep.subr.mxu0 0.0
    %2849 = vmatpush1.msra.mxu0 0.0
    %2850 = vmatprep.subr.mxu0 0.0
    %2851 = vmatpush1.msra.mxu0 0.0
    %2852 = vmatprep.subr.mxu0 0.0
    %2853 = vmatpush1.msra.mxu0 0.0
    %2854 = vmatprep.subr.mxu0 0.0
    %2855 = vmatpush1.msra.mxu0 0.0
    %2856 = vmatprep.subr.mxu0 0.0
    %2857 = vmatpush1.msra.mxu0 0.0
    %2858 = vmatprep.subr.mxu0 0.0
    %2859 = vmatpush1.msra.mxu0 0.0
    %2860 = vmatprep.subr.mxu0 0.0
    %2861 = vmatpush1.msra.mxu0 0.0
    %2862 = vmatprep.subr.mxu0 0.0
    %2863 = vmatpush1.msra.mxu0 0.0
    %2864 = vmatprep.subr.mxu0 0.0
    %2865 = vmatpush1.msra.mxu0 0.0
    %2866 = vmatprep.subr.mxu0 0.0
    %2867 = vmatpush1.msra.mxu0 0.0
    %2868 = vmatprep.subr.mxu0 0.0
    %2869 = vmatpush1.msra.mxu0 0.0
    %2870 = vmatprep.subr.mxu0 0.0
    %2871 = vmatpush1.msra.mxu0 0.0
    %2872 = vmatprep.subr.mxu0 0.0
    %2873 = vmatpush1.msra.mxu0 0.0
    %2874 = vmatprep.subr.mxu0 0.0
    %2875 = vmatpush1.msra.mxu0 %v2544
    %2876 = vmatprep.subr.mxu0 0.0
    %2877 = vmatpush1.msra.mxu0 %v2539
    %2878 = vmatprep.subr.mxu0 0.0
    %2879 = vmatpush2.msra.mxu0 0.0
    %2880 = vmatprep.subr.mxu0 0.0
    %2881 = vmatpush2.msra.mxu0 0.0
    %2882 = vmatprep.subr.mxu0 0.0
    %2883 = vmatpush2.msra.mxu0 0.0
    %2884 = vmatprep.subr.mxu0 0.0
    %2885 = vmatpush2.msra.mxu0 0.0
    %2886 = vmatprep.subr.mxu0 0.0
    %2887 = vmatpush2.msra.mxu0 0.0
    %2888 = vmatprep.subr.mxu0 0.0
    %2889 = vmatpush2.msra.mxu0 0.0
    %2890 = vmatprep.subr.mxu0 0.0
    %2891 = vmatpush2.msra.mxu0 0.0
    %2892 = vmatprep.subr.mxu0 0.0
    %2893 = vmatpush2.msra.mxu0 0.0
    %2894 = vmatprep.subr.mxu0 0.0
    %2895 = vmatpush2.msra.mxu0 0.0
    %2896 = vmatprep.subr.mxu0 0.0
    %2897 = vmatpush2.msra.mxu0 0.0
    %2898 = vmatprep.subr.mxu0 0.0
    %2899 = vmatpush2.msra.mxu0 0.0
    %2900 = vmatprep.subr.mxu0 0.0
    %2901 = vmatpush2.msra.mxu0 0.0
    %2902 = vmatprep.subr.mxu0 0.0
    %2903 = vmatpush2.msra.mxu0 0.0
    %2904 = vmatprep.subr.mxu0 0.0
    %2905 = vmatpush2.msra.mxu0 0.0
    %2906 = vmatprep.subr.mxu0 0.0
    %2907 = vmatpush2.msra.mxu0 0.0
    %2908 = vmatprep.subr.mxu0 0.0
    %2909 = vmatpush2.msra.mxu0 0.0
    %2910 = vmatprep.mubr.f32.mxu0 0.0
    %2911 = vmatmul.mubr.f32.gmra.mxu0 %v2841
    %v2912 = vpop.f32.mrf.mxu0
    %v2913 = vadd.f32 0.0, %v2912
    %v2914 = vpop.f32.mrf.mxu0
    %2915 = vmatprep.mubr.f32.mxu0 0.0
    %2916 = vmatmul.mubr.f32.gmra.mxu0 %v2844
    %v2917 = vpop.f32.mrf.mxu0
    %v2918 = vadd.f32 0.0, %v2917
    %v2919 = vpop.f32.mrf.mxu0
    %2920 = vdwg.mxu0
    %s2921 = scalar_lea.vmem %s6, 24
    %v2922 = vld [vmem:[%s2921] sm:$0xff]
    %v2924 = vsel %vm383, %v2913, 0
    %v2927 = vsel %vm383, %v2918, 0
    %2929 = vmatprep.subr.mxu0 0.0
    %2930 = vmatpush1.msra.mxu0 0.0
    %2931 = vmatprep.subr.mxu0 0.0
    %2932 = vmatpush1.msra.mxu0 0.0
    %2933 = vmatprep.subr.mxu0 0.0
    %2934 = vmatpush1.msra.mxu0 0.0
    %2935 = vmatprep.subr.mxu0 0.0
    %2936 = vmatpush1.msra.mxu0 0.0
    %2937 = vmatprep.subr.mxu0 0.0
    %2938 = vmatpush1.msra.mxu0 0.0
    %2939 = vmatprep.subr.mxu0 0.0
    %2940 = vmatpush1.msra.mxu0 0.0
    %2941 = vmatprep.subr.mxu0 0.0
    %2942 = vmatpush1.msra.mxu0 0.0
    %2943 = vmatprep.subr.mxu0 0.0
    %2944 = vmatpush1.msra.mxu0 0.0
    %2945 = vmatprep.subr.mxu0 0.0
    %2946 = vmatpush1.msra.mxu0 0.0
    %2947 = vmatprep.subr.mxu0 0.0
    %2948 = vmatpush1.msra.mxu0 0.0
    %2949 = vmatprep.subr.mxu0 0.0
    %2950 = vmatpush1.msra.mxu0 0.0
    %2951 = vmatprep.subr.mxu0 0.0
    %2952 = vmatpush1.msra.mxu0 0.0
    %2953 = vmatprep.subr.mxu0 0.0
    %2954 = vmatpush1.msra.mxu0 0.0
    %2955 = vmatprep.subr.mxu0 0.0
    %2956 = vmatpush1.msra.mxu0 0.0
    %2957 = vmatprep.subr.mxu0 0.0
    %2958 = vmatpush1.msra.mxu0 0.0
    %2959 = vmatprep.subr.mxu0 0.0
    %2960 = vmatpush1.msra.mxu0 %v2922
    %2961 = vmatprep.subr.mxu0 0.0
    %2962 = vmatpush2.msra.mxu0 0.0
    %2963 = vmatprep.subr.mxu0 0.0
    %2964 = vmatpush2.msra.mxu0 0.0
    %2965 = vmatprep.subr.mxu0 0.0
    %2966 = vmatpush2.msra.mxu0 0.0
    %2967 = vmatprep.subr.mxu0 0.0
    %2968 = vmatpush2.msra.mxu0 0.0
    %2969 = vmatprep.subr.mxu0 0.0
    %2970 = vmatpush2.msra.mxu0 0.0
    %2971 = vmatprep.subr.mxu0 0.0
    %2972 = vmatpush2.msra.mxu0 0.0
    %2973 = vmatprep.subr.mxu0 0.0
    %2974 = vmatpush2.msra.mxu0 0.0
    %2975 = vmatprep.subr.mxu0 0.0
    %2976 = vmatpush2.msra.mxu0 0.0
    %2977 = vmatprep.subr.mxu0 0.0
    %2978 = vmatpush2.msra.mxu0 0.0
    %2979 = vmatprep.subr.mxu0 0.0
    %2980 = vmatpush2.msra.mxu0 0.0
    %2981 = vmatprep.subr.mxu0 0.0
    %2982 = vmatpush2.msra.mxu0 0.0
    %2983 = vmatprep.subr.mxu0 0.0
    %2984 = vmatpush2.msra.mxu0 0.0
    %2985 = vmatprep.subr.mxu0 0.0
    %2986 = vmatpush2.msra.mxu0 0.0
    %2987 = vmatprep.subr.mxu0 0.0
    %2988 = vmatpush2.msra.mxu0 0.0
    %2989 = vmatprep.subr.mxu0 0.0
    %2990 = vmatpush2.msra.mxu0 0.0
    %2991 = vmatprep.subr.mxu0 0.0
    %2992 = vmatpush2.msra.mxu0 0.0
    %2993 = vmatprep.mubr.f32.mxu0 0.0
    %2994 = vmatmul.mubr.f32.gmra.mxu0 %v2924
    %v2995 = vpop.f32.mrf.mxu0
    %v2996 = vadd.f32 0.0, %v2995
    %v2997 = vpop.f32.mrf.mxu0
    %2998 = vmatprep.mubr.f32.mxu0 0.0
    %2999 = vmatmul.mubr.f32.gmra.mxu0 %v2927
    %v3000 = vpop.f32.mrf.mxu0
    %v3001 = vadd.f32 0.0, %v3000
    %v3002 = vpop.f32.mrf.mxu0
    %3003 = vdwg.mxu0
    %v3004 = vadd.f32 %v2281, %v2996
    %v3005 = vadd.f32 %v2282, %v3001
    %v3006 = vadd.f32 %v39, %v3004
    %v3007 = vadd.f32 %v40, %v3005
    %v3009 = vlaneseq
    %v3010 = vshrl.u32 %v3009, 7
    %v3011 = vsub.s32 0, %v3010
    %v3012 = vrot.slane %v51, %v3011
    %v3014 = vadd.f32 %v3006, %v3012
    %v3015 = vadd.f32 %v3007, %v3012
    %v3016 = vsel %vm69, %v3014, 0.0
    %3017 = vadd.xlane.f32.xlu0 %v3016
    %v3018 = vpop.xlane.xlu0 %3017
    %v3019 = vsel %vm69, %v3015, 0.0
    %3020 = vadd.xlane.f32.xlu0 %v3019
    %v3021 = vpop.xlane.xlu0 %3020
    %v3022 = vmul.f32 %v3018, %v76
    %v3023 = vmul.f32 %v3021, %v76
    %v3024 = vsub.f32 %v3014, %v3022
    %v3025 = vsub.f32 %v3015, %v3023
    %v3026 = vmul.f32 %v3024, %v3024
    %v3027 = vmul.f32 %v3025, %v3025
    %v3028 = vsel %vm69, %v3026, 0.0
    %3029 = vadd.xlane.f32.xlu0 %v3028
    %v3030 = vpop.xlane.xlu0 %3029
    %v3031 = vsel %vm69, %v3027, 0.0
    %3032 = vadd.xlane.f32.xlu0 %v3031
    %v3033 = vpop.xlane.xlu0 %3032
    %v3034 = vmul.f32 %v3030, %v76
    %v3035 = vmul.f32 %v3033, %v76
    %v3036 = vadd.f32 %v3034, 1e-05
    %v3037 = vadd.f32 %v3035, 1e-05
    %v3038 = vrsqrt.pop %v3036
    %v3039 = vrsqrt.pop %v3037
    %v3040 = vmul.f32 %v3024, %v3038
    %v3041 = vmul.f32 %v3025, %v3039
    %v3043 = vlaneseq
    %v3044 = vshrl.u32 %v3043, 7
    %v3045 = vsub.s32 0, %v3044
    %v3046 = vrot.slane %v53, %v3045
    %v3048 = vmul.f32 %v3040, %v3046
    %v3049 = vmul.f32 %v3041, %v3046
    %v3051 = vlaneseq
    %v3052 = vshrl.u32 %v3051, 7
    %v3053 = vsub.s32 0, %v3052
    %v3054 = vrot.slane %v55, %v3053
    %v3056 = vadd.f32 %v3048, %v3054
    %v3057 = vadd.f32 %v3049, %v3054
    %v3058 = vld [vmem:[%s7] sm:$0xff]
    %v3059 = vld [vmem:[%s7 + $0x8] sm:$0xff]
    %v3060 = vld [vmem:[%s7 + $0x10] sm:$0xff]
    %v3061 = vld [vmem:[%s7 + $0x18] sm:$0xff]
    %v3062 = vld [vmem:[%s8] sm:$0x1]
    %v3064 = vlaneseq
    %v3065 = vshrl.u32 %v3064, 7
    %v3066 = vsub.s32 0, %v3065
    %v3067 = vrot.slane %v3062, %v3066
    %v3070 = vsel %vm69, %v3056, 0
    %v3073 = vsel %vm69, %v3057, 0
    %3075 = vmatprep.subr.mxu0 0.0
    %3076 = vmatpush1.msra.mxu0 0.0
    %3077 = vmatprep.subr.mxu0 0.0
    %3078 = vmatpush1.msra.mxu0 0.0
    %3079 = vmatprep.subr.mxu0 0.0
    %3080 = vmatpush1.msra.mxu0 0.0
    %3081 = vmatprep.subr.mxu0 0.0
    %3082 = vmatpush1.msra.mxu0 0.0
    %3083 = vmatprep.subr.mxu0 0.0
    %3084 = vmatpush1.msra.mxu0 0.0
    %3085 = vmatprep.subr.mxu0 0.0
    %3086 = vmatpush1.msra.mxu0 0.0
    %3087 = vmatprep.subr.mxu0 0.0
    %3088 = vmatpush1.msra.mxu0 0.0
    %3089 = vmatprep.subr.mxu0 0.0
    %3090 = vmatpush1.msra.mxu0 0.0
    %3091 = vmatprep.subr.mxu0 0.0
    %3092 = vmatpush1.msra.mxu0 0.0
    %3093 = vmatprep.subr.mxu0 0.0
    %3094 = vmatpush1.msra.mxu0 0.0
    %3095 = vmatprep.subr.mxu0 0.0
    %3096 = vmatpush1.msra.mxu0 0.0
    %3097 = vmatprep.subr.mxu0 0.0
    %3098 = vmatpush1.msra.mxu0 0.0
    %3099 = vmatprep.subr.mxu0 0.0
    %3100 = vmatpush1.msra.mxu0 %v3061
    %3101 = vmatprep.subr.mxu0 0.0
    %3102 = vmatpush1.msra.mxu0 %v3060
    %3103 = vmatprep.subr.mxu0 0.0
    %3104 = vmatpush1.msra.mxu0 %v3059
    %3105 = vmatprep.subr.mxu0 0.0
    %3106 = vmatpush1.msra.mxu0 %v3058
    %3107 = vmatprep.subr.mxu0 0.0
    %3108 = vmatpush2.msra.mxu0 0.0
    %3109 = vmatprep.subr.mxu0 0.0
    %3110 = vmatpush2.msra.mxu0 0.0
    %3111 = vmatprep.subr.mxu0 0.0
    %3112 = vmatpush2.msra.mxu0 0.0
    %3113 = vmatprep.subr.mxu0 0.0
    %3114 = vmatpush2.msra.mxu0 0.0
    %3115 = vmatprep.subr.mxu0 0.0
    %3116 = vmatpush2.msra.mxu0 0.0
    %3117 = vmatprep.subr.mxu0 0.0
    %3118 = vmatpush2.msra.mxu0 0.0
    %3119 = vmatprep.subr.mxu0 0.0
    %3120 = vmatpush2.msra.mxu0 0.0
    %3121 = vmatprep.subr.mxu0 0.0
    %3122 = vmatpush2.msra.mxu0 0.0
    %3123 = vmatprep.subr.mxu0 0.0
    %3124 = vmatpush2.msra.mxu0 0.0
    %3125 = vmatprep.subr.mxu0 0.0
    %3126 = vmatpush2.msra.mxu0 0.0
    %3127 = vmatprep.subr.mxu0 0.0
    %3128 = vmatpush2.msra.mxu0 0.0
    %3129 = vmatprep.subr.mxu0 0.0
    %3130 = vmatpush2.msra.mxu0 0.0
    %3131 = vmatprep.subr.mxu0 0.0
    %3132 = vmatpush2.msra.mxu0 0.0
    %3133 = vmatprep.subr.mxu0 0.0
    %3134 = vmatpush2.msra.mxu0 0.0
    %3135 = vmatprep.subr.mxu0 0.0
    %3136 = vmatpush2.msra.mxu0 0.0
    %3137 = vmatprep.subr.mxu0 0.0
    %3138 = vmatpush2.msra.mxu0 0.0
    %3139 = vmatprep.mubr.f32.mxu0 0.0
    %3140 = vmatmul.mubr.f32.gmra.mxu0 %v3070
    %v3141 = vpop.f32.mrf.mxu0
    %v3142 = vadd.f32 %v3067, %v3141
    %v3143 = vpop.f32.mrf.mxu0
    %3144 = vmatprep.mubr.f32.mxu0 0.0
    %3145 = vmatmul.mubr.f32.gmra.mxu0 %v3073
    %v3146 = vpop.f32.mrf.mxu0
    %v3147 = vadd.f32 %v3067, %v3146
    %v3148 = vpop.f32.mrf.mxu0
    %3149 = vdwg.mxu0
    %s3150 = scalar_lea.vmem %s7, 32
    %v3151 = vld [vmem:[%s3150] sm:$0xff]
    %v3152 = vld [vmem:[%s3150 + $0x8] sm:$0xff]
    %v3153 = vld [vmem:[%s3150 + $0x10] sm:$0xff]
    %v3154 = vld [vmem:[%s3150 + $0x18] sm:$0xff]
    %s3155 = scalar_lea.vmem %s8, 1
    %v3156 = vld [vmem:[%s3155] sm:$0x1]
    %v3158 = vlaneseq
    %v3159 = vshrl.u32 %v3158, 7
    %v3160 = vsub.s32 0, %v3159
    %v3161 = vrot.slane %v3156, %v3160
    %3163 = vmatprep.subr.mxu0 0.0
    %3164 = vmatpush1.msra.mxu0 0.0
    %3165 = vmatprep.subr.mxu0 0.0
    %3166 = vmatpush1.msra.mxu0 0.0
    %3167 = vmatprep.subr.mxu0 0.0
    %3168 = vmatpush1.msra.mxu0 0.0
    %3169 = vmatprep.subr.mxu0 0.0
    %3170 = vmatpush1.msra.mxu0 0.0
    %3171 = vmatprep.subr.mxu0 0.0
    %3172 = vmatpush1.msra.mxu0 0.0
    %3173 = vmatprep.subr.mxu0 0.0
    %3174 = vmatpush1.msra.mxu0 0.0
    %3175 = vmatprep.subr.mxu0 0.0
    %3176 = vmatpush1.msra.mxu0 0.0
    %3177 = vmatprep.subr.mxu0 0.0
    %3178 = vmatpush1.msra.mxu0 0.0
    %3179 = vmatprep.subr.mxu0 0.0
    %3180 = vmatpush1.msra.mxu0 0.0
    %3181 = vmatprep.subr.mxu0 0.0
    %3182 = vmatpush1.msra.mxu0 0.0
    %3183 = vmatprep.subr.mxu0 0.0
    %3184 = vmatpush1.msra.mxu0 0.0
    %3185 = vmatprep.subr.mxu0 0.0
    %3186 = vmatpush1.msra.mxu0 0.0
    %3187 = vmatprep.subr.mxu0 0.0
    %3188 = vmatpush1.msra.mxu0 %v3154
    %3189 = vmatprep.subr.mxu0 0.0
    %3190 = vmatpush1.msra.mxu0 %v3153
    %3191 = vmatprep.subr.mxu0 0.0
    %3192 = vmatpush1.msra.mxu0 %v3152
    %3193 = vmatprep.subr.mxu0 0.0
    %3194 = vmatpush1.msra.mxu0 %v3151
    %3195 = vmatprep.subr.mxu0 0.0
    %3196 = vmatpush2.msra.mxu0 0.0
    %3197 = vmatprep.subr.mxu0 0.0
    %3198 = vmatpush2.msra.mxu0 0.0
    %3199 = vmatprep.subr.mxu0 0.0
    %3200 = vmatpush2.msra.mxu0 0.0
    %3201 = vmatprep.subr.mxu0 0.0
    %3202 = vmatpush2.msra.mxu0 0.0
    %3203 = vmatprep.subr.mxu0 0.0
    %3204 = vmatpush2.msra.mxu0 0.0
    %3205 = vmatprep.subr.mxu0 0.0
    %3206 = vmatpush2.msra.mxu0 0.0
    %3207 = vmatprep.subr.mxu0 0.0
    %3208 = vmatpush2.msra.mxu0 0.0
    %3209 = vmatprep.subr.mxu0 0.0
    %3210 = vmatpush2.msra.mxu0 0.0
    %3211 = vmatprep.subr.mxu0 0.0
    %3212 = vmatpush2.msra.mxu0 0.0
    %3213 = vmatprep.subr.mxu0 0.0
    %3214 = vmatpush2.msra.mxu0 0.0
    %3215 = vmatprep.subr.mxu0 0.0
    %3216 = vmatpush2.msra.mxu0 0.0
    %3217 = vmatprep.subr.mxu0 0.0
    %3218 = vmatpush2.msra.mxu0 0.0
    %3219 = vmatprep.subr.mxu0 0.0
    %3220 = vmatpush2.msra.mxu0 0.0
    %3221 = vmatprep.subr.mxu0 0.0
    %3222 = vmatpush2.msra.mxu0 0.0
    %3223 = vmatprep.subr.mxu0 0.0
    %3224 = vmatpush2.msra.mxu0 0.0
    %3225 = vmatprep.subr.mxu0 0.0
    %3226 = vmatpush2.msra.mxu0 0.0
    %3227 = vmatprep.mubr.f32.mxu0 0.0
    %3228 = vmatmul.mubr.f32.gmra.mxu0 %v3070
    %v3229 = vpop.f32.mrf.mxu0
    %v3230 = vadd.f32 %v3161, %v3229
    %v3231 = vpop.f32.mrf.mxu0
    %3232 = vmatprep.mubr.f32.mxu0 0.0
    %3233 = vmatmul.mubr.f32.gmra.mxu0 %v3073
    %v3234 = vpop.f32.mrf.mxu0
    %v3235 = vadd.f32 %v3161, %v3234
    %v3236 = vpop.f32.mrf.mxu0
    %3237 = vdwg.mxu0
    %v3238 = vmul.f32 %v3230, 0.5
    %v3239 = vmul.f32 %v3235, 0.5
    %v3240 = vmul.f32 %v3230, 0.044715
    %v3241 = vmul.f32 %v3235, 0.044715
    %v3242 = vmul.f32 %v3240, %v3230
    %v3243 = vmul.f32 %v3241, %v3235
    %v3244 = vmul.f32 %v3242, %v3230
    %v3245 = vmul.f32 %v3243, %v3235
    %v3246 = vadd.f32 %v3230, %v3244
    %v3247 = vadd.f32 %v3235, %v3245
    %v3248 = vmul.f32 %v3246, 0.7978846
    %v3249 = vmul.f32 %v3247, 0.7978846
    %v3250 = vtanh.pop %v3248
    %v3251 = vtanh.pop %v3249
    %v3252 = vadd.f32 %v3250, 1.0
    %v3253 = vadd.f32 %v3251, 1.0
    %v3254 = vmul.f32 %v3238, %v3252
    %v3255 = vmul.f32 %v3239, %v3253
    %v3256 = vmul.f32 %v3142, %v3254
    %v3257 = vmul.f32 %v3147, %v3255
    %v3258 = vld [vmem:[%s9] sm:$0xff]
    %v3259 = vld [vmem:[%s9 + $0x8] sm:$0xff]
    %v3260 = vld [vmem:[%s9 + $0x10] sm:$0xff]
    %v3261 = vld [vmem:[%s9 + $0x18] sm:$0xff]
    %v3262 = vld [vmem:[%s9 + $0x20] sm:$0xff]
    %v3263 = vld [vmem:[%s9 + $0x28] sm:$0xff]
    %v3264 = vld [vmem:[%s9 + $0x30] sm:$0xff]
    %v3265 = vld [vmem:[%s9 + $0x38] sm:$0xff]
    %v3267 = vlaneseq
    %v3268 = vshrl.u32 %v3267, 7
    %v3269 = vsub.s32 0, %v3268
    %v3270 = vrot.slane %v57, %v3269
    %vm3272 = vcmask 523264
    %v3274 = vsel %vm3272, %v3256, 0
    %v3277 = vsel %vm3272, %v3257, 0
    %3279 = vmatprep.subr.mxu0 0.0
    %3280 = vmatpush1.msra.mxu0 0.0
    %3281 = vmatprep.subr.mxu0 0.0
    %3282 = vmatpush1.msra.mxu0 0.0
    %3283 = vmatprep.subr.mxu0 0.0
    %3284 = vmatpush1.msra.mxu0 0.0
    %3285 = vmatprep.subr.mxu0 0.0
    %3286 = vmatpush1.msra.mxu0 0.0
    %3287 = vmatprep.subr.mxu0 0.0
    %3288 = vmatpush1.msra.mxu0 0.0
    %3289 = vmatprep.subr.mxu0 0.0
    %3290 = vmatpush1.msra.mxu0 0.0
    %3291 = vmatprep.subr.mxu0 0.0
    %3292 = vmatpush1.msra.mxu0 0.0
    %3293 = vmatprep.subr.mxu0 0.0
    %3294 = vmatpush1.msra.mxu0 0.0
    %3295 = vmatprep.subr.mxu0 0.0
    %3296 = vmatpush1.msra.mxu0 %v3265
    %3297 = vmatprep.subr.mxu0 0.0
    %3298 = vmatpush1.msra.mxu0 %v3264
    %3299 = vmatprep.subr.mxu0 0.0
    %3300 = vmatpush1.msra.mxu0 %v3263
    %3301 = vmatprep.subr.mxu0 0.0
    %3302 = vmatpush1.msra.mxu0 %v3262
    %3303 = vmatprep.subr.mxu0 0.0
    %3304 = vmatpush1.msra.mxu0 %v3261
    %3305 = vmatprep.subr.mxu0 0.0
    %3306 = vmatpush1.msra.mxu0 %v3260
    %3307 = vmatprep.subr.mxu0 0.0
    %3308 = vmatpush1.msra.mxu0 %v3259
    %3309 = vmatprep.subr.mxu0 0.0
    %3310 = vmatpush1.msra.mxu0 %v3258
    %3311 = vmatprep.subr.mxu0 0.0
    %3312 = vmatpush2.msra.mxu0 0.0
    %3313 = vmatprep.subr.mxu0 0.0
    %3314 = vmatpush2.msra.mxu0 0.0
    %3315 = vmatprep.subr.mxu0 0.0
    %3316 = vmatpush2.msra.mxu0 0.0
    %3317 = vmatprep.subr.mxu0 0.0
    %3318 = vmatpush2.msra.mxu0 0.0
    %3319 = vmatprep.subr.mxu0 0.0
    %3320 = vmatpush2.msra.mxu0 0.0
    %3321 = vmatprep.subr.mxu0 0.0
    %3322 = vmatpush2.msra.mxu0 0.0
    %3323 = vmatprep.subr.mxu0 0.0
    %3324 = vmatpush2.msra.mxu0 0.0
    %3325 = vmatprep.subr.mxu0 0.0
    %3326 = vmatpush2.msra.mxu0 0.0
    %3327 = vmatprep.subr.mxu0 0.0
    %3328 = vmatpush2.msra.mxu0 0.0
    %3329 = vmatprep.subr.mxu0 0.0
    %3330 = vmatpush2.msra.mxu0 0.0
    %3331 = vmatprep.subr.mxu0 0.0
    %3332 = vmatpush2.msra.mxu0 0.0
    %3333 = vmatprep.subr.mxu0 0.0
    %3334 = vmatpush2.msra.mxu0 0.0
    %3335 = vmatprep.subr.mxu0 0.0
    %3336 = vmatpush2.msra.mxu0 0.0
    %3337 = vmatprep.subr.mxu0 0.0
    %3338 = vmatpush2.msra.mxu0 0.0
    %3339 = vmatprep.subr.mxu0 0.0
    %3340 = vmatpush2.msra.mxu0 0.0
    %3341 = vmatprep.subr.mxu0 0.0
    %3342 = vmatpush2.msra.mxu0 0.0
    %3343 = vmatprep.mubr.f32.mxu0 0.0
    %3344 = vmatmul.mubr.f32.gmra.mxu0 %v3274
    %v3345 = vpop.f32.mrf.mxu0
    %v3346 = vadd.f32 %v3270, %v3345
    %v3347 = vpop.f32.mrf.mxu0
    %3348 = vmatprep.mubr.f32.mxu0 0.0
    %3349 = vmatmul.mubr.f32.gmra.mxu0 %v3277
    %v3350 = vpop.f32.mrf.mxu0
    %v3351 = vadd.f32 %v3270, %v3350
    %v3352 = vpop.f32.mrf.mxu0
    %3353 = vdwg.mxu0
    %v3354 = vadd.f32 %v3014, %v3346
    %v3355 = vadd.f32 %v3015, %v3351
    %3356 = vst.msk [vmem:[#allocation2] sm:$0xff] %vm69, %v3354
    %3357 = vst.msk [vmem:[#allocation2 + $0x8] sm:$0xff] %vm69, %v3355
    // Predicated region
    $region46: #{hrom_block_pallas.1} parent=1 // pred_check
      _
    $region47: #{hrom_block_pallas.1} parent=1 // pred_check_branch
      %3359 = sbr.rel (0) target = $region49
    $region48: #{hrom_block_pallas.1} parent=1 // pred_region
      %s3361 = ssub.s32 256, 256
      %3362 = vsyncadd [#allocation3], %s3361
      %s3363 = sshll.u32 [#allocation2], 4
      %s3364 = int_to_ptr.vmem [resolvable:$true] %s3363
      %3369 = dma.vmem_to_hbm [thread:$0]  %s3364, 256, %s11, [#allocation3], 128, 128, 8
    $region49: #{hrom_block_pallas.1} parent=1 // pred_fallthru
      _
    // Predicated region
    $region50: #{hrom_block_pallas.1} parent=1 // pred_check
      _
    $region51: #{hrom_block_pallas.1} parent=1 // pred_check_branch
      %3371 = sbr.rel (0) target = $region53
    $region52: #{hrom_block_pallas.1} parent=1 // pred_region
      %3372 = dma.done [#allocation3], 256
    $region53: #{hrom_block_pallas.1} parent=1 // pred_fallthru
      _
    %3373 = vsyncpa [#allocation3], 1

</llo_original>
